<compile_context>
chip_gen: v7x
topology: tpu7x:2x2x1
jax: 0.10.0
libtpu: 0.0.40
codegen_flags: <defaults>
</compile_context>

<pallas_src>
import math
import jax
import jax.numpy as jnp
from jax.experimental import pallas as pl
from jax.experimental.pallas import tpu as pltpu

# ----------------------------- configuration -----------------------------
N = 16          # number of set elements (nodes)
D = 32          # input_dimension
STEPS = 4       # set2set steps
B = 16          # independent sets per pallas_call
BT = 8          # sets per grid step (sublane-dense output block)


# ------------------------------- kernel ----------------------------------
def set2set_kernel(x_ref, w_ref, b_ref, wp_ref, bp_ref, out_ref):
    x = x_ref[...]                                   # (BT, N, D)
    w = w_ref[...]                                   # (2D, 4D) fused gate weight
    # Hoisted broadcast of the fused gate bias (used every step).
    b = jnp.broadcast_to(b_ref[...], (BT, 4 * D))    # (BT, 4D)

    h = jnp.zeros((BT, D), jnp.float32)
    c = jnp.zeros((BT, D), jnp.float32)
    contexts = []

    for _ in range(STEPS):
        # attention over the set: VPU multiply + XLU reduce (no rank-1 MXU calls)
        logits = jnp.sum(x * h[:, None, :], axis=-1)                    # (BT, N)
        logits = logits - jnp.max(logits, axis=-1, keepdims=True)
        e = jnp.exp(logits)
        inv = pl.reciprocal(jnp.sum(e, axis=-1, keepdims=True), approx=True)
        scores = e * inv                                                # (BT, N)

        context = jnp.sum(scores[:, :, None] * x, axis=1)               # (BT, D)
        contexts.append(context)

        # fused LSTM cell: one (BT,2D)@(2D,4D) matmul for all 4 gates
        xt = jnp.concatenate([context, h], axis=-1)                     # (BT, 2D)
        gates = jnp.dot(xt, w, preferred_element_type=jnp.float32) + b  # (BT, 4D)
        i_g = jax.nn.sigmoid(gates[:, 0:D])
        f_g = jax.nn.sigmoid(gates[:, D:2 * D])
        g_g = jnp.tanh(gates[:, 2 * D:3 * D])
        o_g = jax.nn.sigmoid(gates[:, 3 * D:4 * D])
        c = f_g * c + i_g * g_g
        h = o_g * jnp.tanh(c)

    # projection over concatenated contexts + softmax over D
    flat = jnp.concatenate(contexts, axis=-1)                           # (BT, STEPS*D)
    proj = jnp.dot(flat, wp_ref[...], preferred_element_type=jnp.float32) + bp_ref[...]
    proj = proj - jnp.max(proj, axis=-1, keepdims=True)
    pe = jnp.exp(proj)
    inv_p = pl.reciprocal(jnp.sum(pe, axis=-1, keepdims=True), approx=True)
    out_ref[...] = pe * inv_p                                           # (BT, D)


# ------------------------------- wrapper ----------------------------------
def set2set_pooling(x, w_ih, w_hh, b_ih, b_hh, w_proj, b_proj):
    """x: (B, N, D). PyTorch-layout params:
       w_ih (4D, 2D), w_hh (4D, D), b_ih/b_hh (4D,), w_proj (D, steps*D), b_proj (D,).
       Returns per-set pooled output, shape (B, D).
    """
    assert x.shape == (B, N, D)
    assert B % BT == 0

    # Fold w_hh into the h-rows of w_ih^T (xt = [context, h]) and fuse all
    # 4 gates (PyTorch order i, f, g, o) into one (2D, 4D) weight + (1, 4D) bias.
    w_fused = w_ih.T.astype(jnp.float32)                 # (2D, 4D)
    w_fused = w_fused.at[D:2 * D, :].add(w_hh.T.astype(jnp.float32))
    b_fused = (b_ih + b_hh).astype(jnp.float32).reshape(1, 4 * D)   # (1, 4D)
    wp_t = w_proj.T.astype(jnp.float32)                  # (STEPS*D, D)
    bp = b_proj.astype(jnp.float32).reshape(1, D)        # (1, D)

    out = pl.pallas_call(
        set2set_kernel,
        out_shape=jax.ShapeDtypeStruct((B, D), jnp.float32),
        grid_spec=pltpu.PrefetchScalarGridSpec(
            num_scalar_prefetch=0,
            grid=(B // BT,),
            in_specs=[
                pl.BlockSpec((BT, N, D), lambda i: (i, 0, 0)),        # x batch tile
                pl.BlockSpec((2 * D, 4 * D), lambda i: (0, 0)),       # fused gate W
                pl.BlockSpec((1, 4 * D), lambda i: (0, 0)),           # fused gate b
                pl.BlockSpec((STEPS * D, D), lambda i: (0, 0)),       # projection W^T
                pl.BlockSpec((1, D), lambda i: (0, 0)),               # projection b
            ],
            out_specs=pl.BlockSpec((BT, D), lambda i: (i, 0)),
        ),
        compiler_params=pltpu.CompilerParams(
            # batch axis is independent -> shards across both TCs on v7x,
            # harmless on v5e/v6e.  VMEM footprint is tiny (<100 KiB/block).
            dimension_semantics=("parallel",)),
    )(x.astype(jnp.float32), w_fused, b_fused, wp_t, bp)
    return out


# --------------------------- pure-JAX reference ----------------------------
def set2set_ref(x, w_ih, w_hh, b_ih, b_hh, w_proj, b_proj):
    h = jnp.zeros((D,), jnp.float32)
    c = jnp.zeros((D,), jnp.float32)
    contexts = []
    for _ in range(STEPS):
        scores = jax.nn.softmax(x @ h, axis=0)                   # (N,)
        context = scores @ x                                     # (D,)
        contexts.append(context)
        xt = jnp.concatenate([context, h])                       # (2D,)
        gates = w_ih @ xt + b_ih + w_hh @ h + b_hh               # (4D,)
        i_g = jax.nn.sigmoid(gates[0:D])
        f_g = jax.nn.sigmoid(gates[D:2 * D])
        g_g = jnp.tanh(gates[2 * D:3 * D])
        o_g = jax.nn.sigmoid(gates[3 * D:4 * D])
        c = f_g * c + i_g * g_g
        h = o_g * jnp.tanh(c)
    flat = jnp.concatenate(contexts)                             # (S*D,)
    return jax.nn.softmax(w_proj @ flat + b_proj, axis=0)


# --------------------------------- main ------------------------------------
if __name__ == "__main__":
    key = jax.random.PRNGKey(0)
    keys = jax.random.split(key, 8)

    x = jax.random.normal(keys[0], (B, N, D), jnp.float32)

    # deterministic parameter init (PyTorch-style uniform bounds)
    k_lstm = 1.0 / math.sqrt(D)
    w_ih = jax.random.uniform(keys[1], (4 * D, 2 * D), jnp.float32, -k_lstm, k_lstm)
    w_hh = jax.random.uniform(keys[2], (4 * D, D), jnp.float32, -k_lstm, k_lstm)
    b_ih = jax.random.uniform(keys[3], (4 * D,), jnp.float32, -k_lstm, k_lstm)
    b_hh = jax.random.uniform(keys[4], (4 * D,), jnp.float32, -k_lstm, k_lstm)

    k_proj = 1.0 / math.sqrt(STEPS * D)
    w_proj = jax.random.uniform(keys[5], (D, STEPS * D), jnp.float32, -k_proj, k_proj)
    b_proj = jax.random.uniform(keys[6], (D,), jnp.float32, -k_proj, k_proj)

    out = set2set_pooling(x, w_ih, w_hh, b_ih, b_hh, w_proj, b_proj)
    out = jax.block_until_ready(out)

    ref = jax.vmap(
        lambda xi: set2set_ref(xi, w_ih, w_hh, b_ih, b_hh, w_proj, b_proj))(x)

    assert out.shape == (B, D)
    # tolerance loosened vs 1e-5 because of pl.reciprocal(approx=True) softmaxes
    assert jnp.allclose(out, ref, atol=2e-3, rtol=2e-2), (out, ref)

    print("KERNEL_OK")
</pallas_src>

<mosaic_0001>
module attributes {stable_mosaic.version = 11 : i64} {
  func.func @set2set_kernel(%arg0: i32, %arg1: memref<8x16x32xf32, #tpu.memory_space<vmem>>, %arg2: memref<64x128xf32, #tpu.memory_space<vmem>>, %arg3: memref<1x128xf32, #tpu.memory_space<vmem>>, %arg4: memref<128x32xf32, #tpu.memory_space<vmem>>, %arg5: memref<1x32xf32, #tpu.memory_space<vmem>>, %arg6: memref<8x32xf32, #tpu.memory_space<vmem>>) attributes {dimension_semantics = [#tpu.dimension_semantics<parallel>], iteration_bounds = array<i64: 2>, scalar_prefetch = 0 : i64, scratch_operands = 0 : i64, tpu.core_type = #tpu.core_type<tc>, window_params = [{transform_indices = @transform_0, window_bounds = array<i64: 8, 16, 32>}, {pipeline_mode = #tpu.pipeline_mode<synchronous>, transform_indices = @transform_1, window_bounds = array<i64: 64, 128>}, {pipeline_mode = #tpu.pipeline_mode<synchronous>, transform_indices = @transform_2, window_bounds = array<i64: 1, 128>}, {pipeline_mode = #tpu.pipeline_mode<synchronous>, transform_indices = @transform_3, window_bounds = array<i64: 128, 32>}, {pipeline_mode = #tpu.pipeline_mode<synchronous>, transform_indices = @transform_4, window_bounds = array<i64: 1, 32>}, {transform_indices = @transform_5, window_bounds = array<i64: 8, 32>}]} {
    %c0 = arith.constant 0 : index
    %c0_0 = arith.constant 0 : index
    %c0_1 = arith.constant 0 : index
    %0 = vector.load %arg1[%c0, %c0_0, %c0_1] : memref<8x16x32xf32, #tpu.memory_space<vmem>>, vector<8x16x32xf32>
    %c0_2 = arith.constant 0 : index
    %c0_3 = arith.constant 0 : index
    %1 = vector.load %arg2[%c0_2, %c0_3] : memref<64x128xf32, #tpu.memory_space<vmem>>, vector<64x128xf32>
    %c0_4 = arith.constant 0 : index
    %c0_5 = arith.constant 0 : index
    %2 = vector.load %arg3[%c0_4, %c0_5] : memref<1x128xf32, #tpu.memory_space<vmem>>, vector<1x128xf32>
    %3 = vector.shape_cast %2 : vector<1x128xf32> to vector<1x128xf32>
    %4 = vector.broadcast %3 : vector<1x128xf32> to vector<8x128xf32>
    %cst = arith.constant 0.000000e+00 : f32
    %5 = vector.broadcast %cst : f32 to vector<8x32xf32>
    %cst_6 = arith.constant 0.000000e+00 : f32
    %6 = vector.broadcast %cst_6 : f32 to vector<8x32xf32>
    %7 = vector.shape_cast %5 : vector<8x32xf32> to vector<8x1x32xf32>
    %8 = vector.broadcast %7 : vector<8x1x32xf32> to vector<8x16x32xf32>
    %9 = arith.mulf %0, %8 : vector<8x16x32xf32>
    %cst_7 = arith.constant dense<0.000000e+00> : vector<8x16xf32>
    %10 = vector.multi_reduction <add>, %9, %cst_7 [2] : vector<8x16x32xf32> to vector<8x16xf32>
    %cst_8 = arith.constant dense<0xFF800000> : vector<8xf32>
    %11 = vector.multi_reduction <maximumf>, %10, %cst_8 [1] : vector<8x16xf32> to vector<8xf32>
    %12 = vector.shape_cast %11 : vector<8xf32> to vector<8x1xf32>
    %13 = vector.broadcast %12 : vector<8x1xf32> to vector<8x16xf32>
    %14 = arith.subf %10, %13 : vector<8x16xf32>
    %15 = math.exp %14 : vector<8x16xf32>
    %cst_9 = arith.constant dense<0.000000e+00> : vector<8xf32>
    %16 = vector.multi_reduction <add>, %15, %cst_9 [1] : vector<8x16xf32> to vector<8xf32>
    %17 = vector.shape_cast %16 : vector<8xf32> to vector<8x1xf32>
    %18 = tpu.reciprocal %17 {approx = true} : vector<8x1xf32> -> vector<8x1xf32>
    %19 = vector.broadcast %18 : vector<8x1xf32> to vector<8x16xf32>
    %20 = arith.mulf %15, %19 : vector<8x16xf32>
    %21 = vector.shape_cast %20 : vector<8x16xf32> to vector<8x16x1xf32>
    %22 = vector.broadcast %21 : vector<8x16x1xf32> to vector<8x16x32xf32>
    %23 = arith.mulf %22, %0 : vector<8x16x32xf32>
    %cst_10 = arith.constant dense<0.000000e+00> : vector<8x32xf32>
    %24 = vector.multi_reduction <add>, %23, %cst_10 [1] : vector<8x16x32xf32> to vector<8x32xf32>
    %25 = tpu.concatenate %24, %5 in 1 : vector<8x32xf32>, vector<8x32xf32> -> vector<8x64xf32>
    %cst_11 = arith.constant dense<0.000000e+00> : vector<8x128xf32>
    %26 = tpu.matmul %25, %1, %cst_11 {dimension_numbers = #tpu.dot_dimension_numbers<[1], [0], [0], [1], [0, 0, 1, 1], [], []>} : vector<8x64xf32>, vector<64x128xf32>, vector<8x128xf32> -> vector<8x128xf32>
    %27 = arith.addf %26, %4 : vector<8x128xf32>
    %28 = vector.extract_strided_slice %27 {offsets = [0, 0], sizes = [8, 32], strides = [1, 1]} : vector<8x128xf32> to vector<8x32xf32>
    %29 = arith.negf %28 : vector<8x32xf32>
    %30 = math.exp %29 : vector<8x32xf32>
    %cst_12 = arith.constant 1.000000e+00 : f32
    %31 = vector.broadcast %cst_12 : f32 to vector<8x32xf32>
    %32 = arith.addf %31, %30 : vector<8x32xf32>
    %33 = arith.divf %31, %32 : vector<8x32xf32>
    %34 = vector.extract_strided_slice %27 {offsets = [0, 32], sizes = [8, 32], strides = [1, 1]} : vector<8x128xf32> to vector<8x32xf32>
    %35 = arith.negf %34 : vector<8x32xf32>
    %36 = math.exp %35 : vector<8x32xf32>
    %cst_13 = arith.constant 1.000000e+00 : f32
    %37 = vector.broadcast %cst_13 : f32 to vector<8x32xf32>
    %38 = arith.addf %37, %36 : vector<8x32xf32>
    %39 = arith.divf %37, %38 : vector<8x32xf32>
    %40 = vector.extract_strided_slice %27 {offsets = [0, 64], sizes = [8, 32], strides = [1, 1]} : vector<8x128xf32> to vector<8x32xf32>
    %41 = math.tanh %40 : vector<8x32xf32>
    %42 = vector.extract_strided_slice %27 {offsets = [0, 96], sizes = [8, 32], strides = [1, 1]} : vector<8x128xf32> to vector<8x32xf32>
    %43 = arith.negf %42 : vector<8x32xf32>
    %44 = math.exp %43 : vector<8x32xf32>
    %cst_14 = arith.constant 1.000000e+00 : f32
    %45 = vector.broadcast %cst_14 : f32 to vector<8x32xf32>
    %46 = arith.addf %45, %44 : vector<8x32xf32>
    %47 = arith.divf %45, %46 : vector<8x32xf32>
    %48 = arith.mulf %39, %6 : vector<8x32xf32>
    %49 = arith.mulf %33, %41 : vector<8x32xf32>
    %50 = arith.addf %48, %49 : vector<8x32xf32>
    %51 = math.tanh %50 : vector<8x32xf32>
    %52 = arith.mulf %47, %51 : vector<8x32xf32>
    %53 = vector.shape_cast %52 : vector<8x32xf32> to vector<8x1x32xf32>
    %54 = vector.broadcast %53 : vector<8x1x32xf32> to vector<8x16x32xf32>
    %55 = arith.mulf %0, %54 : vector<8x16x32xf32>
    %cst_15 = arith.constant dense<0.000000e+00> : vector<8x16xf32>
    %56 = vector.multi_reduction <add>, %55, %cst_15 [2] : vector<8x16x32xf32> to vector<8x16xf32>
    %cst_16 = arith.constant dense<0xFF800000> : vector<8xf32>
    %57 = vector.multi_reduction <maximumf>, %56, %cst_16 [1] : vector<8x16xf32> to vector<8xf32>
    %58 = vector.shape_cast %57 : vector<8xf32> to vector<8x1xf32>
    %59 = vector.broadcast %58 : vector<8x1xf32> to vector<8x16xf32>
    %60 = arith.subf %56, %59 : vector<8x16xf32>
    %61 = math.exp %60 : vector<8x16xf32>
    %cst_17 = arith.constant dense<0.000000e+00> : vector<8xf32>
    %62 = vector.multi_reduction <add>, %61, %cst_17 [1] : vector<8x16xf32> to vector<8xf32>
    %63 = vector.shape_cast %62 : vector<8xf32> to vector<8x1xf32>
    %64 = tpu.reciprocal %63 {approx = true} : vector<8x1xf32> -> vector<8x1xf32>
    %65 = vector.broadcast %64 : vector<8x1xf32> to vector<8x16xf32>
    %66 = arith.mulf %61, %65 : vector<8x16xf32>
    %67 = vector.shape_cast %66 : vector<8x16xf32> to vector<8x16x1xf32>
    %68 = vector.broadcast %67 : vector<8x16x1xf32> to vector<8x16x32xf32>
    %69 = arith.mulf %68, %0 : vector<8x16x32xf32>
    %cst_18 = arith.constant dense<0.000000e+00> : vector<8x32xf32>
    %70 = vector.multi_reduction <add>, %69, %cst_18 [1] : vector<8x16x32xf32> to vector<8x32xf32>
    %71 = tpu.concatenate %70, %52 in 1 : vector<8x32xf32>, vector<8x32xf32> -> vector<8x64xf32>
    %cst_19 = arith.constant dense<0.000000e+00> : vector<8x128xf32>
    %72 = tpu.matmul %71, %1, %cst_19 {dimension_numbers = #tpu.dot_dimension_numbers<[1], [0], [0], [1], [0, 0, 1, 1], [], []>} : vector<8x64xf32>, vector<64x128xf32>, vector<8x128xf32> -> vector<8x128xf32>
    %73 = arith.addf %72, %4 : vector<8x128xf32>
    %74 = vector.extract_strided_slice %73 {offsets = [0, 0], sizes = [8, 32], strides = [1, 1]} : vector<8x128xf32> to vector<8x32xf32>
    %75 = arith.negf %74 : vector<8x32xf32>
    %76 = math.exp %75 : vector<8x32xf32>
    %cst_20 = arith.constant 1.000000e+00 : f32
    %77 = vector.broadcast %cst_20 : f32 to vector<8x32xf32>
    %78 = arith.addf %77, %76 : vector<8x32xf32>
    %79 = arith.divf %77, %78 : vector<8x32xf32>
    %80 = vector.extract_strided_slice %73 {offsets = [0, 32], sizes = [8, 32], strides = [1, 1]} : vector<8x128xf32> to vector<8x32xf32>
    %81 = arith.negf %80 : vector<8x32xf32>
    %82 = math.exp %81 : vector<8x32xf32>
    %cst_21 = arith.constant 1.000000e+00 : f32
    %83 = vector.broadcast %cst_21 : f32 to vector<8x32xf32>
    %84 = arith.addf %83, %82 : vector<8x32xf32>
    %85 = arith.divf %83, %84 : vector<8x32xf32>
    %86 = vector.extract_strided_slice %73 {offsets = [0, 64], sizes = [8, 32], strides = [1, 1]} : vector<8x128xf32> to vector<8x32xf32>
    %87 = math.tanh %86 : vector<8x32xf32>
    %88 = vector.extract_strided_slice %73 {offsets = [0, 96], sizes = [8, 32], strides = [1, 1]} : vector<8x128xf32> to vector<8x32xf32>
    %89 = arith.negf %88 : vector<8x32xf32>
    %90 = math.exp %89 : vector<8x32xf32>
    %cst_22 = arith.constant 1.000000e+00 : f32
    %91 = vector.broadcast %cst_22 : f32 to vector<8x32xf32>
    %92 = arith.addf %91, %90 : vector<8x32xf32>
    %93 = arith.divf %91, %92 : vector<8x32xf32>
    %94 = arith.mulf %85, %50 : vector<8x32xf32>
    %95 = arith.mulf %79, %87 : vector<8x32xf32>
    %96 = arith.addf %94, %95 : vector<8x32xf32>
    %97 = math.tanh %96 : vector<8x32xf32>
    %98 = arith.mulf %93, %97 : vector<8x32xf32>
    %99 = vector.shape_cast %98 : vector<8x32xf32> to vector<8x1x32xf32>
    %100 = vector.broadcast %99 : vector<8x1x32xf32> to vector<8x16x32xf32>
    %101 = arith.mulf %0, %100 : vector<8x16x32xf32>
    %cst_23 = arith.constant dense<0.000000e+00> : vector<8x16xf32>
    %102 = vector.multi_reduction <add>, %101, %cst_23 [2] : vector<8x16x32xf32> to vector<8x16xf32>
    %cst_24 = arith.constant dense<0xFF800000> : vector<8xf32>
    %103 = vector.multi_reduction <maximumf>, %102, %cst_24 [1] : vector<8x16xf32> to vector<8xf32>
    %104 = vector.shape_cast %103 : vector<8xf32> to vector<8x1xf32>
    %105 = vector.broadcast %104 : vector<8x1xf32> to vector<8x16xf32>
    %106 = arith.subf %102, %105 : vector<8x16xf32>
    %107 = math.exp %106 : vector<8x16xf32>
    %cst_25 = arith.constant dense<0.000000e+00> : vector<8xf32>
    %108 = vector.multi_reduction <add>, %107, %cst_25 [1] : vector<8x16xf32> to vector<8xf32>
    %109 = vector.shape_cast %108 : vector<8xf32> to vector<8x1xf32>
    %110 = tpu.reciprocal %109 {approx = true} : vector<8x1xf32> -> vector<8x1xf32>
    %111 = vector.broadcast %110 : vector<8x1xf32> to vector<8x16xf32>
    %112 = arith.mulf %107, %111 : vector<8x16xf32>
    %113 = vector.shape_cast %112 : vector<8x16xf32> to vector<8x16x1xf32>
    %114 = vector.broadcast %113 : vector<8x16x1xf32> to vector<8x16x32xf32>
    %115 = arith.mulf %114, %0 : vector<8x16x32xf32>
    %cst_26 = arith.constant dense<0.000000e+00> : vector<8x32xf32>
    %116 = vector.multi_reduction <add>, %115, %cst_26 [1] : vector<8x16x32xf32> to vector<8x32xf32>
    %117 = tpu.concatenate %116, %98 in 1 : vector<8x32xf32>, vector<8x32xf32> -> vector<8x64xf32>
    %cst_27 = arith.constant dense<0.000000e+00> : vector<8x128xf32>
    %118 = tpu.matmul %117, %1, %cst_27 {dimension_numbers = #tpu.dot_dimension_numbers<[1], [0], [0], [1], [0, 0, 1, 1], [], []>} : vector<8x64xf32>, vector<64x128xf32>, vector<8x128xf32> -> vector<8x128xf32>
    %119 = arith.addf %118, %4 : vector<8x128xf32>
    %120 = vector.extract_strided_slice %119 {offsets = [0, 0], sizes = [8, 32], strides = [1, 1]} : vector<8x128xf32> to vector<8x32xf32>
    %121 = arith.negf %120 : vector<8x32xf32>
    %122 = math.exp %121 : vector<8x32xf32>
    %cst_28 = arith.constant 1.000000e+00 : f32
    %123 = vector.broadcast %cst_28 : f32 to vector<8x32xf32>
    %124 = arith.addf %123, %122 : vector<8x32xf32>
    %125 = arith.divf %123, %124 : vector<8x32xf32>
    %126 = vector.extract_strided_slice %119 {offsets = [0, 32], sizes = [8, 32], strides = [1, 1]} : vector<8x128xf32> to vector<8x32xf32>
    %127 = arith.negf %126 : vector<8x32xf32>
    %128 = math.exp %127 : vector<8x32xf32>
    %cst_29 = arith.constant 1.000000e+00 : f32
    %129 = vector.broadcast %cst_29 : f32 to vector<8x32xf32>
    %130 = arith.addf %129, %128 : vector<8x32xf32>
    %131 = arith.divf %129, %130 : vector<8x32xf32>
    %132 = vector.extract_strided_slice %119 {offsets = [0, 64], sizes = [8, 32], strides = [1, 1]} : vector<8x128xf32> to vector<8x32xf32>
    %133 = math.tanh %132 : vector<8x32xf32>
    %134 = vector.extract_strided_slice %119 {offsets = [0, 96], sizes = [8, 32], strides = [1, 1]} : vector<8x128xf32> to vector<8x32xf32>
    %135 = arith.negf %134 : vector<8x32xf32>
    %136 = math.exp %135 : vector<8x32xf32>
    %cst_30 = arith.constant 1.000000e+00 : f32
    %137 = vector.broadcast %cst_30 : f32 to vector<8x32xf32>
    %138 = arith.addf %137, %136 : vector<8x32xf32>
    %139 = arith.divf %137, %138 : vector<8x32xf32>
    %140 = arith.mulf %131, %96 : vector<8x32xf32>
    %141 = arith.mulf %125, %133 : vector<8x32xf32>
    %142 = arith.addf %140, %141 : vector<8x32xf32>
    %143 = math.tanh %142 : vector<8x32xf32>
    %144 = arith.mulf %139, %143 : vector<8x32xf32>
    %145 = vector.shape_cast %144 : vector<8x32xf32> to vector<8x1x32xf32>
    %146 = vector.broadcast %145 : vector<8x1x32xf32> to vector<8x16x32xf32>
    %147 = arith.mulf %0, %146 : vector<8x16x32xf32>
    %cst_31 = arith.constant dense<0.000000e+00> : vector<8x16xf32>
    %148 = vector.multi_reduction <add>, %147, %cst_31 [2] : vector<8x16x32xf32> to vector<8x16xf32>
    %cst_32 = arith.constant dense<0xFF800000> : vector<8xf32>
    %149 = vector.multi_reduction <maximumf>, %148, %cst_32 [1] : vector<8x16xf32> to vector<8xf32>
    %150 = vector.shape_cast %149 : vector<8xf32> to vector<8x1xf32>
    %151 = vector.broadcast %150 : vector<8x1xf32> to vector<8x16xf32>
    %152 = arith.subf %148, %151 : vector<8x16xf32>
    %153 = math.exp %152 : vector<8x16xf32>
    %cst_33 = arith.constant dense<0.000000e+00> : vector<8xf32>
    %154 = vector.multi_reduction <add>, %153, %cst_33 [1] : vector<8x16xf32> to vector<8xf32>
    %155 = vector.shape_cast %154 : vector<8xf32> to vector<8x1xf32>
    %156 = tpu.reciprocal %155 {approx = true} : vector<8x1xf32> -> vector<8x1xf32>
    %157 = vector.broadcast %156 : vector<8x1xf32> to vector<8x16xf32>
    %158 = arith.mulf %153, %157 : vector<8x16xf32>
    %159 = vector.shape_cast %158 : vector<8x16xf32> to vector<8x16x1xf32>
    %160 = vector.broadcast %159 : vector<8x16x1xf32> to vector<8x16x32xf32>
    %161 = arith.mulf %160, %0 : vector<8x16x32xf32>
    %cst_34 = arith.constant dense<0.000000e+00> : vector<8x32xf32>
    %162 = vector.multi_reduction <add>, %161, %cst_34 [1] : vector<8x16x32xf32> to vector<8x32xf32>
    %163 = tpu.concatenate %24, %70, %116, %162 in 1 : vector<8x32xf32>, vector<8x32xf32>, vector<8x32xf32>, vector<8x32xf32> -> vector<8x128xf32>
    %c0_35 = arith.constant 0 : index
    %c0_36 = arith.constant 0 : index
    %164 = vector.load %arg4[%c0_35, %c0_36] : memref<128x32xf32, #tpu.memory_space<vmem>>, vector<128x32xf32>
    %cst_37 = arith.constant dense<0.000000e+00> : vector<8x32xf32>
    %165 = tpu.matmul %163, %164, %cst_37 {dimension_numbers = #tpu.dot_dimension_numbers<[1], [0], [0], [1], [0, 0, 1, 1], [], []>} : vector<8x128xf32>, vector<128x32xf32>, vector<8x32xf32> -> vector<8x32xf32>
    %c0_38 = arith.constant 0 : index
    %c0_39 = arith.constant 0 : index
    %166 = vector.load %arg5[%c0_38, %c0_39] : memref<1x32xf32, #tpu.memory_space<vmem>>, vector<1x32xf32>
    %167 = vector.broadcast %166 : vector<1x32xf32> to vector<8x32xf32>
    %168 = arith.addf %165, %167 : vector<8x32xf32>
    %cst_40 = arith.constant dense<0xFF800000> : vector<8xf32>
    %169 = vector.multi_reduction <maximumf>, %168, %cst_40 [1] : vector<8x32xf32> to vector<8xf32>
    %170 = vector.shape_cast %169 : vector<8xf32> to vector<8x1xf32>
    %171 = vector.broadcast %170 : vector<8x1xf32> to vector<8x32xf32>
    %172 = arith.subf %168, %171 : vector<8x32xf32>
    %173 = math.exp %172 : vector<8x32xf32>
    %cst_41 = arith.constant dense<0.000000e+00> : vector<8xf32>
    %174 = vector.multi_reduction <add>, %173, %cst_41 [1] : vector<8x32xf32> to vector<8xf32>
    %175 = vector.shape_cast %174 : vector<8xf32> to vector<8x1xf32>
    %176 = tpu.reciprocal %175 {approx = true} : vector<8x1xf32> -> vector<8x1xf32>
    %177 = vector.broadcast %176 : vector<8x1xf32> to vector<8x32xf32>
    %178 = arith.mulf %173, %177 : vector<8x32xf32>
    %c0_42 = arith.constant 0 : index
    %c0_43 = arith.constant 0 : index
    %179 = vector.load %arg6[%c0_42, %c0_43] : memref<8x32xf32, #tpu.memory_space<vmem>>, vector<8x32xf32>
    tpu.vector_store %arg6[%c0_42, %c0_43], %178 {strides = array<i32>} : memref<8x32xf32, #tpu.memory_space<vmem>>, vector<8x32xf32>,
    return
  }
  func.func @transform_0(%arg0: i32) -> (i32, i32, i32) {
    %c0_i32 = arith.constant 0 : i32
    %c0_i32_0 = arith.constant 0 : i32
    %c0_i32_1 = arith.constant 0 : i32
    return %arg0, %c0_i32, %c0_i32_0 : i32, i32, i32
  }
  func.func @transform_1(%arg0: i32) -> (i32, i32) {
    %c0_i32 = arith.constant 0 : i32
    %c0_i32_0 = arith.constant 0 : i32
    %c0_i32_1 = arith.constant 0 : i32
    return %c0_i32, %c0_i32_0 : i32, i32
  }
  func.func @transform_2(%arg0: i32) -> (i32, i32) {
    %c0_i32 = arith.constant 0 : i32
    %c0_i32_0 = arith.constant 0 : i32
    %c0_i32_1 = arith.constant 0 : i32
    return %c0_i32, %c0_i32_0 : i32, i32
  }
  func.func @transform_3(%arg0: i32) -> (i32, i32) {
    %c0_i32 = arith.constant 0 : i32
    %c0_i32_0 = arith.constant 0 : i32
    %c0_i32_1 = arith.constant 0 : i32
    return %c0_i32, %c0_i32_0 : i32, i32
  }
  func.func @transform_4(%arg0: i32) -> (i32, i32) {
    %c0_i32 = arith.constant 0 : i32
    %c0_i32_0 = arith.constant 0 : i32
    %c0_i32_1 = arith.constant 0 : i32
    return %c0_i32, %c0_i32_0 : i32, i32
  }
  func.func @transform_5(%arg0: i32) -> (i32, i32) {
    %c0_i32 = arith.constant 0 : i32
    %c0_i32_0 = arith.constant 0 : i32
    return %arg0, %c0_i32 : i32, i32
  }
}

</mosaic_0001>

<llo_original>
// kernel: tpu_custom_call.1
$region0: #{tpu_custom_call.1}
  #allocation0 [shape = 'u32[]', space=smem, size = 0x4, offset = 0x4, fixed_abs, tag = 'smem constant byte address 0x4 - core index']
  #allocation1 [shape = 'u32[144,128]{1,0:T(1,128)}', space=vmem, size = 0x12000, scoped, tag = 'internal scratch']
  %s0 = inlined_call_operand.hbm [shape: f32[16,16,32], index: 0, kind: input, shape index: {}]
  %s1 = inlined_call_operand.vmem [shape: f32[64,128], index: 1, kind: input, shape index: {}]
  %s2 = inlined_call_operand.vmem [shape: f32[1,128], index: 2, kind: input, shape index: {}]
  %s3 = inlined_call_operand.vmem [shape: f32[128,32], index: 3, kind: input, shape index: {}]
  %s4 = inlined_call_operand.vmem [shape: f32[1,32], index: 4, kind: input, shape index: {}]
  %s5 = inlined_call_operand.hbm [shape: f32[16,32], index: 5, kind: output, shape index: {}]
  %s6 = sld [smem:[#allocation0]]
  $region57: #{tpu_custom_call.1} parent=0
    _
  %s8 = ssub.s32 1, %s6
  %s9 = scalar_select 0, %s8, %s6
  $region1: #{tpu_custom_call.1} parent=0
    #allocation2 [shape = 'u8[131072]{0}', space=vmem, size = 0x20000, scoped, tag = 'input window, operand 0']
    #allocation3 [shape = 's32[2]{0}', space=sflag, size = 0x8, scoped, tag = 'scoped memory for tpu_custom_call.1']
    #allocation4 [shape = 's32[2]{0}', space=sflag, size = 0x8, scoped, tag = 'scoped memory for tpu_custom_call.1']
    #allocation5 [shape = 'u8[8192]{0}', space=vmem, size = 0x2000, scoped, tag = 'output window, operand 0']
    %10 = vsyncpa [#allocation3], 0
    %s11 = scalar_lea.sflag [#allocation3], 1
    %12 = vsyncpa %s11, 0
    %13 = vsyncpa [#allocation4], 0
    %s14 = scalar_lea.sflag [#allocation4], 1
    %15 = vsyncpa %s14, 0
    loop: start=0, step=1, limit=4
    $region2: #{tpu_custom_call.1} parent=1 // loop_pre_header
      _
    $region3: #{tpu_custom_call.1} parent=1 // loop_header
      %s17 = sphi 0, %s21
      %p18 = scmp.ge.s32.totalorder %s17, 4
      %s27 = sphi 0, %s29
      %s30 = sphi 0, %s27
      %s31 = sphi 0, %s30
      %s47 = sphi 0, %s31
      %s51 = sphi 0, %s51
      %s53 = sphi 0, %s51
      %s54 = sphi 0, %s53
      %s68 = sphi 0, %s54
      %s72 = sphi 0, %s72
      %s74 = sphi 0, %s72
      %s75 = sphi 0, %s74
      %s89 = sphi 0, %s75
      %s93 = sphi 0, %s93
      %s95 = sphi 0, %s93
      %s96 = sphi 0, %s95
      %s110 = sphi 0, %s96
      %s114 = sphi 0, %s114
      %s116 = sphi 0, %s114
      %s117 = sphi 0, %s116
      %s131 = sphi 0, %s117
      %s137 = sphi 0, %s139
      %s140 = sphi 0, %s137
      %s141 = sphi 0, %s140
      %s157 = sphi 0, %s141
    $region4: #{tpu_custom_call.1} parent=1 // loop_header_branch
      %20 = sbr.rel (%p18) target = $region8
    $region5: #{tpu_custom_call.1} parent=1 // loop_body
      %s22 = ssub.s32 %s17, 1
      %s23 = ssub.s32 %s17, 2
      %s24 = sadd.s32 %s17, 1
      %s25 = ssub.s32 %s17, %s24
      %p26 = scmp.eq.s32.totalorder %s25, 0
      %s28 = sadd.s32 %s27, 1
      %s29 = scalar_select %p26, %s27, %s28
      %p32 = pneg %p26
      %p33 = scmp.eq.s32.totalorder %s17, 1
      %p34 = por %p32, %p33
      %p35 = scmp.ne.s32.totalorder %s27, %s30
      %p36 = scmp.eq.s32.totalorder %s17, 0
      %p37 = por %p35, %p36
      %p38 = scmp.ne.s32.totalorder %s27, %s30
      %p39 = scmp.eq.s32.totalorder %s22, 1
      %p40 = por %p38, %p39
      %p41 = scmp.ne.s32.totalorder %s30, %s31
      %p42 = scmp.eq.s32.totalorder %s22, 0
      %p43 = por %p41, %p42
      %p44 = scmp.ne.s32.totalorder %s30, %s31
      %p45 = scmp.eq.s32.totalorder %s23, 1
      %p46 = por %p44, %p45
      %p48 = scmp.ne.s32.totalorder %s31, %s47
      %p49 = scmp.eq.s32.totalorder %s23, 0
      %p50 = por %p48, %p49
      %s52 = sadd.s32 %s51, 1
      %p55 = scmp.eq.s32.totalorder %s17, 1
      %p56 = scmp.ne.s32.totalorder %s51, %s53
      %p57 = scmp.eq.s32.totalorder %s17, 0
      %p58 = por %p56, %p57
      %p59 = scmp.ne.s32.totalorder %s51, %s53
      %p60 = scmp.eq.s32.totalorder %s22, 1
      %p61 = por %p59, %p60
      %p62 = scmp.ne.s32.totalorder %s53, %s54
      %p63 = scmp.eq.s32.totalorder %s22, 0
      %p64 = por %p62, %p63
      %p65 = scmp.ne.s32.totalorder %s53, %s54
      %p66 = scmp.eq.s32.totalorder %s23, 1
      %p67 = por %p65, %p66
      %p69 = scmp.ne.s32.totalorder %s54, %s68
      %p70 = scmp.eq.s32.totalorder %s23, 0
      %p71 = por %p69, %p70
      %s73 = sadd.s32 %s72, 1
      %p76 = scmp.eq.s32.totalorder %s17, 1
      %p77 = scmp.ne.s32.totalorder %s72, %s74
      %p78 = scmp.eq.s32.totalorder %s17, 0
      %p79 = por %p77, %p78
      %p80 = scmp.ne.s32.totalorder %s72, %s74
      %p81 = scmp.eq.s32.totalorder %s22, 1
      %p82 = por %p80, %p81
      %p83 = scmp.ne.s32.totalorder %s74, %s75
      %p84 = scmp.eq.s32.totalorder %s22, 0
      %p85 = por %p83, %p84
      %p86 = scmp.ne.s32.totalorder %s74, %s75
      %p87 = scmp.eq.s32.totalorder %s23, 1
      %p88 = por %p86, %p87
      %p90 = scmp.ne.s32.totalorder %s75, %s89
      %p91 = scmp.eq.s32.totalorder %s23, 0
      %p92 = por %p90, %p91
      %s94 = sadd.s32 %s93, 1
      %p97 = scmp.eq.s32.totalorder %s17, 1
      %p98 = scmp.ne.s32.totalorder %s93, %s95
      %p99 = scmp.eq.s32.totalorder %s17, 0
      %p100 = por %p98, %p99
      %p101 = scmp.ne.s32.totalorder %s93, %s95
      %p102 = scmp.eq.s32.totalorder %s22, 1
      %p103 = por %p101, %p102
      %p104 = scmp.ne.s32.totalorder %s95, %s96
      %p105 = scmp.eq.s32.totalorder %s22, 0
      %p106 = por %p104, %p105
      %p107 = scmp.ne.s32.totalorder %s95, %s96
      %p108 = scmp.eq.s32.totalorder %s23, 1
      %p109 = por %p107, %p108
      %p111 = scmp.ne.s32.totalorder %s96, %s110
      %p112 = scmp.eq.s32.totalorder %s23, 0
      %p113 = por %p111, %p112
      %s115 = sadd.s32 %s114, 1
      %p118 = scmp.eq.s32.totalorder %s17, 1
      %p119 = scmp.ne.s32.totalorder %s114, %s116
      %p120 = scmp.eq.s32.totalorder %s17, 0
      %p121 = por %p119, %p120
      %p122 = scmp.ne.s32.totalorder %s114, %s116
      %p123 = scmp.eq.s32.totalorder %s22, 1
      %p124 = por %p122, %p123
      %p125 = scmp.ne.s32.totalorder %s116, %s117
      %p126 = scmp.eq.s32.totalorder %s22, 0
      %p127 = por %p125, %p126
      %p128 = scmp.ne.s32.totalorder %s116, %s117
      %p129 = scmp.eq.s32.totalorder %s23, 1
      %p130 = por %p128, %p129
      %p132 = scmp.ne.s32.totalorder %s117, %s131
      %p133 = scmp.eq.s32.totalorder %s23, 0
      %p134 = por %p132, %p133
      %s135 = ssub.s32 %s17, %s24
      %p136 = scmp.eq.s32.totalorder %s135, 0
      %s138 = sadd.s32 %s137, 1
      %s139 = scalar_select %p136, %s137, %s138
      %p142 = pneg %p136
      %p143 = scmp.eq.s32.totalorder %s17, 1
      %p144 = por %p142, %p143
      %p145 = scmp.ne.s32.totalorder %s137, %s140
      %p146 = scmp.eq.s32.totalorder %s17, 0
      %p147 = por %p145, %p146
      %p148 = scmp.ne.s32.totalorder %s137, %s140
      %p149 = scmp.eq.s32.totalorder %s22, 1
      %p150 = por %p148, %p149
      %p151 = scmp.ne.s32.totalorder %s140, %s141
      %p152 = scmp.eq.s32.totalorder %s22, 0
      %p153 = por %p151, %p152
      %p154 = scmp.ne.s32.totalorder %s140, %s141
      %p155 = scmp.eq.s32.totalorder %s23, 1
      %p156 = por %p154, %p155
      %p158 = scmp.ne.s32.totalorder %s141, %s157
      %p159 = scmp.eq.s32.totalorder %s23, 0
      %p160 = por %p158, %p159
      %p161 = scmp.le.s32.totalorder 1, %s17
      %p162 = scmp.lt.s32.totalorder %s17, 3
      %p163 = pnand %p161, %p162
      %p164 = pneg %p163
      // Predicated region
      $region9: #{tpu_custom_call.1} parent=5 // pred_check
        _
      $region10: #{tpu_custom_call.1} parent=5 // pred_check_branch
        %166 = sbr.rel (%p163) target = $region12
      $region11: #{tpu_custom_call.1} parent=5 // pred_region
        %s167 = ssub.s32 %s17, 1
        // Predicated region
        $region13: #{tpu_custom_call.1} parent=11 // pred_check
          %p168 = pneg %p64
        $region14: #{tpu_custom_call.1} parent=11 // pred_check_branch
          %170 = sbr.rel (%p168) target = $region16
        $region15: #{tpu_custom_call.1} parent=11 // pred_region
          _
        $region16: #{tpu_custom_call.1} parent=11 // pred_fallthru
          _
        // Predicated region
        $region17: #{tpu_custom_call.1} parent=11 // pred_check
          %p171 = pneg %p85
        $region18: #{tpu_custom_call.1} parent=11 // pred_check_branch
          %173 = sbr.rel (%p171) target = $region20
        $region19: #{tpu_custom_call.1} parent=11 // pred_region
          _
        $region20: #{tpu_custom_call.1} parent=11 // pred_fallthru
          _
        // Predicated region
        $region21: #{tpu_custom_call.1} parent=11 // pred_check
          %p174 = pneg %p106
        $region22: #{tpu_custom_call.1} parent=11 // pred_check_branch
          %176 = sbr.rel (%p174) target = $region24
        $region23: #{tpu_custom_call.1} parent=11 // pred_region
          _
        $region24: #{tpu_custom_call.1} parent=11 // pred_fallthru
          _
        // Predicated region
        $region25: #{tpu_custom_call.1} parent=11 // pred_check
          %p177 = pneg %p127
        $region26: #{tpu_custom_call.1} parent=11 // pred_check_branch
          %179 = sbr.rel (%p177) target = $region28
        $region27: #{tpu_custom_call.1} parent=11 // pred_region
          _
        $region28: #{tpu_custom_call.1} parent=11 // pred_fallthru
          _
      $region12: #{tpu_custom_call.1} parent=5 // pred_fallthru
        _
      %p180 = scmp.lt.s32.totalorder %s17, 2
      // Predicated region
      $region29: #{tpu_custom_call.1} parent=5 // pred_check
        %p181 = pneg %p180
      $region30: #{tpu_custom_call.1} parent=5 // pred_check_branch
        %183 = sbr.rel (%p181) target = $region32
      $region31: #{tpu_custom_call.1} parent=5 // pred_region
        // Predicated region
        $region33: #{tpu_custom_call.1} parent=31 // pred_check
          %p184 = pneg %p37
        $region34: #{tpu_custom_call.1} parent=31 // pred_check_branch
          %186 = sbr.rel (%p184) target = $region36
        $region35: #{tpu_custom_call.1} parent=31 // pred_region
          %s187 = sand.u32 %s27, 1
          %s188 = scalar_lea.sflag [#allocation3], %s187
          %s189 = sand.u32 %s27, 1
          %s190 = smul.addr %s189, 128
          %s191 = scalar_lea.vmem [#allocation2], %s190
          %s192 = smul.u32 8, %s17
          %s194 = ssub.s32 2048, 2048
          %195 = vsyncadd %s188, %s194
          %s196 = smul.addr %s192, 2
          %s197 = smul.addr %s196, 128
          %s198 = scalar_lea.hbm %s0, %s197
          %s199 = sshll.u32 %s191, 4
          %s200 = int_to_ptr.vmem [resolvable:$true] %s199
          %205 = dma.hbm_to_vmem [thread:$0]  %s198, 2048, %s200, %s188, 128, 128, 8
        $region36: #{tpu_custom_call.1} parent=31 // pred_fallthru
          _
      $region32: #{tpu_custom_call.1} parent=5 // pred_fallthru
        _
      %p206 = scmp.le.s32.totalorder 1, %s17
      %p207 = scmp.lt.s32.totalorder %s17, 3
      %p208 = pnand %p206, %p207
      %p209 = pneg %p208
      // Predicated region
      $region37: #{tpu_custom_call.1} parent=5 // pred_check
        _
      $region38: #{tpu_custom_call.1} parent=5 // pred_check_branch
        %211 = sbr.rel (%p208) target = $region40
      $region39: #{tpu_custom_call.1} parent=5 // pred_region
        %s212 = ssub.s32 %s17, 1
        %s213 = sand.u32 %s30, 1
        %s214 = scalar_lea.sflag [#allocation3], %s213
        %s215 = sand.u32 %s30, 1
        %s216 = smul.addr %s215, 128
        %s217 = scalar_lea.vmem [#allocation2], %s216
        // Predicated region
        $region41: #{tpu_custom_call.1} parent=39 // pred_check
          %p218 = pneg %p43
        $region42: #{tpu_custom_call.1} parent=39 // pred_check_branch
          %220 = sbr.rel (%p218) target = $region44
        $region43: #{tpu_custom_call.1} parent=39 // pred_region
          %221 = dma.done %s214, 2048
        $region44: #{tpu_custom_call.1} parent=39 // pred_fallthru
          _
        %s222 = sand.u32 %s30, 1
        %s223 = scalar_lea.sflag [#allocation3], %s222
        %s224 = sand.u32 %s30, 1
        %s225 = smul.addr %s224, 128
        %s226 = scalar_lea.vmem [#allocation2], %s225
        %p227 = pneg %p43
        %p228 = pneg %p40
        %p229 = pneg %p64
        %p230 = pneg %p61
        %p231 = pneg %p85
        %p232 = pneg %p82
        %p233 = pneg %p106
        %p234 = pneg %p103
        %p235 = pneg %p127
        %p236 = pneg %p124
        %p237 = pneg %p153
        %p238 = pneg %p150
        %s239 = sand.u32 %s140, 1
        %s240 = scalar_lea.sflag [#allocation4], %s239
        %s241 = sand.u32 %s140, 1
        %s242 = smul.addr %s241, 8
        %s243 = scalar_lea.vmem [#allocation5], %s242
        %s244 = smul.u32 8, %s22
        %v245 = vld [vmem:[%s217] sm:$0xff]
        %v246 = vld [vmem:[%s217 + $0x8] sm:$0xff]
        %v247 = vld [vmem:[%s217 + $0x10] sm:$0xff]
        %v248 = vld [vmem:[%s217 + $0x18] sm:$0xff]
        %v249 = vld [vmem:[%s217 + $0x20] sm:$0xff]
        %v250 = vld [vmem:[%s217 + $0x28] sm:$0xff]
        %v251 = vld [vmem:[%s217 + $0x30] sm:$0xff]
        %v252 = vld [vmem:[%s217 + $0x38] sm:$0xff]
        %v253 = vld [vmem:[%s217 + $0x40] sm:$0xff]
        %v254 = vld [vmem:[%s217 + $0x48] sm:$0xff]
        %v255 = vld [vmem:[%s217 + $0x50] sm:$0xff]
        %v256 = vld [vmem:[%s217 + $0x58] sm:$0xff]
        %v257 = vld [vmem:[%s217 + $0x60] sm:$0xff]
        %v258 = vld [vmem:[%s217 + $0x68] sm:$0xff]
        %v259 = vld [vmem:[%s217 + $0x70] sm:$0xff]
        %v260 = vld [vmem:[%s217 + $0x78] sm:$0xff]
        %v261 = vld [vmem:[%s1] sm:$0xff]
        %v262 = vld [vmem:[%s1 + $0x8] sm:$0xff]
        %v263 = vld [vmem:[%s1 + $0x10] sm:$0xff]
        %v264 = vld [vmem:[%s1 + $0x18] sm:$0xff]
        %v265 = vld [vmem:[%s1 + $0x20] sm:$0xff]
        %v266 = vld [vmem:[%s1 + $0x28] sm:$0xff]
        %v267 = vld [vmem:[%s1 + $0x30] sm:$0xff]
        %v268 = vld [vmem:[%s1 + $0x38] sm:$0xff]
        %v269 = vld [vmem:[%s2] sm:$0x1]
        %v271 = vlaneseq
        %v272 = vshrl.u32 %v271, 7
        %v273 = vsub.s32 0, %v272
        %v274 = vrot.slane %v269, %v273
        %v276 = vmul.f32 %v245, 0.0
        %v277 = vmul.f32 %v246, 0.0
        %v278 = vmul.f32 %v247, 0.0
        %v279 = vmul.f32 %v248, 0.0
        %v280 = vmul.f32 %v249, 0.0
        %v281 = vmul.f32 %v250, 0.0
        %v282 = vmul.f32 %v251, 0.0
        %v283 = vmul.f32 %v252, 0.0
        %v284 = vmul.f32 %v253, 0.0
        %v285 = vmul.f32 %v254, 0.0
        %v286 = vmul.f32 %v255, 0.0
        %v287 = vmul.f32 %v256, 0.0
        %v288 = vmul.f32 %v257, 0.0
        %v289 = vmul.f32 %v258, 0.0
        %v290 = vmul.f32 %v259, 0.0
        %v291 = vmul.f32 %v260, 0.0
        %vm292 = vcmask 261120
        %v293 = vsel %vm292, %v276, 0.0
        %294 = vadd.xlane.f32.xlu0 %v293
        %v295 = vpop.xlane.xlu0 %294
        %v296 = vsel %vm292, %v277, 0.0
        %297 = vadd.xlane.f32.xlu0 %v296
        %v298 = vpop.xlane.xlu0 %297
        %v299 = vsel %vm292, %v278, 0.0
        %300 = vadd.xlane.f32.xlu0 %v299
        %v301 = vpop.xlane.xlu0 %300
        %v302 = vsel %vm292, %v279, 0.0
        %303 = vadd.xlane.f32.xlu0 %v302
        %v304 = vpop.xlane.xlu0 %303
        %v305 = vsel %vm292, %v280, 0.0
        %306 = vadd.xlane.f32.xlu0 %v305
        %v307 = vpop.xlane.xlu0 %306
        %v308 = vsel %vm292, %v281, 0.0
        %309 = vadd.xlane.f32.xlu0 %v308
        %v310 = vpop.xlane.xlu0 %309
        %v311 = vsel %vm292, %v282, 0.0
        %312 = vadd.xlane.f32.xlu0 %v311
        %v313 = vpop.xlane.xlu0 %312
        %v314 = vsel %vm292, %v283, 0.0
        %315 = vadd.xlane.f32.xlu0 %v314
        %v316 = vpop.xlane.xlu0 %315
        %v317 = vsel %vm292, %v284, 0.0
        %318 = vadd.xlane.f32.xlu0 %v317
        %v319 = vpop.xlane.xlu0 %318
        %v320 = vsel %vm292, %v285, 0.0
        %321 = vadd.xlane.f32.xlu0 %v320
        %v322 = vpop.xlane.xlu0 %321
        %v323 = vsel %vm292, %v286, 0.0
        %324 = vadd.xlane.f32.xlu0 %v323
        %v325 = vpop.xlane.xlu0 %324
        %v326 = vsel %vm292, %v287, 0.0
        %327 = vadd.xlane.f32.xlu0 %v326
        %v328 = vpop.xlane.xlu0 %327
        %v329 = vsel %vm292, %v288, 0.0
        %330 = vadd.xlane.f32.xlu0 %v329
        %v331 = vpop.xlane.xlu0 %330
        %v332 = vsel %vm292, %v289, 0.0
        %333 = vadd.xlane.f32.xlu0 %v332
        %v334 = vpop.xlane.xlu0 %333
        %v335 = vsel %vm292, %v290, 0.0
        %336 = vadd.xlane.f32.xlu0 %v335
        %v337 = vpop.xlane.xlu0 %336
        %v338 = vsel %vm292, %v291, 0.0
        %339 = vadd.xlane.f32.xlu0 %v338
        %v340 = vpop.xlane.xlu0 %339
        %v357 = vlaneseq
        %v358 = vand.u32 %v357, 127
        %v359 = vlaneseq
        %v360 = vshrl.u32 %v359, 7
        %v361 = vsub.s32 %v358, %v360
        %v362 = vrot.slane %v295, %v361
        %v363 = vadd.s32 %v358, 4294967288
        %v364 = vlaneseq
        %v365 = vshrl.u32 %v364, 7
        %v366 = vsub.s32 %v363, %v365
        %v367 = vrot.slane %v298, %v366
        %vm368 = vcmask 130112
        %v369 = vsel %vm368, %v367, %v362
        %v370 = vlaneseq
        %v371 = vshrl.u32 %v370, 7
        %v372 = vsub.s32 %v358, %v371
        %v373 = vrot.slane %v301, %v372
        %v374 = vlaneseq
        %v375 = vshrl.u32 %v374, 7
        %v376 = vsub.s32 %v363, %v375
        %v377 = vrot.slane %v304, %v376
        %v378 = vsel %vm368, %v377, %v373
        %v379 = vlaneseq
        %v380 = vshrl.u32 %v379, 7
        %v381 = vsub.s32 %v358, %v380
        %v382 = vrot.slane %v307, %v381
        %v383 = vlaneseq
        %v384 = vshrl.u32 %v383, 7
        %v385 = vsub.s32 %v363, %v384
        %v386 = vrot.slane %v310, %v385
        %v387 = vsel %vm368, %v386, %v382
        %v388 = vlaneseq
        %v389 = vshrl.u32 %v388, 7
        %v390 = vsub.s32 %v358, %v389
        %v391 = vrot.slane %v313, %v390
        %v392 = vlaneseq
        %v393 = vshrl.u32 %v392, 7
        %v394 = vsub.s32 %v363, %v393
        %v395 = vrot.slane %v316, %v394
        %v396 = vsel %vm368, %v395, %v391
        %v397 = vlaneseq
        %v398 = vshrl.u32 %v397, 7
        %v399 = vsub.s32 %v358, %v398
        %v400 = vrot.slane %v319, %v399
        %v401 = vlaneseq
        %v402 = vshrl.u32 %v401, 7
        %v403 = vsub.s32 %v363, %v402
        %v404 = vrot.slane %v322, %v403
        %v405 = vsel %vm368, %v404, %v400
        %v406 = vlaneseq
        %v407 = vshrl.u32 %v406, 7
        %v408 = vsub.s32 %v358, %v407
        %v409 = vrot.slane %v325, %v408
        %v410 = vlaneseq
        %v411 = vshrl.u32 %v410, 7
        %v412 = vsub.s32 %v363, %v411
        %v413 = vrot.slane %v328, %v412
        %v414 = vsel %vm368, %v413, %v409
        %v415 = vlaneseq
        %v416 = vshrl.u32 %v415, 7
        %v417 = vsub.s32 %v358, %v416
        %v418 = vrot.slane %v331, %v417
        %v419 = vlaneseq
        %v420 = vshrl.u32 %v419, 7
        %v421 = vsub.s32 %v363, %v420
        %v422 = vrot.slane %v334, %v421
        %v423 = vsel %vm368, %v422, %v418
        %v424 = vlaneseq
        %v425 = vshrl.u32 %v424, 7
        %v426 = vsub.s32 %v358, %v425
        %v427 = vrot.slane %v337, %v426
        %v428 = vlaneseq
        %v429 = vshrl.u32 %v428, 7
        %v430 = vsub.s32 %v363, %v429
        %v431 = vrot.slane %v340, %v430
        %v432 = vsel %vm368, %v431, %v427
        %vm433 = vcmask 1041409
        %v434 = vsel %vm433, %v378, %v369
        %vm435 = vcmask 1042434
        %v436 = vsel %vm435, %v387, %v434
        %vm437 = vcmask 1043459
        %v438 = vsel %vm437, %v396, %v436
        %vm439 = vcmask 1044484
        %v440 = vsel %vm439, %v405, %v438
        %vm441 = vcmask 1045509
        %v442 = vsel %vm441, %v414, %v440
        %vm443 = vcmask 1046534
        %v444 = vsel %vm443, %v423, %v442
        %vm445 = vcmask 1047559
        %v446 = vsel %vm445, %v432, %v444
        %vm448 = vcmask 130048
        %v449 = vsel %vm448, %v446, -inf
        %450 = vmax.xlane.f32.xlu0 %v449
        %v451 = vpop.xlane.xlu0 %450
        %v453 = vlaneseq
        %v454 = vshrl.u32 %v453, 7
        %v455 = vsub.s32 0, %v454
        %v456 = vrot.slane %v451, %v455
        %v457 = vlaneseq
        %v458 = vshrl.u32 %v457, 7
        %v459 = vsub.s32 1, %v458
        %v460 = vrot.slane %v451, %v459
        %v461 = vlaneseq
        %v462 = vshrl.u32 %v461, 7
        %v463 = vsub.s32 2, %v462
        %v464 = vrot.slane %v451, %v463
        %v465 = vlaneseq
        %v466 = vshrl.u32 %v465, 7
        %v467 = vsub.s32 3, %v466
        %v468 = vrot.slane %v451, %v467
        %v469 = vlaneseq
        %v470 = vshrl.u32 %v469, 7
        %v471 = vsub.s32 4, %v470
        %v472 = vrot.slane %v451, %v471
        %v473 = vlaneseq
        %v474 = vshrl.u32 %v473, 7
        %v475 = vsub.s32 5, %v474
        %v476 = vrot.slane %v451, %v475
        %v477 = vlaneseq
        %v478 = vshrl.u32 %v477, 7
        %v479 = vsub.s32 6, %v478
        %v480 = vrot.slane %v451, %v479
        %v481 = vlaneseq
        %v482 = vshrl.u32 %v481, 7
        %v483 = vsub.s32 7, %v482
        %v484 = vrot.slane %v451, %v483
        %v493 = vsub.f32 %v295, %v456
        %v494 = vsub.f32 %v298, %v456
        %v495 = vsub.f32 %v301, %v460
        %v496 = vsub.f32 %v304, %v460
        %v497 = vsub.f32 %v307, %v464
        %v498 = vsub.f32 %v310, %v464
        %v499 = vsub.f32 %v313, %v468
        %v500 = vsub.f32 %v316, %v468
        %v501 = vsub.f32 %v319, %v472
        %v502 = vsub.f32 %v322, %v472
        %v503 = vsub.f32 %v325, %v476
        %v504 = vsub.f32 %v328, %v476
        %v505 = vsub.f32 %v331, %v480
        %v506 = vsub.f32 %v334, %v480
        %v507 = vsub.f32 %v337, %v484
        %v508 = vsub.f32 %v340, %v484
        %v509 = vmul.f32 %v493, 1.442695
        %v510 = vpow.pop %v509
        %v511 = vmul.f32 %v494, 1.442695
        %v512 = vpow.pop %v511
        %v513 = vmul.f32 %v495, 1.442695
        %v514 = vpow.pop %v513
        %v515 = vmul.f32 %v496, 1.442695
        %v516 = vpow.pop %v515
        %v517 = vmul.f32 %v497, 1.442695
        %v518 = vpow.pop %v517
        %v519 = vmul.f32 %v498, 1.442695
        %v520 = vpow.pop %v519
        %v521 = vmul.f32 %v499, 1.442695
        %v522 = vpow.pop %v521
        %v523 = vmul.f32 %v500, 1.442695
        %v524 = vpow.pop %v523
        %v525 = vmul.f32 %v501, 1.442695
        %v526 = vpow.pop %v525
        %v527 = vmul.f32 %v502, 1.442695
        %v528 = vpow.pop %v527
        %v529 = vmul.f32 %v503, 1.442695
        %v530 = vpow.pop %v529
        %v531 = vmul.f32 %v504, 1.442695
        %v532 = vpow.pop %v531
        %v533 = vmul.f32 %v505, 1.442695
        %v534 = vpow.pop %v533
        %v535 = vmul.f32 %v506, 1.442695
        %v536 = vpow.pop %v535
        %v537 = vmul.f32 %v507, 1.442695
        %v538 = vpow.pop %v537
        %v539 = vmul.f32 %v508, 1.442695
        %v540 = vpow.pop %v539
        %557 = vset.pattern.permute.xlu0 0
        %558 = vperm.xlu0 %557, %v510
        %v559 = vpop.permute.xlu0 %558
        %560 = vset.pattern.permute.xlu0 0
        %561 = vperm.xlu0 %560, %v512
        %v562 = vpop.permute.xlu0 %561
        %563 = vset.pattern.permute.xlu0 0
        %564 = vperm.xlu0 %563, %v514
        %v565 = vpop.permute.xlu0 %564
        %566 = vset.pattern.permute.xlu0 0
        %567 = vperm.xlu0 %566, %v516
        %v568 = vpop.permute.xlu0 %567
        %569 = vset.pattern.permute.xlu0 0
        %570 = vperm.xlu0 %569, %v518
        %v571 = vpop.permute.xlu0 %570
        %572 = vset.pattern.permute.xlu0 0
        %573 = vperm.xlu0 %572, %v520
        %v574 = vpop.permute.xlu0 %573
        %575 = vset.pattern.permute.xlu0 0
        %576 = vperm.xlu0 %575, %v522
        %v577 = vpop.permute.xlu0 %576
        %578 = vset.pattern.permute.xlu0 0
        %579 = vperm.xlu0 %578, %v524
        %v580 = vpop.permute.xlu0 %579
        %581 = vset.pattern.permute.xlu0 0
        %582 = vperm.xlu0 %581, %v526
        %v583 = vpop.permute.xlu0 %582
        %584 = vset.pattern.permute.xlu0 0
        %585 = vperm.xlu0 %584, %v528
        %v586 = vpop.permute.xlu0 %585
        %587 = vset.pattern.permute.xlu0 0
        %588 = vperm.xlu0 %587, %v530
        %v589 = vpop.permute.xlu0 %588
        %590 = vset.pattern.permute.xlu0 0
        %591 = vperm.xlu0 %590, %v532
        %v592 = vpop.permute.xlu0 %591
        %593 = vset.pattern.permute.xlu0 0
        %594 = vperm.xlu0 %593, %v534
        %v595 = vpop.permute.xlu0 %594
        %596 = vset.pattern.permute.xlu0 0
        %597 = vperm.xlu0 %596, %v536
        %v598 = vpop.permute.xlu0 %597
        %599 = vset.pattern.permute.xlu0 0
        %600 = vperm.xlu0 %599, %v538
        %v601 = vpop.permute.xlu0 %600
        %602 = vset.pattern.permute.xlu0 0
        %603 = vperm.xlu0 %602, %v540
        %v604 = vpop.permute.xlu0 %603
        %v605 = vlaneseq
        %v606 = vshrl.u32 %v605, 7
        %v607 = vsub.s32 %v358, %v606
        %v608 = vrot.slane %v559, %v607
        %v609 = vlaneseq
        %v610 = vshrl.u32 %v609, 7
        %v611 = vsub.s32 %v363, %v610
        %v612 = vrot.slane %v562, %v611
        %v613 = vsel %vm368, %v612, %v608
        %v614 = vlaneseq
        %v615 = vshrl.u32 %v614, 7
        %v616 = vsub.s32 %v358, %v615
        %v617 = vrot.slane %v565, %v616
        %v618 = vlaneseq
        %v619 = vshrl.u32 %v618, 7
        %v620 = vsub.s32 %v363, %v619
        %v621 = vrot.slane %v568, %v620
        %v622 = vsel %vm368, %v621, %v617
        %v623 = vlaneseq
        %v624 = vshrl.u32 %v623, 7
        %v625 = vsub.s32 %v358, %v624
        %v626 = vrot.slane %v571, %v625
        %v627 = vlaneseq
        %v628 = vshrl.u32 %v627, 7
        %v629 = vsub.s32 %v363, %v628
        %v630 = vrot.slane %v574, %v629
        %v631 = vsel %vm368, %v630, %v626
        %v632 = vlaneseq
        %v633 = vshrl.u32 %v632, 7
        %v634 = vsub.s32 %v358, %v633
        %v635 = vrot.slane %v577, %v634
        %v636 = vlaneseq
        %v637 = vshrl.u32 %v636, 7
        %v638 = vsub.s32 %v363, %v637
        %v639 = vrot.slane %v580, %v638
        %v640 = vsel %vm368, %v639, %v635
        %v641 = vlaneseq
        %v642 = vshrl.u32 %v641, 7
        %v643 = vsub.s32 %v358, %v642
        %v644 = vrot.slane %v583, %v643
        %v645 = vlaneseq
        %v646 = vshrl.u32 %v645, 7
        %v647 = vsub.s32 %v363, %v646
        %v648 = vrot.slane %v586, %v647
        %v649 = vsel %vm368, %v648, %v644
        %v650 = vlaneseq
        %v651 = vshrl.u32 %v650, 7
        %v652 = vsub.s32 %v358, %v651
        %v653 = vrot.slane %v589, %v652
        %v654 = vlaneseq
        %v655 = vshrl.u32 %v654, 7
        %v656 = vsub.s32 %v363, %v655
        %v657 = vrot.slane %v592, %v656
        %v658 = vsel %vm368, %v657, %v653
        %v659 = vlaneseq
        %v660 = vshrl.u32 %v659, 7
        %v661 = vsub.s32 %v358, %v660
        %v662 = vrot.slane %v595, %v661
        %v663 = vlaneseq
        %v664 = vshrl.u32 %v663, 7
        %v665 = vsub.s32 %v363, %v664
        %v666 = vrot.slane %v598, %v665
        %v667 = vsel %vm368, %v666, %v662
        %v668 = vlaneseq
        %v669 = vshrl.u32 %v668, 7
        %v670 = vsub.s32 %v358, %v669
        %v671 = vrot.slane %v601, %v670
        %v672 = vlaneseq
        %v673 = vshrl.u32 %v672, 7
        %v674 = vsub.s32 %v363, %v673
        %v675 = vrot.slane %v604, %v674
        %v676 = vsel %vm368, %v675, %v671
        %v677 = vsel %vm433, %v622, %v613
        %v678 = vsel %vm435, %v631, %v677
        %v679 = vsel %vm437, %v640, %v678
        %v680 = vsel %vm439, %v649, %v679
        %v681 = vsel %vm441, %v658, %v680
        %v682 = vsel %vm443, %v667, %v681
        %v683 = vsel %vm445, %v676, %v682
        %v685 = vsel %vm448, %v683, 0.0
        %686 = vadd.xlane.f32.xlu0 %v685
        %v687 = vpop.xlane.xlu0 %686
        %v688 = vrcp.pop %v687
        %v690 = vlaneseq
        %v691 = vshrl.u32 %v690, 7
        %v692 = vsub.s32 0, %v691
        %v693 = vrot.slane %v688, %v692
        %v694 = vlaneseq
        %v695 = vshrl.u32 %v694, 7
        %v696 = vsub.s32 1, %v695
        %v697 = vrot.slane %v688, %v696
        %v698 = vlaneseq
        %v699 = vshrl.u32 %v698, 7
        %v700 = vsub.s32 2, %v699
        %v701 = vrot.slane %v688, %v700
        %v702 = vlaneseq
        %v703 = vshrl.u32 %v702, 7
        %v704 = vsub.s32 3, %v703
        %v705 = vrot.slane %v688, %v704
        %v706 = vlaneseq
        %v707 = vshrl.u32 %v706, 7
        %v708 = vsub.s32 4, %v707
        %v709 = vrot.slane %v688, %v708
        %v710 = vlaneseq
        %v711 = vshrl.u32 %v710, 7
        %v712 = vsub.s32 5, %v711
        %v713 = vrot.slane %v688, %v712
        %v714 = vlaneseq
        %v715 = vshrl.u32 %v714, 7
        %v716 = vsub.s32 6, %v715
        %v717 = vrot.slane %v688, %v716
        %v718 = vlaneseq
        %v719 = vshrl.u32 %v718, 7
        %v720 = vsub.s32 7, %v719
        %v721 = vrot.slane %v688, %v720
        %v730 = vmul.f32 %v510, %v693
        %v731 = vmul.f32 %v512, %v693
        %v732 = vmul.f32 %v514, %v697
        %v733 = vmul.f32 %v516, %v697
        %v734 = vmul.f32 %v518, %v701
        %v735 = vmul.f32 %v520, %v701
        %v736 = vmul.f32 %v522, %v705
        %v737 = vmul.f32 %v524, %v705
        %v738 = vmul.f32 %v526, %v709
        %v739 = vmul.f32 %v528, %v709
        %v740 = vmul.f32 %v530, %v713
        %v741 = vmul.f32 %v532, %v713
        %v742 = vmul.f32 %v534, %v717
        %v743 = vmul.f32 %v536, %v717
        %v744 = vmul.f32 %v538, %v721
        %v745 = vmul.f32 %v540, %v721
        %747 = vset.pattern.permute.xlu0 0
        %748 = vperm.xlu0 %747, %v730
        %v749 = vpop.permute.xlu0 %748
        %752 = vset.pattern.permute.xlu0 0
        %753 = vperm.xlu0 %752, %v731
        %v754 = vpop.permute.xlu0 %753
        %757 = vset.pattern.permute.xlu0 0
        %758 = vperm.xlu0 %757, %v732
        %v759 = vpop.permute.xlu0 %758
        %762 = vset.pattern.permute.xlu0 0
        %763 = vperm.xlu0 %762, %v733
        %v764 = vpop.permute.xlu0 %763
        %767 = vset.pattern.permute.xlu0 0
        %768 = vperm.xlu0 %767, %v734
        %v769 = vpop.permute.xlu0 %768
        %772 = vset.pattern.permute.xlu0 0
        %773 = vperm.xlu0 %772, %v735
        %v774 = vpop.permute.xlu0 %773
        %777 = vset.pattern.permute.xlu0 0
        %778 = vperm.xlu0 %777, %v736
        %v779 = vpop.permute.xlu0 %778
        %782 = vset.pattern.permute.xlu0 0
        %783 = vperm.xlu0 %782, %v737
        %v784 = vpop.permute.xlu0 %783
        %787 = vset.pattern.permute.xlu0 0
        %788 = vperm.xlu0 %787, %v738
        %v789 = vpop.permute.xlu0 %788
        %792 = vset.pattern.permute.xlu0 0
        %793 = vperm.xlu0 %792, %v739
        %v794 = vpop.permute.xlu0 %793
        %797 = vset.pattern.permute.xlu0 0
        %798 = vperm.xlu0 %797, %v740
        %v799 = vpop.permute.xlu0 %798
        %802 = vset.pattern.permute.xlu0 0
        %803 = vperm.xlu0 %802, %v741
        %v804 = vpop.permute.xlu0 %803
        %807 = vset.pattern.permute.xlu0 0
        %808 = vperm.xlu0 %807, %v742
        %v809 = vpop.permute.xlu0 %808
        %812 = vset.pattern.permute.xlu0 0
        %813 = vperm.xlu0 %812, %v743
        %v814 = vpop.permute.xlu0 %813
        %817 = vset.pattern.permute.xlu0 0
        %818 = vperm.xlu0 %817, %v744
        %v819 = vpop.permute.xlu0 %818
        %822 = vset.pattern.permute.xlu0 0
        %823 = vperm.xlu0 %822, %v745
        %v824 = vpop.permute.xlu0 %823
        %v826 = vmul.f32 %v749, %v245
        %v827 = vmul.f32 %v754, %v246
        %v828 = vmul.f32 %v759, %v247
        %v829 = vmul.f32 %v764, %v248
        %v830 = vmul.f32 %v769, %v249
        %v831 = vmul.f32 %v774, %v250
        %v832 = vmul.f32 %v779, %v251
        %v833 = vmul.f32 %v784, %v252
        %v834 = vmul.f32 %v789, %v253
        %v835 = vmul.f32 %v794, %v254
        %v836 = vmul.f32 %v799, %v255
        %v837 = vmul.f32 %v804, %v256
        %v838 = vmul.f32 %v809, %v257
        %v839 = vmul.f32 %v814, %v258
        %v840 = vmul.f32 %v819, %v259
        %v841 = vmul.f32 %v824, %v260
        %v842 = vsel %vm292, %v826, 0.0
        %v843 = vsel %vm292, %v827, 0.0
        %v844 = vadd.f32 %v842, %v843
        %v845 = vrot.slane %v844, 4
        %v846 = vadd.f32 %v844, %v845
        %v847 = vrot.slane %v846, 2
        %v848 = vadd.f32 %v846, %v847
        %v849 = vrot.slane %v848, 1
        %v850 = vadd.f32 %v848, %v849
        %v851 = vsel %vm292, %v828, 0.0
        %v852 = vsel %vm292, %v829, 0.0
        %v853 = vadd.f32 %v851, %v852
        %v854 = vrot.slane %v853, 4
        %v855 = vadd.f32 %v853, %v854
        %v856 = vrot.slane %v855, 2
        %v857 = vadd.f32 %v855, %v856
        %v858 = vrot.slane %v857, 1
        %v859 = vadd.f32 %v857, %v858
        %v860 = vsel %vm292, %v830, 0.0
        %v861 = vsel %vm292, %v831, 0.0
        %v862 = vadd.f32 %v860, %v861
        %v863 = vrot.slane %v862, 4
        %v864 = vadd.f32 %v862, %v863
        %v865 = vrot.slane %v864, 2
        %v866 = vadd.f32 %v864, %v865
        %v867 = vrot.slane %v866, 1
        %v868 = vadd.f32 %v866, %v867
        %v869 = vsel %vm292, %v832, 0.0
        %v870 = vsel %vm292, %v833, 0.0
        %v871 = vadd.f32 %v869, %v870
        %v872 = vrot.slane %v871, 4
        %v873 = vadd.f32 %v871, %v872
        %v874 = vrot.slane %v873, 2
        %v875 = vadd.f32 %v873, %v874
        %v876 = vrot.slane %v875, 1
        %v877 = vadd.f32 %v875, %v876
        %v878 = vsel %vm292, %v834, 0.0
        %v879 = vsel %vm292, %v835, 0.0
        %v880 = vadd.f32 %v878, %v879
        %v881 = vrot.slane %v880, 4
        %v882 = vadd.f32 %v880, %v881
        %v883 = vrot.slane %v882, 2
        %v884 = vadd.f32 %v882, %v883
        %v885 = vrot.slane %v884, 1
        %v886 = vadd.f32 %v884, %v885
        %v887 = vsel %vm292, %v836, 0.0
        %v888 = vsel %vm292, %v837, 0.0
        %v889 = vadd.f32 %v887, %v888
        %v890 = vrot.slane %v889, 4
        %v891 = vadd.f32 %v889, %v890
        %v892 = vrot.slane %v891, 2
        %v893 = vadd.f32 %v891, %v892
        %v894 = vrot.slane %v893, 1
        %v895 = vadd.f32 %v893, %v894
        %v896 = vsel %vm292, %v838, 0.0
        %v897 = vsel %vm292, %v839, 0.0
        %v898 = vadd.f32 %v896, %v897
        %v899 = vrot.slane %v898, 4
        %v900 = vadd.f32 %v898, %v899
        %v901 = vrot.slane %v900, 2
        %v902 = vadd.f32 %v900, %v901
        %v903 = vrot.slane %v902, 1
        %v904 = vadd.f32 %v902, %v903
        %v905 = vsel %vm292, %v840, 0.0
        %v906 = vsel %vm292, %v841, 0.0
        %v907 = vadd.f32 %v905, %v906
        %v908 = vrot.slane %v907, 4
        %v909 = vadd.f32 %v907, %v908
        %v910 = vrot.slane %v909, 2
        %v911 = vadd.f32 %v909, %v910
        %v912 = vrot.slane %v911, 1
        %v913 = vadd.f32 %v911, %v912
        %v922 = vsel %vm433, %v859, %v850
        %v923 = vsel %vm435, %v868, %v922
        %v924 = vsel %vm437, %v877, %v923
        %v925 = vsel %vm439, %v886, %v924
        %v926 = vsel %vm441, %v895, %v925
        %v927 = vsel %vm443, %v904, %v926
        %v928 = vsel %vm445, %v913, %v927
        %v930 = vsel %vm292, %v928, 0.0
        %vm931 = vcmask 523264
        %v933 = vsel %vm931, %v930, 0
        %935 = vmatprep.subr.mxu0 0.0
        %936 = vmatpush1.msra.mxu0 %v261
        %937 = vmatprep.subr.mxu0 0.0
        %938 = vmatpush1.msra.mxu0 %v262
        %939 = vmatprep.subr.mxu0 0.0
        %940 = vmatpush1.msra.mxu0 %v263
        %941 = vmatprep.subr.mxu0 0.0
        %942 = vmatpush1.msra.mxu0 %v264
        %943 = vmatprep.subr.mxu0 0.0
        %944 = vmatpush1.msra.mxu0 %v265
        %945 = vmatprep.subr.mxu0 0.0
        %946 = vmatpush1.msra.mxu0 %v266
        %947 = vmatprep.subr.mxu0 0.0
        %948 = vmatpush1.msra.mxu0 %v267
        %949 = vmatprep.subr.mxu0 0.0
        %950 = vmatpush1.msra.mxu0 %v268
        %951 = vmatprep.subr.mxu0 0.0
        %952 = vmatpush1.msra.mxu0 0.0
        %953 = vmatprep.subr.mxu0 0.0
        %954 = vmatpush1.msra.mxu0 0.0
        %955 = vmatprep.subr.mxu0 0.0
        %956 = vmatpush1.msra.mxu0 0.0
        %957 = vmatprep.subr.mxu0 0.0
        %958 = vmatpush1.msra.mxu0 0.0
        %959 = vmatprep.subr.mxu0 0.0
        %960 = vmatpush1.msra.mxu0 0.0
        %961 = vmatprep.subr.mxu0 0.0
        %962 = vmatpush1.msra.mxu0 0.0
        %963 = vmatprep.subr.mxu0 0.0
        %964 = vmatpush1.msra.mxu0 0.0
        %965 = vmatprep.subr.mxu0 0.0
        %966 = vmatpush1.msra.mxu0 0.0
        %967 = vmatprep.subr.mxu0 0.0
        %968 = vmatpush1.msra.mxu0 0.0
        %969 = vmatprep.subr.mxu0 0.0
        %970 = vmatpush1.msra.mxu0 0.0
        %971 = vmatprep.subr.mxu0 0.0
        %972 = vmatpush1.msra.mxu0 0.0
        %973 = vmatprep.subr.mxu0 0.0
        %974 = vmatpush1.msra.mxu0 0.0
        %975 = vmatprep.subr.mxu0 0.0
        %976 = vmatpush1.msra.mxu0 0.0
        %977 = vmatprep.subr.mxu0 0.0
        %978 = vmatpush1.msra.mxu0 0.0
        %979 = vmatprep.subr.mxu0 0.0
        %980 = vmatpush1.msra.mxu0 0.0
        %981 = vmatprep.subr.mxu0 0.0
        %982 = vmatpush1.msra.mxu0 0.0
        %983 = vmatprep.subr.mxu0 0.0
        %984 = vmatpush1.msra.mxu0 0.0
        %985 = vmatprep.subr.mxu0 0.0
        %986 = vmatpush1.msra.mxu0 0.0
        %987 = vmatprep.subr.mxu0 0.0
        %988 = vmatpush1.msra.mxu0 0.0
        %989 = vmatprep.subr.mxu0 0.0
        %990 = vmatpush1.msra.mxu0 0.0
        %991 = vmatprep.subr.mxu0 0.0
        %992 = vmatpush1.msra.mxu0 0.0
        %993 = vmatprep.subr.mxu0 0.0
        %994 = vmatpush1.msra.mxu0 0.0
        %995 = vmatprep.subr.mxu0 0.0
        %996 = vmatpush1.msra.mxu0 0.0
        %997 = vmatprep.subr.mxu0 0.0
        %998 = vmatpush1.msra.mxu0 0.0
        %999 = vmatprep.mubr.f32.mxu0 0.0
        %1000 = vmatmul.mubr.f32.gmra.mrb[0].mxu0 %v933
        %v1001 = vpop.f32.mrb[0].mxu0
        %v1002 = vadd.f32 %v274, %v1001
        %v1003 = vpop.f32.mrb[0].mxu0
        %1004 = vdwg.mxu0
        %v1005 = vxor.u32 %v1002, 2147483648
        %v1006 = vmul.f32 %v1005, 1.442695
        %v1007 = vpow.pop %v1006
        %v1008 = vadd.f32 %v1007, 1.0
        %v1009 = vrcp.pop %v1008
        %v1010 = vmul.f32 1.0, %v1009
        %v1011 = vtanh.pop %v1002
        %v1012 = vmul.f32 %v1010, 0.0
        %1014 = vrot.lane.b32.xlu0 %v1011, 64
        %v1015 = vpop.permute.xlu0 %1014
        %v1017 = vmul.f32 %v1010, %v1015
        %1019 = vrot.lane.b32.xlu0 %v1017, 32
        %v1020 = vpop.permute.xlu0 %1019
        %v1022 = vadd.f32 %v1012, %v1020
        %v1023 = vtanh.pop %v1022
        %1025 = vrot.lane.b32.xlu0 %v1023, 64
        %v1026 = vpop.permute.xlu0 %1025
        %v1028 = vmul.f32 %v1010, %v1026
        %v1030 = vcombine.high %v1028, %v1028
        %v1032 = vunpack.c.l.s4 1966171168
        %v1033 = vunpack.c.0.s8 %v1032
        %v1034 = vlaneseq
        %v1035 = vshrl.u32 %v1034, 7
        %v1036 = vsub.s32 %v1033, %v1035
        %v1037 = vrot.slane %v1028, %v1036
        %v1039 = vunpack.c.l.s4 1966171168
        %v1040 = vunpack.c.0.s8 %v1039
        %v1041 = vlaneseq
        %v1042 = vshrl.u32 %v1041, 7
        %v1043 = vsub.s32 %v1040, %v1042
        %v1044 = vrot.slane %v1030, %v1043
        %v1045 = vcombine.high %v1037, %v1037
        %v1046 = vcombine.high %v1044, %v1044
        %v1048 = vunpack.c.l.s4 1966171168
        %v1049 = vunpack.c.0.s8 %v1048
        %v1050 = vlaneseq
        %v1051 = vshrl.u32 %v1050, 7
        %v1052 = vsub.s32 %v1049, %v1051
        %v1053 = vrot.slane %v1037, %v1052
        %v1055 = vunpack.c.l.s4 1966171168
        %v1056 = vunpack.c.0.s8 %v1055
        %v1057 = vlaneseq
        %v1058 = vshrl.u32 %v1057, 7
        %v1059 = vsub.s32 %v1056, %v1058
        %v1060 = vrot.slane %v1044, %v1059
        %v1062 = vunpack.c.l.s4 1966171168
        %v1063 = vunpack.c.0.s8 %v1062
        %v1064 = vlaneseq
        %v1065 = vshrl.u32 %v1064, 7
        %v1066 = vsub.s32 %v1063, %v1065
        %v1067 = vrot.slane %v1045, %v1066
        %v1069 = vunpack.c.l.s4 1966171168
        %v1070 = vunpack.c.0.s8 %v1069
        %v1071 = vlaneseq
        %v1072 = vshrl.u32 %v1071, 7
        %v1073 = vsub.s32 %v1070, %v1072
        %v1074 = vrot.slane %v1046, %v1073
        %v1075 = vcombine.high %v1053, %v1053
        %v1076 = vcombine.high %v1060, %v1060
        %v1077 = vcombine.high %v1067, %v1067
        %v1078 = vcombine.high %v1074, %v1074
        %v1079 = vlaneseq
        %v1080 = vshrl.u32 %v1079, 7
        %v1081 = vsub.s32 0, %v1080
        %v1082 = vrot.slane %v1053, %v1081
        %v1083 = vlaneseq
        %v1084 = vshrl.u32 %v1083, 7
        %v1085 = vsub.s32 0, %v1084
        %v1086 = vrot.slane %v1067, %v1085
        %v1087 = vlaneseq
        %v1088 = vshrl.u32 %v1087, 7
        %v1089 = vsub.s32 0, %v1088
        %v1090 = vrot.slane %v1075, %v1089
        %v1091 = vlaneseq
        %v1092 = vshrl.u32 %v1091, 7
        %v1093 = vsub.s32 0, %v1092
        %v1094 = vrot.slane %v1077, %v1093
        %v1095 = vlaneseq
        %v1096 = vshrl.u32 %v1095, 7
        %v1097 = vsub.s32 0, %v1096
        %v1098 = vrot.slane %v1060, %v1097
        %v1099 = vlaneseq
        %v1100 = vshrl.u32 %v1099, 7
        %v1101 = vsub.s32 0, %v1100
        %v1102 = vrot.slane %v1074, %v1101
        %v1103 = vlaneseq
        %v1104 = vshrl.u32 %v1103, 7
        %v1105 = vsub.s32 0, %v1104
        %v1106 = vrot.slane %v1076, %v1105
        %v1107 = vlaneseq
        %v1108 = vshrl.u32 %v1107, 7
        %v1109 = vsub.s32 0, %v1108
        %v1110 = vrot.slane %v1078, %v1109
        %1111 = vrot.lane.b32.xlu0 %v1082, 32
        %v1112 = vpop.permute.xlu0 %1111
        %1113 = vrot.lane.b32.xlu0 %v1086, 32
        %v1114 = vpop.permute.xlu0 %1113
        %1115 = vrot.lane.b32.xlu0 %v1090, 32
        %v1116 = vpop.permute.xlu0 %1115
        %1117 = vrot.lane.b32.xlu0 %v1094, 32
        %v1118 = vpop.permute.xlu0 %1117
        %1119 = vrot.lane.b32.xlu0 %v1098, 32
        %v1120 = vpop.permute.xlu0 %1119
        %1121 = vrot.lane.b32.xlu0 %v1102, 32
        %v1122 = vpop.permute.xlu0 %1121
        %1123 = vrot.lane.b32.xlu0 %v1106, 32
        %v1124 = vpop.permute.xlu0 %1123
        %1125 = vrot.lane.b32.xlu0 %v1110, 32
        %v1126 = vpop.permute.xlu0 %1125
        %v1135 = vmul.f32 %v245, %v1112
        %v1136 = vmul.f32 %v246, %v1112
        %v1137 = vmul.f32 %v247, %v1114
        %v1138 = vmul.f32 %v248, %v1114
        %v1139 = vmul.f32 %v249, %v1116
        %v1140 = vmul.f32 %v250, %v1116
        %v1141 = vmul.f32 %v251, %v1118
        %v1142 = vmul.f32 %v252, %v1118
        %v1143 = vmul.f32 %v253, %v1120
        %v1144 = vmul.f32 %v254, %v1120
        %v1145 = vmul.f32 %v255, %v1122
        %v1146 = vmul.f32 %v256, %v1122
        %v1147 = vmul.f32 %v257, %v1124
        %v1148 = vmul.f32 %v258, %v1124
        %v1149 = vmul.f32 %v259, %v1126
        %v1150 = vmul.f32 %v260, %v1126
        %v1151 = vsel %vm292, %v1135, 0.0
        %1152 = vadd.xlane.f32.xlu0 %v1151
        %v1153 = vpop.xlane.xlu0 %1152
        %v1154 = vsel %vm292, %v1136, 0.0
        %1155 = vadd.xlane.f32.xlu0 %v1154
        %v1156 = vpop.xlane.xlu0 %1155
        %v1157 = vsel %vm292, %v1137, 0.0
        %1158 = vadd.xlane.f32.xlu0 %v1157
        %v1159 = vpop.xlane.xlu0 %1158
        %v1160 = vsel %vm292, %v1138, 0.0
        %1161 = vadd.xlane.f32.xlu0 %v1160
        %v1162 = vpop.xlane.xlu0 %1161
        %v1163 = vsel %vm292, %v1139, 0.0
        %1164 = vadd.xlane.f32.xlu0 %v1163
        %v1165 = vpop.xlane.xlu0 %1164
        %v1166 = vsel %vm292, %v1140, 0.0
        %1167 = vadd.xlane.f32.xlu0 %v1166
        %v1168 = vpop.xlane.xlu0 %1167
        %v1169 = vsel %vm292, %v1141, 0.0
        %1170 = vadd.xlane.f32.xlu0 %v1169
        %v1171 = vpop.xlane.xlu0 %1170
        %v1172 = vsel %vm292, %v1142, 0.0
        %1173 = vadd.xlane.f32.xlu0 %v1172
        %v1174 = vpop.xlane.xlu0 %1173
        %v1175 = vsel %vm292, %v1143, 0.0
        %1176 = vadd.xlane.f32.xlu0 %v1175
        %v1177 = vpop.xlane.xlu0 %1176
        %v1178 = vsel %vm292, %v1144, 0.0
        %1179 = vadd.xlane.f32.xlu0 %v1178
        %v1180 = vpop.xlane.xlu0 %1179
        %v1181 = vsel %vm292, %v1145, 0.0
        %1182 = vadd.xlane.f32.xlu0 %v1181
        %v1183 = vpop.xlane.xlu0 %1182
        %v1184 = vsel %vm292, %v1146, 0.0
        %1185 = vadd.xlane.f32.xlu0 %v1184
        %v1186 = vpop.xlane.xlu0 %1185
        %v1187 = vsel %vm292, %v1147, 0.0
        %1188 = vadd.xlane.f32.xlu0 %v1187
        %v1189 = vpop.xlane.xlu0 %1188
        %v1190 = vsel %vm292, %v1148, 0.0
        %1191 = vadd.xlane.f32.xlu0 %v1190
        %v1192 = vpop.xlane.xlu0 %1191
        %v1193 = vsel %vm292, %v1149, 0.0
        %1194 = vadd.xlane.f32.xlu0 %v1193
        %v1195 = vpop.xlane.xlu0 %1194
        %v1196 = vsel %vm292, %v1150, 0.0
        %1197 = vadd.xlane.f32.xlu0 %v1196
        %v1198 = vpop.xlane.xlu0 %1197
        %v1215 = vlaneseq
        %v1216 = vshrl.u32 %v1215, 7
        %v1217 = vsub.s32 %v358, %v1216
        %v1218 = vrot.slane %v1153, %v1217
        %v1219 = vlaneseq
        %v1220 = vshrl.u32 %v1219, 7
        %v1221 = vsub.s32 %v363, %v1220
        %v1222 = vrot.slane %v1156, %v1221
        %v1223 = vsel %vm368, %v1222, %v1218
        %v1224 = vlaneseq
        %v1225 = vshrl.u32 %v1224, 7
        %v1226 = vsub.s32 %v358, %v1225
        %v1227 = vrot.slane %v1159, %v1226
        %v1228 = vlaneseq
        %v1229 = vshrl.u32 %v1228, 7
        %v1230 = vsub.s32 %v363, %v1229
        %v1231 = vrot.slane %v1162, %v1230
        %v1232 = vsel %vm368, %v1231, %v1227
        %v1233 = vlaneseq
        %v1234 = vshrl.u32 %v1233, 7
        %v1235 = vsub.s32 %v358, %v1234
        %v1236 = vrot.slane %v1165, %v1235
        %v1237 = vlaneseq
        %v1238 = vshrl.u32 %v1237, 7
        %v1239 = vsub.s32 %v363, %v1238
        %v1240 = vrot.slane %v1168, %v1239
        %v1241 = vsel %vm368, %v1240, %v1236
        %v1242 = vlaneseq
        %v1243 = vshrl.u32 %v1242, 7
        %v1244 = vsub.s32 %v358, %v1243
        %v1245 = vrot.slane %v1171, %v1244
        %v1246 = vlaneseq
        %v1247 = vshrl.u32 %v1246, 7
        %v1248 = vsub.s32 %v363, %v1247
        %v1249 = vrot.slane %v1174, %v1248
        %v1250 = vsel %vm368, %v1249, %v1245
        %v1251 = vlaneseq
        %v1252 = vshrl.u32 %v1251, 7
        %v1253 = vsub.s32 %v358, %v1252
        %v1254 = vrot.slane %v1177, %v1253
        %v1255 = vlaneseq
        %v1256 = vshrl.u32 %v1255, 7
        %v1257 = vsub.s32 %v363, %v1256
        %v1258 = vrot.slane %v1180, %v1257
        %v1259 = vsel %vm368, %v1258, %v1254
        %v1260 = vlaneseq
        %v1261 = vshrl.u32 %v1260, 7
        %v1262 = vsub.s32 %v358, %v1261
        %v1263 = vrot.slane %v1183, %v1262
        %v1264 = vlaneseq
        %v1265 = vshrl.u32 %v1264, 7
        %v1266 = vsub.s32 %v363, %v1265
        %v1267 = vrot.slane %v1186, %v1266
        %v1268 = vsel %vm368, %v1267, %v1263
        %v1269 = vlaneseq
        %v1270 = vshrl.u32 %v1269, 7
        %v1271 = vsub.s32 %v358, %v1270
        %v1272 = vrot.slane %v1189, %v1271
        %v1273 = vlaneseq
        %v1274 = vshrl.u32 %v1273, 7
        %v1275 = vsub.s32 %v363, %v1274
        %v1276 = vrot.slane %v1192, %v1275
        %v1277 = vsel %vm368, %v1276, %v1272
        %v1278 = vlaneseq
        %v1279 = vshrl.u32 %v1278, 7
        %v1280 = vsub.s32 %v358, %v1279
        %v1281 = vrot.slane %v1195, %v1280
        %v1282 = vlaneseq
        %v1283 = vshrl.u32 %v1282, 7
        %v1284 = vsub.s32 %v363, %v1283
        %v1285 = vrot.slane %v1198, %v1284
        %v1286 = vsel %vm368, %v1285, %v1281
        %v1287 = vsel %vm433, %v1232, %v1223
        %v1288 = vsel %vm435, %v1241, %v1287
        %v1289 = vsel %vm437, %v1250, %v1288
        %v1290 = vsel %vm439, %v1259, %v1289
        %v1291 = vsel %vm441, %v1268, %v1290
        %v1292 = vsel %vm443, %v1277, %v1291
        %v1293 = vsel %vm445, %v1286, %v1292
        %v1295 = vsel %vm448, %v1293, -inf
        %1296 = vmax.xlane.f32.xlu0 %v1295
        %v1297 = vpop.xlane.xlu0 %1296
        %v1299 = vlaneseq
        %v1300 = vshrl.u32 %v1299, 7
        %v1301 = vsub.s32 0, %v1300
        %v1302 = vrot.slane %v1297, %v1301
        %v1303 = vlaneseq
        %v1304 = vshrl.u32 %v1303, 7
        %v1305 = vsub.s32 1, %v1304
        %v1306 = vrot.slane %v1297, %v1305
        %v1307 = vlaneseq
        %v1308 = vshrl.u32 %v1307, 7
        %v1309 = vsub.s32 2, %v1308
        %v1310 = vrot.slane %v1297, %v1309
        %v1311 = vlaneseq
        %v1312 = vshrl.u32 %v1311, 7
        %v1313 = vsub.s32 3, %v1312
        %v1314 = vrot.slane %v1297, %v1313
        %v1315 = vlaneseq
        %v1316 = vshrl.u32 %v1315, 7
        %v1317 = vsub.s32 4, %v1316
        %v1318 = vrot.slane %v1297, %v1317
        %v1319 = vlaneseq
        %v1320 = vshrl.u32 %v1319, 7
        %v1321 = vsub.s32 5, %v1320
        %v1322 = vrot.slane %v1297, %v1321
        %v1323 = vlaneseq
        %v1324 = vshrl.u32 %v1323, 7
        %v1325 = vsub.s32 6, %v1324
        %v1326 = vrot.slane %v1297, %v1325
        %v1327 = vlaneseq
        %v1328 = vshrl.u32 %v1327, 7
        %v1329 = vsub.s32 7, %v1328
        %v1330 = vrot.slane %v1297, %v1329
        %v1339 = vsub.f32 %v1153, %v1302
        %v1340 = vsub.f32 %v1156, %v1302
        %v1341 = vsub.f32 %v1159, %v1306
        %v1342 = vsub.f32 %v1162, %v1306
        %v1343 = vsub.f32 %v1165, %v1310
        %v1344 = vsub.f32 %v1168, %v1310
        %v1345 = vsub.f32 %v1171, %v1314
        %v1346 = vsub.f32 %v1174, %v1314
        %v1347 = vsub.f32 %v1177, %v1318
        %v1348 = vsub.f32 %v1180, %v1318
        %v1349 = vsub.f32 %v1183, %v1322
        %v1350 = vsub.f32 %v1186, %v1322
        %v1351 = vsub.f32 %v1189, %v1326
        %v1352 = vsub.f32 %v1192, %v1326
        %v1353 = vsub.f32 %v1195, %v1330
        %v1354 = vsub.f32 %v1198, %v1330
        %v1355 = vmul.f32 %v1339, 1.442695
        %v1356 = vpow.pop %v1355
        %v1357 = vmul.f32 %v1340, 1.442695
        %v1358 = vpow.pop %v1357
        %v1359 = vmul.f32 %v1341, 1.442695
        %v1360 = vpow.pop %v1359
        %v1361 = vmul.f32 %v1342, 1.442695
        %v1362 = vpow.pop %v1361
        %v1363 = vmul.f32 %v1343, 1.442695
        %v1364 = vpow.pop %v1363
        %v1365 = vmul.f32 %v1344, 1.442695
        %v1366 = vpow.pop %v1365
        %v1367 = vmul.f32 %v1345, 1.442695
        %v1368 = vpow.pop %v1367
        %v1369 = vmul.f32 %v1346, 1.442695
        %v1370 = vpow.pop %v1369
        %v1371 = vmul.f32 %v1347, 1.442695
        %v1372 = vpow.pop %v1371
        %v1373 = vmul.f32 %v1348, 1.442695
        %v1374 = vpow.pop %v1373
        %v1375 = vmul.f32 %v1349, 1.442695
        %v1376 = vpow.pop %v1375
        %v1377 = vmul.f32 %v1350, 1.442695
        %v1378 = vpow.pop %v1377
        %v1379 = vmul.f32 %v1351, 1.442695
        %v1380 = vpow.pop %v1379
        %v1381 = vmul.f32 %v1352, 1.442695
        %v1382 = vpow.pop %v1381
        %v1383 = vmul.f32 %v1353, 1.442695
        %v1384 = vpow.pop %v1383
        %v1385 = vmul.f32 %v1354, 1.442695
        %v1386 = vpow.pop %v1385
        %1403 = vset.pattern.permute.xlu0 0
        %1404 = vperm.xlu0 %1403, %v1356
        %v1405 = vpop.permute.xlu0 %1404
        %1406 = vset.pattern.permute.xlu0 0
        %1407 = vperm.xlu0 %1406, %v1358
        %v1408 = vpop.permute.xlu0 %1407
        %1409 = vset.pattern.permute.xlu0 0
        %1410 = vperm.xlu0 %1409, %v1360
        %v1411 = vpop.permute.xlu0 %1410
        %1412 = vset.pattern.permute.xlu0 0
        %1413 = vperm.xlu0 %1412, %v1362
        %v1414 = vpop.permute.xlu0 %1413
        %1415 = vset.pattern.permute.xlu0 0
        %1416 = vperm.xlu0 %1415, %v1364
        %v1417 = vpop.permute.xlu0 %1416
        %1418 = vset.pattern.permute.xlu0 0
        %1419 = vperm.xlu0 %1418, %v1366
        %v1420 = vpop.permute.xlu0 %1419
        %1421 = vset.pattern.permute.xlu0 0
        %1422 = vperm.xlu0 %1421, %v1368
        %v1423 = vpop.permute.xlu0 %1422
        %1424 = vset.pattern.permute.xlu0 0
        %1425 = vperm.xlu0 %1424, %v1370
        %v1426 = vpop.permute.xlu0 %1425
        %1427 = vset.pattern.permute.xlu0 0
        %1428 = vperm.xlu0 %1427, %v1372
        %v1429 = vpop.permute.xlu0 %1428
        %1430 = vset.pattern.permute.xlu0 0
        %1431 = vperm.xlu0 %1430, %v1374
        %v1432 = vpop.permute.xlu0 %1431
        %1433 = vset.pattern.permute.xlu0 0
        %1434 = vperm.xlu0 %1433, %v1376
        %v1435 = vpop.permute.xlu0 %1434
        %1436 = vset.pattern.permute.xlu0 0
        %1437 = vperm.xlu0 %1436, %v1378
        %v1438 = vpop.permute.xlu0 %1437
        %1439 = vset.pattern.permute.xlu0 0
        %1440 = vperm.xlu0 %1439, %v1380
        %v1441 = vpop.permute.xlu0 %1440
        %1442 = vset.pattern.permute.xlu0 0
        %1443 = vperm.xlu0 %1442, %v1382
        %v1444 = vpop.permute.xlu0 %1443
        %1445 = vset.pattern.permute.xlu0 0
        %1446 = vperm.xlu0 %1445, %v1384
        %v1447 = vpop.permute.xlu0 %1446
        %1448 = vset.pattern.permute.xlu0 0
        %1449 = vperm.xlu0 %1448, %v1386
        %v1450 = vpop.permute.xlu0 %1449
        %v1451 = vlaneseq
        %v1452 = vshrl.u32 %v1451, 7
        %v1453 = vsub.s32 %v358, %v1452
        %v1454 = vrot.slane %v1405, %v1453
        %v1455 = vlaneseq
        %v1456 = vshrl.u32 %v1455, 7
        %v1457 = vsub.s32 %v363, %v1456
        %v1458 = vrot.slane %v1408, %v1457
        %v1459 = vsel %vm368, %v1458, %v1454
        %v1460 = vlaneseq
        %v1461 = vshrl.u32 %v1460, 7
        %v1462 = vsub.s32 %v358, %v1461
        %v1463 = vrot.slane %v1411, %v1462
        %v1464 = vlaneseq
        %v1465 = vshrl.u32 %v1464, 7
        %v1466 = vsub.s32 %v363, %v1465
        %v1467 = vrot.slane %v1414, %v1466
        %v1468 = vsel %vm368, %v1467, %v1463
        %v1469 = vlaneseq
        %v1470 = vshrl.u32 %v1469, 7
        %v1471 = vsub.s32 %v358, %v1470
        %v1472 = vrot.slane %v1417, %v1471
        %v1473 = vlaneseq
        %v1474 = vshrl.u32 %v1473, 7
        %v1475 = vsub.s32 %v363, %v1474
        %v1476 = vrot.slane %v1420, %v1475
        %v1477 = vsel %vm368, %v1476, %v1472
        %v1478 = vlaneseq
        %v1479 = vshrl.u32 %v1478, 7
        %v1480 = vsub.s32 %v358, %v1479
        %v1481 = vrot.slane %v1423, %v1480
        %v1482 = vlaneseq
        %v1483 = vshrl.u32 %v1482, 7
        %v1484 = vsub.s32 %v363, %v1483
        %v1485 = vrot.slane %v1426, %v1484
        %v1486 = vsel %vm368, %v1485, %v1481
        %v1487 = vlaneseq
        %v1488 = vshrl.u32 %v1487, 7
        %v1489 = vsub.s32 %v358, %v1488
        %v1490 = vrot.slane %v1429, %v1489
        %v1491 = vlaneseq
        %v1492 = vshrl.u32 %v1491, 7
        %v1493 = vsub.s32 %v363, %v1492
        %v1494 = vrot.slane %v1432, %v1493
        %v1495 = vsel %vm368, %v1494, %v1490
        %v1496 = vlaneseq
        %v1497 = vshrl.u32 %v1496, 7
        %v1498 = vsub.s32 %v358, %v1497
        %v1499 = vrot.slane %v1435, %v1498
        %v1500 = vlaneseq
        %v1501 = vshrl.u32 %v1500, 7
        %v1502 = vsub.s32 %v363, %v1501
        %v1503 = vrot.slane %v1438, %v1502
        %v1504 = vsel %vm368, %v1503, %v1499
        %v1505 = vlaneseq
        %v1506 = vshrl.u32 %v1505, 7
        %v1507 = vsub.s32 %v358, %v1506
        %v1508 = vrot.slane %v1441, %v1507
        %v1509 = vlaneseq
        %v1510 = vshrl.u32 %v1509, 7
        %v1511 = vsub.s32 %v363, %v1510
        %v1512 = vrot.slane %v1444, %v1511
        %v1513 = vsel %vm368, %v1512, %v1508
        %v1514 = vlaneseq
        %v1515 = vshrl.u32 %v1514, 7
        %v1516 = vsub.s32 %v358, %v1515
        %v1517 = vrot.slane %v1447, %v1516
        %v1518 = vlaneseq
        %v1519 = vshrl.u32 %v1518, 7
        %v1520 = vsub.s32 %v363, %v1519
        %v1521 = vrot.slane %v1450, %v1520
        %v1522 = vsel %vm368, %v1521, %v1517
        %v1523 = vsel %vm433, %v1468, %v1459
        %v1524 = vsel %vm435, %v1477, %v1523
        %v1525 = vsel %vm437, %v1486, %v1524
        %v1526 = vsel %vm439, %v1495, %v1525
        %v1527 = vsel %vm441, %v1504, %v1526
        %v1528 = vsel %vm443, %v1513, %v1527
        %v1529 = vsel %vm445, %v1522, %v1528
        %v1531 = vsel %vm448, %v1529, 0.0
        %1532 = vadd.xlane.f32.xlu0 %v1531
        %v1533 = vpop.xlane.xlu0 %1532
        %v1534 = vrcp.pop %v1533
        %v1536 = vlaneseq
        %v1537 = vshrl.u32 %v1536, 7
        %v1538 = vsub.s32 0, %v1537
        %v1539 = vrot.slane %v1534, %v1538
        %v1540 = vlaneseq
        %v1541 = vshrl.u32 %v1540, 7
        %v1542 = vsub.s32 1, %v1541
        %v1543 = vrot.slane %v1534, %v1542
        %v1544 = vlaneseq
        %v1545 = vshrl.u32 %v1544, 7
        %v1546 = vsub.s32 2, %v1545
        %v1547 = vrot.slane %v1534, %v1546
        %v1548 = vlaneseq
        %v1549 = vshrl.u32 %v1548, 7
        %v1550 = vsub.s32 3, %v1549
        %v1551 = vrot.slane %v1534, %v1550
        %v1552 = vlaneseq
        %v1553 = vshrl.u32 %v1552, 7
        %v1554 = vsub.s32 4, %v1553
        %v1555 = vrot.slane %v1534, %v1554
        %v1556 = vlaneseq
        %v1557 = vshrl.u32 %v1556, 7
        %v1558 = vsub.s32 5, %v1557
        %v1559 = vrot.slane %v1534, %v1558
        %v1560 = vlaneseq
        %v1561 = vshrl.u32 %v1560, 7
        %v1562 = vsub.s32 6, %v1561
        %v1563 = vrot.slane %v1534, %v1562
        %v1564 = vlaneseq
        %v1565 = vshrl.u32 %v1564, 7
        %v1566 = vsub.s32 7, %v1565
        %v1567 = vrot.slane %v1534, %v1566
        %v1576 = vmul.f32 %v1356, %v1539
        %v1577 = vmul.f32 %v1358, %v1539
        %v1578 = vmul.f32 %v1360, %v1543
        %v1579 = vmul.f32 %v1362, %v1543
        %v1580 = vmul.f32 %v1364, %v1547
        %v1581 = vmul.f32 %v1366, %v1547
        %v1582 = vmul.f32 %v1368, %v1551
        %v1583 = vmul.f32 %v1370, %v1551
        %v1584 = vmul.f32 %v1372, %v1555
        %v1585 = vmul.f32 %v1374, %v1555
        %v1586 = vmul.f32 %v1376, %v1559
        %v1587 = vmul.f32 %v1378, %v1559
        %v1588 = vmul.f32 %v1380, %v1563
        %v1589 = vmul.f32 %v1382, %v1563
        %v1590 = vmul.f32 %v1384, %v1567
        %v1591 = vmul.f32 %v1386, %v1567
        %1593 = vset.pattern.permute.xlu0 0
        %1594 = vperm.xlu0 %1593, %v1576
        %v1595 = vpop.permute.xlu0 %1594
        %1598 = vset.pattern.permute.xlu0 0
        %1599 = vperm.xlu0 %1598, %v1577
        %v1600 = vpop.permute.xlu0 %1599
        %1603 = vset.pattern.permute.xlu0 0
        %1604 = vperm.xlu0 %1603, %v1578
        %v1605 = vpop.permute.xlu0 %1604
        %1608 = vset.pattern.permute.xlu0 0
        %1609 = vperm.xlu0 %1608, %v1579
        %v1610 = vpop.permute.xlu0 %1609
        %1613 = vset.pattern.permute.xlu0 0
        %1614 = vperm.xlu0 %1613, %v1580
        %v1615 = vpop.permute.xlu0 %1614
        %1618 = vset.pattern.permute.xlu0 0
        %1619 = vperm.xlu0 %1618, %v1581
        %v1620 = vpop.permute.xlu0 %1619
        %1623 = vset.pattern.permute.xlu0 0
        %1624 = vperm.xlu0 %1623, %v1582
        %v1625 = vpop.permute.xlu0 %1624
        %1628 = vset.pattern.permute.xlu0 0
        %1629 = vperm.xlu0 %1628, %v1583
        %v1630 = vpop.permute.xlu0 %1629
        %1633 = vset.pattern.permute.xlu0 0
        %1634 = vperm.xlu0 %1633, %v1584
        %v1635 = vpop.permute.xlu0 %1634
        %1638 = vset.pattern.permute.xlu0 0
        %1639 = vperm.xlu0 %1638, %v1585
        %v1640 = vpop.permute.xlu0 %1639
        %1643 = vset.pattern.permute.xlu0 0
        %1644 = vperm.xlu0 %1643, %v1586
        %v1645 = vpop.permute.xlu0 %1644
        %1648 = vset.pattern.permute.xlu0 0
        %1649 = vperm.xlu0 %1648, %v1587
        %v1650 = vpop.permute.xlu0 %1649
        %1653 = vset.pattern.permute.xlu0 0
        %1654 = vperm.xlu0 %1653, %v1588
        %v1655 = vpop.permute.xlu0 %1654
        %1658 = vset.pattern.permute.xlu0 0
        %1659 = vperm.xlu0 %1658, %v1589
        %v1660 = vpop.permute.xlu0 %1659
        %1663 = vset.pattern.permute.xlu0 0
        %1664 = vperm.xlu0 %1663, %v1590
        %v1665 = vpop.permute.xlu0 %1664
        %1668 = vset.pattern.permute.xlu0 0
        %1669 = vperm.xlu0 %1668, %v1591
        %v1670 = vpop.permute.xlu0 %1669
        %v1672 = vmul.f32 %v1595, %v245
        %v1673 = vmul.f32 %v1600, %v246
        %v1674 = vmul.f32 %v1605, %v247
        %v1675 = vmul.f32 %v1610, %v248
        %v1676 = vmul.f32 %v1615, %v249
        %v1677 = vmul.f32 %v1620, %v250
        %v1678 = vmul.f32 %v1625, %v251
        %v1679 = vmul.f32 %v1630, %v252
        %v1680 = vmul.f32 %v1635, %v253
        %v1681 = vmul.f32 %v1640, %v254
        %v1682 = vmul.f32 %v1645, %v255
        %v1683 = vmul.f32 %v1650, %v256
        %v1684 = vmul.f32 %v1655, %v257
        %v1685 = vmul.f32 %v1660, %v258
        %v1686 = vmul.f32 %v1665, %v259
        %v1687 = vmul.f32 %v1670, %v260
        %v1688 = vsel %vm292, %v1672, 0.0
        %v1689 = vsel %vm292, %v1673, 0.0
        %v1690 = vadd.f32 %v1688, %v1689
        %v1691 = vrot.slane %v1690, 4
        %v1692 = vadd.f32 %v1690, %v1691
        %v1693 = vrot.slane %v1692, 2
        %v1694 = vadd.f32 %v1692, %v1693
        %v1695 = vrot.slane %v1694, 1
        %v1696 = vadd.f32 %v1694, %v1695
        %v1697 = vsel %vm292, %v1674, 0.0
        %v1698 = vsel %vm292, %v1675, 0.0
        %v1699 = vadd.f32 %v1697, %v1698
        %v1700 = vrot.slane %v1699, 4
        %v1701 = vadd.f32 %v1699, %v1700
        %v1702 = vrot.slane %v1701, 2
        %v1703 = vadd.f32 %v1701, %v1702
        %v1704 = vrot.slane %v1703, 1
        %v1705 = vadd.f32 %v1703, %v1704
        %v1706 = vsel %vm292, %v1676, 0.0
        %v1707 = vsel %vm292, %v1677, 0.0
        %v1708 = vadd.f32 %v1706, %v1707
        %v1709 = vrot.slane %v1708, 4
        %v1710 = vadd.f32 %v1708, %v1709
        %v1711 = vrot.slane %v1710, 2
        %v1712 = vadd.f32 %v1710, %v1711
        %v1713 = vrot.slane %v1712, 1
        %v1714 = vadd.f32 %v1712, %v1713
        %v1715 = vsel %vm292, %v1678, 0.0
        %v1716 = vsel %vm292, %v1679, 0.0
        %v1717 = vadd.f32 %v1715, %v1716
        %v1718 = vrot.slane %v1717, 4
        %v1719 = vadd.f32 %v1717, %v1718
        %v1720 = vrot.slane %v1719, 2
        %v1721 = vadd.f32 %v1719, %v1720
        %v1722 = vrot.slane %v1721, 1
        %v1723 = vadd.f32 %v1721, %v1722
        %v1724 = vsel %vm292, %v1680, 0.0
        %v1725 = vsel %vm292, %v1681, 0.0
        %v1726 = vadd.f32 %v1724, %v1725
        %v1727 = vrot.slane %v1726, 4
        %v1728 = vadd.f32 %v1726, %v1727
        %v1729 = vrot.slane %v1728, 2
        %v1730 = vadd.f32 %v1728, %v1729
        %v1731 = vrot.slane %v1730, 1
        %v1732 = vadd.f32 %v1730, %v1731
        %v1733 = vsel %vm292, %v1682, 0.0
        %v1734 = vsel %vm292, %v1683, 0.0
        %v1735 = vadd.f32 %v1733, %v1734
        %v1736 = vrot.slane %v1735, 4
        %v1737 = vadd.f32 %v1735, %v1736
        %v1738 = vrot.slane %v1737, 2
        %v1739 = vadd.f32 %v1737, %v1738
        %v1740 = vrot.slane %v1739, 1
        %v1741 = vadd.f32 %v1739, %v1740
        %v1742 = vsel %vm292, %v1684, 0.0
        %v1743 = vsel %vm292, %v1685, 0.0
        %v1744 = vadd.f32 %v1742, %v1743
        %v1745 = vrot.slane %v1744, 4
        %v1746 = vadd.f32 %v1744, %v1745
        %v1747 = vrot.slane %v1746, 2
        %v1748 = vadd.f32 %v1746, %v1747
        %v1749 = vrot.slane %v1748, 1
        %v1750 = vadd.f32 %v1748, %v1749
        %v1751 = vsel %vm292, %v1686, 0.0
        %v1752 = vsel %vm292, %v1687, 0.0
        %v1753 = vadd.f32 %v1751, %v1752
        %v1754 = vrot.slane %v1753, 4
        %v1755 = vadd.f32 %v1753, %v1754
        %v1756 = vrot.slane %v1755, 2
        %v1757 = vadd.f32 %v1755, %v1756
        %v1758 = vrot.slane %v1757, 1
        %v1759 = vadd.f32 %v1757, %v1758
        %v1768 = vsel %vm433, %v1705, %v1696
        %v1769 = vsel %vm435, %v1714, %v1768
        %v1770 = vsel %vm437, %v1723, %v1769
        %v1771 = vsel %vm439, %v1732, %v1770
        %v1772 = vsel %vm441, %v1741, %v1771
        %v1773 = vsel %vm443, %v1750, %v1772
        %v1774 = vsel %vm445, %v1759, %v1773
        %1776 = vrot.lane.b32.xlu0 %v1028, 64
        %v1777 = vpop.permute.xlu0 %1776
        %v1779 = vsel %vm292, %v1774, %v1777
        %v1781 = vsel %vm931, %v1779, 0
        %1783 = vmatprep.subr.mxu0 0.0
        %1784 = vmatpush1.msra.mxu0 %v261
        %1785 = vmatprep.subr.mxu0 0.0
        %1786 = vmatpush1.msra.mxu0 %v262
        %1787 = vmatprep.subr.mxu0 0.0
        %1788 = vmatpush1.msra.mxu0 %v263
        %1789 = vmatprep.subr.mxu0 0.0
        %1790 = vmatpush1.msra.mxu0 %v264
        %1791 = vmatprep.subr.mxu0 0.0
        %1792 = vmatpush1.msra.mxu0 %v265
        %1793 = vmatprep.subr.mxu0 0.0
        %1794 = vmatpush1.msra.mxu0 %v266
        %1795 = vmatprep.subr.mxu0 0.0
        %1796 = vmatpush1.msra.mxu0 %v267
        %1797 = vmatprep.subr.mxu0 0.0
        %1798 = vmatpush1.msra.mxu0 %v268
        %1799 = vmatprep.subr.mxu0 0.0
        %1800 = vmatpush1.msra.mxu0 0.0
        %1801 = vmatprep.subr.mxu0 0.0
        %1802 = vmatpush1.msra.mxu0 0.0
        %1803 = vmatprep.subr.mxu0 0.0
        %1804 = vmatpush1.msra.mxu0 0.0
        %1805 = vmatprep.subr.mxu0 0.0
        %1806 = vmatpush1.msra.mxu0 0.0
        %1807 = vmatprep.subr.mxu0 0.0
        %1808 = vmatpush1.msra.mxu0 0.0
        %1809 = vmatprep.subr.mxu0 0.0
        %1810 = vmatpush1.msra.mxu0 0.0
        %1811 = vmatprep.subr.mxu0 0.0
        %1812 = vmatpush1.msra.mxu0 0.0
        %1813 = vmatprep.subr.mxu0 0.0
        %1814 = vmatpush1.msra.mxu0 0.0
        %1815 = vmatprep.subr.mxu0 0.0
        %1816 = vmatpush1.msra.mxu0 0.0
        %1817 = vmatprep.subr.mxu0 0.0
        %1818 = vmatpush1.msra.mxu0 0.0
        %1819 = vmatprep.subr.mxu0 0.0
        %1820 = vmatpush1.msra.mxu0 0.0
        %1821 = vmatprep.subr.mxu0 0.0
        %1822 = vmatpush1.msra.mxu0 0.0
        %1823 = vmatprep.subr.mxu0 0.0
        %1824 = vmatpush1.msra.mxu0 0.0
        %1825 = vmatprep.subr.mxu0 0.0
        %1826 = vmatpush1.msra.mxu0 0.0
        %1827 = vmatprep.subr.mxu0 0.0
        %1828 = vmatpush1.msra.mxu0 0.0
        %1829 = vmatprep.subr.mxu0 0.0
        %1830 = vmatpush1.msra.mxu0 0.0
        %1831 = vmatprep.subr.mxu0 0.0
        %1832 = vmatpush1.msra.mxu0 0.0
        %1833 = vmatprep.subr.mxu0 0.0
        %1834 = vmatpush1.msra.mxu0 0.0
        %1835 = vmatprep.subr.mxu0 0.0
        %1836 = vmatpush1.msra.mxu0 0.0
        %1837 = vmatprep.subr.mxu0 0.0
        %1838 = vmatpush1.msra.mxu0 0.0
        %1839 = vmatprep.subr.mxu0 0.0
        %1840 = vmatpush1.msra.mxu0 0.0
        %1841 = vmatprep.subr.mxu0 0.0
        %1842 = vmatpush1.msra.mxu0 0.0
        %1843 = vmatprep.subr.mxu0 0.0
        %1844 = vmatpush1.msra.mxu0 0.0
        %1845 = vmatprep.subr.mxu0 0.0
        %1846 = vmatpush1.msra.mxu0 0.0
        %1847 = vmatprep.mubr.f32.mxu0 0.0
        %1848 = vmatmul.mubr.f32.gmra.mrb[0].mxu0 %v1781
        %v1849 = vpop.f32.mrb[0].mxu0
        %v1850 = vadd.f32 %v274, %v1849
        %v1851 = vpop.f32.mrb[0].mxu0
        %1852 = vdwg.mxu0
        %v1853 = vxor.u32 %v1850, 2147483648
        %v1854 = vmul.f32 %v1853, 1.442695
        %v1855 = vpow.pop %v1854
        %v1856 = vadd.f32 %v1855, 1.0
        %v1857 = vrcp.pop %v1856
        %v1858 = vmul.f32 1.0, %v1857
        %v1859 = vtanh.pop %v1850
        %v1860 = vmul.f32 %v1858, %v1022
        %1862 = vrot.lane.b32.xlu0 %v1859, 64
        %v1863 = vpop.permute.xlu0 %1862
        %v1865 = vmul.f32 %v1858, %v1863
        %1867 = vrot.lane.b32.xlu0 %v1865, 32
        %v1868 = vpop.permute.xlu0 %1867
        %v1870 = vadd.f32 %v1860, %v1868
        %v1871 = vtanh.pop %v1870
        %1873 = vrot.lane.b32.xlu0 %v1871, 64
        %v1874 = vpop.permute.xlu0 %1873
        %v1876 = vmul.f32 %v1858, %v1874
        %v1878 = vcombine.high %v1876, %v1876
        %v1880 = vunpack.c.l.s4 1966171168
        %v1881 = vunpack.c.0.s8 %v1880
        %v1882 = vlaneseq
        %v1883 = vshrl.u32 %v1882, 7
        %v1884 = vsub.s32 %v1881, %v1883
        %v1885 = vrot.slane %v1876, %v1884
        %v1887 = vunpack.c.l.s4 1966171168
        %v1888 = vunpack.c.0.s8 %v1887
        %v1889 = vlaneseq
        %v1890 = vshrl.u32 %v1889, 7
        %v1891 = vsub.s32 %v1888, %v1890
        %v1892 = vrot.slane %v1878, %v1891
        %v1893 = vcombine.high %v1885, %v1885
        %v1894 = vcombine.high %v1892, %v1892
        %v1896 = vunpack.c.l.s4 1966171168
        %v1897 = vunpack.c.0.s8 %v1896
        %v1898 = vlaneseq
        %v1899 = vshrl.u32 %v1898, 7
        %v1900 = vsub.s32 %v1897, %v1899
        %v1901 = vrot.slane %v1885, %v1900
        %v1903 = vunpack.c.l.s4 1966171168
        %v1904 = vunpack.c.0.s8 %v1903
        %v1905 = vlaneseq
        %v1906 = vshrl.u32 %v1905, 7
        %v1907 = vsub.s32 %v1904, %v1906
        %v1908 = vrot.slane %v1892, %v1907
        %v1910 = vunpack.c.l.s4 1966171168
        %v1911 = vunpack.c.0.s8 %v1910
        %v1912 = vlaneseq
        %v1913 = vshrl.u32 %v1912, 7
        %v1914 = vsub.s32 %v1911, %v1913
        %v1915 = vrot.slane %v1893, %v1914
        %v1917 = vunpack.c.l.s4 1966171168
        %v1918 = vunpack.c.0.s8 %v1917
        %v1919 = vlaneseq
        %v1920 = vshrl.u32 %v1919, 7
        %v1921 = vsub.s32 %v1918, %v1920
        %v1922 = vrot.slane %v1894, %v1921
        %v1923 = vcombine.high %v1901, %v1901
        %v1924 = vcombine.high %v1908, %v1908
        %v1925 = vcombine.high %v1915, %v1915
        %v1926 = vcombine.high %v1922, %v1922
        %v1927 = vlaneseq
        %v1928 = vshrl.u32 %v1927, 7
        %v1929 = vsub.s32 0, %v1928
        %v1930 = vrot.slane %v1901, %v1929
        %v1931 = vlaneseq
        %v1932 = vshrl.u32 %v1931, 7
        %v1933 = vsub.s32 0, %v1932
        %v1934 = vrot.slane %v1915, %v1933
        %v1935 = vlaneseq
        %v1936 = vshrl.u32 %v1935, 7
        %v1937 = vsub.s32 0, %v1936
        %v1938 = vrot.slane %v1923, %v1937
        %v1939 = vlaneseq
        %v1940 = vshrl.u32 %v1939, 7
        %v1941 = vsub.s32 0, %v1940
        %v1942 = vrot.slane %v1925, %v1941
        %v1943 = vlaneseq
        %v1944 = vshrl.u32 %v1943, 7
        %v1945 = vsub.s32 0, %v1944
        %v1946 = vrot.slane %v1908, %v1945
        %v1947 = vlaneseq
        %v1948 = vshrl.u32 %v1947, 7
        %v1949 = vsub.s32 0, %v1948
        %v1950 = vrot.slane %v1922, %v1949
        %v1951 = vlaneseq
        %v1952 = vshrl.u32 %v1951, 7
        %v1953 = vsub.s32 0, %v1952
        %v1954 = vrot.slane %v1924, %v1953
        %v1955 = vlaneseq
        %v1956 = vshrl.u32 %v1955, 7
        %v1957 = vsub.s32 0, %v1956
        %v1958 = vrot.slane %v1926, %v1957
        %1959 = vrot.lane.b32.xlu0 %v1930, 32
        %v1960 = vpop.permute.xlu0 %1959
        %1961 = vrot.lane.b32.xlu0 %v1934, 32
        %v1962 = vpop.permute.xlu0 %1961
        %1963 = vrot.lane.b32.xlu0 %v1938, 32
        %v1964 = vpop.permute.xlu0 %1963
        %1965 = vrot.lane.b32.xlu0 %v1942, 32
        %v1966 = vpop.permute.xlu0 %1965
        %1967 = vrot.lane.b32.xlu0 %v1946, 32
        %v1968 = vpop.permute.xlu0 %1967
        %1969 = vrot.lane.b32.xlu0 %v1950, 32
        %v1970 = vpop.permute.xlu0 %1969
        %1971 = vrot.lane.b32.xlu0 %v1954, 32
        %v1972 = vpop.permute.xlu0 %1971
        %1973 = vrot.lane.b32.xlu0 %v1958, 32
        %v1974 = vpop.permute.xlu0 %1973
        %v1983 = vmul.f32 %v245, %v1960
        %v1984 = vmul.f32 %v246, %v1960
        %v1985 = vmul.f32 %v247, %v1962
        %v1986 = vmul.f32 %v248, %v1962
        %v1987 = vmul.f32 %v249, %v1964
        %v1988 = vmul.f32 %v250, %v1964
        %v1989 = vmul.f32 %v251, %v1966
        %v1990 = vmul.f32 %v252, %v1966
        %v1991 = vmul.f32 %v253, %v1968
        %v1992 = vmul.f32 %v254, %v1968
        %v1993 = vmul.f32 %v255, %v1970
        %v1994 = vmul.f32 %v256, %v1970
        %v1995 = vmul.f32 %v257, %v1972
        %v1996 = vmul.f32 %v258, %v1972
        %v1997 = vmul.f32 %v259, %v1974
        %v1998 = vmul.f32 %v260, %v1974
        %v1999 = vsel %vm292, %v1983, 0.0
        %2000 = vadd.xlane.f32.xlu0 %v1999
        %v2001 = vpop.xlane.xlu0 %2000
        %v2002 = vsel %vm292, %v1984, 0.0
        %2003 = vadd.xlane.f32.xlu0 %v2002
        %v2004 = vpop.xlane.xlu0 %2003
        %v2005 = vsel %vm292, %v1985, 0.0
        %2006 = vadd.xlane.f32.xlu0 %v2005
        %v2007 = vpop.xlane.xlu0 %2006
        %v2008 = vsel %vm292, %v1986, 0.0
        %2009 = vadd.xlane.f32.xlu0 %v2008
        %v2010 = vpop.xlane.xlu0 %2009
        %v2011 = vsel %vm292, %v1987, 0.0
        %2012 = vadd.xlane.f32.xlu0 %v2011
        %v2013 = vpop.xlane.xlu0 %2012
        %v2014 = vsel %vm292, %v1988, 0.0
        %2015 = vadd.xlane.f32.xlu0 %v2014
        %v2016 = vpop.xlane.xlu0 %2015
        %v2017 = vsel %vm292, %v1989, 0.0
        %2018 = vadd.xlane.f32.xlu0 %v2017
        %v2019 = vpop.xlane.xlu0 %2018
        %v2020 = vsel %vm292, %v1990, 0.0
        %2021 = vadd.xlane.f32.xlu0 %v2020
        %v2022 = vpop.xlane.xlu0 %2021
        %v2023 = vsel %vm292, %v1991, 0.0
        %2024 = vadd.xlane.f32.xlu0 %v2023
        %v2025 = vpop.xlane.xlu0 %2024
        %v2026 = vsel %vm292, %v1992, 0.0
        %2027 = vadd.xlane.f32.xlu0 %v2026
        %v2028 = vpop.xlane.xlu0 %2027
        %v2029 = vsel %vm292, %v1993, 0.0
        %2030 = vadd.xlane.f32.xlu0 %v2029
        %v2031 = vpop.xlane.xlu0 %2030
        %v2032 = vsel %vm292, %v1994, 0.0
        %2033 = vadd.xlane.f32.xlu0 %v2032
        %v2034 = vpop.xlane.xlu0 %2033
        %v2035 = vsel %vm292, %v1995, 0.0
        %2036 = vadd.xlane.f32.xlu0 %v2035
        %v2037 = vpop.xlane.xlu0 %2036
        %v2038 = vsel %vm292, %v1996, 0.0
        %2039 = vadd.xlane.f32.xlu0 %v2038
        %v2040 = vpop.xlane.xlu0 %2039
        %v2041 = vsel %vm292, %v1997, 0.0
        %2042 = vadd.xlane.f32.xlu0 %v2041
        %v2043 = vpop.xlane.xlu0 %2042
        %v2044 = vsel %vm292, %v1998, 0.0
        %2045 = vadd.xlane.f32.xlu0 %v2044
        %v2046 = vpop.xlane.xlu0 %2045
        %v2063 = vlaneseq
        %v2064 = vshrl.u32 %v2063, 7
        %v2065 = vsub.s32 %v358, %v2064
        %v2066 = vrot.slane %v2001, %v2065
        %v2067 = vlaneseq
        %v2068 = vshrl.u32 %v2067, 7
        %v2069 = vsub.s32 %v363, %v2068
        %v2070 = vrot.slane %v2004, %v2069
        %v2071 = vsel %vm368, %v2070, %v2066
        %v2072 = vlaneseq
        %v2073 = vshrl.u32 %v2072, 7
        %v2074 = vsub.s32 %v358, %v2073
        %v2075 = vrot.slane %v2007, %v2074
        %v2076 = vlaneseq
        %v2077 = vshrl.u32 %v2076, 7
        %v2078 = vsub.s32 %v363, %v2077
        %v2079 = vrot.slane %v2010, %v2078
        %v2080 = vsel %vm368, %v2079, %v2075
        %v2081 = vlaneseq
        %v2082 = vshrl.u32 %v2081, 7
        %v2083 = vsub.s32 %v358, %v2082
        %v2084 = vrot.slane %v2013, %v2083
        %v2085 = vlaneseq
        %v2086 = vshrl.u32 %v2085, 7
        %v2087 = vsub.s32 %v363, %v2086
        %v2088 = vrot.slane %v2016, %v2087
        %v2089 = vsel %vm368, %v2088, %v2084
        %v2090 = vlaneseq
        %v2091 = vshrl.u32 %v2090, 7
        %v2092 = vsub.s32 %v358, %v2091
        %v2093 = vrot.slane %v2019, %v2092
        %v2094 = vlaneseq
        %v2095 = vshrl.u32 %v2094, 7
        %v2096 = vsub.s32 %v363, %v2095
        %v2097 = vrot.slane %v2022, %v2096
        %v2098 = vsel %vm368, %v2097, %v2093
        %v2099 = vlaneseq
        %v2100 = vshrl.u32 %v2099, 7
        %v2101 = vsub.s32 %v358, %v2100
        %v2102 = vrot.slane %v2025, %v2101
        %v2103 = vlaneseq
        %v2104 = vshrl.u32 %v2103, 7
        %v2105 = vsub.s32 %v363, %v2104
        %v2106 = vrot.slane %v2028, %v2105
        %v2107 = vsel %vm368, %v2106, %v2102
        %v2108 = vlaneseq
        %v2109 = vshrl.u32 %v2108, 7
        %v2110 = vsub.s32 %v358, %v2109
        %v2111 = vrot.slane %v2031, %v2110
        %v2112 = vlaneseq
        %v2113 = vshrl.u32 %v2112, 7
        %v2114 = vsub.s32 %v363, %v2113
        %v2115 = vrot.slane %v2034, %v2114
        %v2116 = vsel %vm368, %v2115, %v2111
        %v2117 = vlaneseq
        %v2118 = vshrl.u32 %v2117, 7
        %v2119 = vsub.s32 %v358, %v2118
        %v2120 = vrot.slane %v2037, %v2119
        %v2121 = vlaneseq
        %v2122 = vshrl.u32 %v2121, 7
        %v2123 = vsub.s32 %v363, %v2122
        %v2124 = vrot.slane %v2040, %v2123
        %v2125 = vsel %vm368, %v2124, %v2120
        %v2126 = vlaneseq
        %v2127 = vshrl.u32 %v2126, 7
        %v2128 = vsub.s32 %v358, %v2127
        %v2129 = vrot.slane %v2043, %v2128
        %v2130 = vlaneseq
        %v2131 = vshrl.u32 %v2130, 7
        %v2132 = vsub.s32 %v363, %v2131
        %v2133 = vrot.slane %v2046, %v2132
        %v2134 = vsel %vm368, %v2133, %v2129
        %v2135 = vsel %vm433, %v2080, %v2071
        %v2136 = vsel %vm435, %v2089, %v2135
        %v2137 = vsel %vm437, %v2098, %v2136
        %v2138 = vsel %vm439, %v2107, %v2137
        %v2139 = vsel %vm441, %v2116, %v2138
        %v2140 = vsel %vm443, %v2125, %v2139
        %v2141 = vsel %vm445, %v2134, %v2140
        %v2143 = vsel %vm448, %v2141, -inf
        %2144 = vmax.xlane.f32.xlu0 %v2143
        %v2145 = vpop.xlane.xlu0 %2144
        %v2147 = vlaneseq
        %v2148 = vshrl.u32 %v2147, 7
        %v2149 = vsub.s32 0, %v2148
        %v2150 = vrot.slane %v2145, %v2149
        %v2151 = vlaneseq
        %v2152 = vshrl.u32 %v2151, 7
        %v2153 = vsub.s32 1, %v2152
        %v2154 = vrot.slane %v2145, %v2153
        %v2155 = vlaneseq
        %v2156 = vshrl.u32 %v2155, 7
        %v2157 = vsub.s32 2, %v2156
        %v2158 = vrot.slane %v2145, %v2157
        %v2159 = vlaneseq
        %v2160 = vshrl.u32 %v2159, 7
        %v2161 = vsub.s32 3, %v2160
        %v2162 = vrot.slane %v2145, %v2161
        %v2163 = vlaneseq
        %v2164 = vshrl.u32 %v2163, 7
        %v2165 = vsub.s32 4, %v2164
        %v2166 = vrot.slane %v2145, %v2165
        %v2167 = vlaneseq
        %v2168 = vshrl.u32 %v2167, 7
        %v2169 = vsub.s32 5, %v2168
        %v2170 = vrot.slane %v2145, %v2169
        %v2171 = vlaneseq
        %v2172 = vshrl.u32 %v2171, 7
        %v2173 = vsub.s32 6, %v2172
        %v2174 = vrot.slane %v2145, %v2173
        %v2175 = vlaneseq
        %v2176 = vshrl.u32 %v2175, 7
        %v2177 = vsub.s32 7, %v2176
        %v2178 = vrot.slane %v2145, %v2177
        %v2187 = vsub.f32 %v2001, %v2150
        %v2188 = vsub.f32 %v2004, %v2150
        %v2189 = vsub.f32 %v2007, %v2154
        %v2190 = vsub.f32 %v2010, %v2154
        %v2191 = vsub.f32 %v2013, %v2158
        %v2192 = vsub.f32 %v2016, %v2158
        %v2193 = vsub.f32 %v2019, %v2162
        %v2194 = vsub.f32 %v2022, %v2162
        %v2195 = vsub.f32 %v2025, %v2166
        %v2196 = vsub.f32 %v2028, %v2166
        %v2197 = vsub.f32 %v2031, %v2170
        %v2198 = vsub.f32 %v2034, %v2170
        %v2199 = vsub.f32 %v2037, %v2174
        %v2200 = vsub.f32 %v2040, %v2174
        %v2201 = vsub.f32 %v2043, %v2178
        %v2202 = vsub.f32 %v2046, %v2178
        %v2203 = vmul.f32 %v2187, 1.442695
        %v2204 = vpow.pop %v2203
        %v2205 = vmul.f32 %v2188, 1.442695
        %v2206 = vpow.pop %v2205
        %v2207 = vmul.f32 %v2189, 1.442695
        %v2208 = vpow.pop %v2207
        %v2209 = vmul.f32 %v2190, 1.442695
        %v2210 = vpow.pop %v2209
        %v2211 = vmul.f32 %v2191, 1.442695
        %v2212 = vpow.pop %v2211
        %v2213 = vmul.f32 %v2192, 1.442695
        %v2214 = vpow.pop %v2213
        %v2215 = vmul.f32 %v2193, 1.442695
        %v2216 = vpow.pop %v2215
        %v2217 = vmul.f32 %v2194, 1.442695
        %v2218 = vpow.pop %v2217
        %v2219 = vmul.f32 %v2195, 1.442695
        %v2220 = vpow.pop %v2219
        %v2221 = vmul.f32 %v2196, 1.442695
        %v2222 = vpow.pop %v2221
        %v2223 = vmul.f32 %v2197, 1.442695
        %v2224 = vpow.pop %v2223
        %v2225 = vmul.f32 %v2198, 1.442695
        %v2226 = vpow.pop %v2225
        %v2227 = vmul.f32 %v2199, 1.442695
        %v2228 = vpow.pop %v2227
        %v2229 = vmul.f32 %v2200, 1.442695
        %v2230 = vpow.pop %v2229
        %v2231 = vmul.f32 %v2201, 1.442695
        %v2232 = vpow.pop %v2231
        %v2233 = vmul.f32 %v2202, 1.442695
        %v2234 = vpow.pop %v2233
        %2251 = vset.pattern.permute.xlu0 0
        %2252 = vperm.xlu0 %2251, %v2204
        %v2253 = vpop.permute.xlu0 %2252
        %2254 = vset.pattern.permute.xlu0 0
        %2255 = vperm.xlu0 %2254, %v2206
        %v2256 = vpop.permute.xlu0 %2255
        %2257 = vset.pattern.permute.xlu0 0
        %2258 = vperm.xlu0 %2257, %v2208
        %v2259 = vpop.permute.xlu0 %2258
        %2260 = vset.pattern.permute.xlu0 0
        %2261 = vperm.xlu0 %2260, %v2210
        %v2262 = vpop.permute.xlu0 %2261
        %2263 = vset.pattern.permute.xlu0 0
        %2264 = vperm.xlu0 %2263, %v2212
        %v2265 = vpop.permute.xlu0 %2264
        %2266 = vset.pattern.permute.xlu0 0
        %2267 = vperm.xlu0 %2266, %v2214
        %v2268 = vpop.permute.xlu0 %2267
        %2269 = vset.pattern.permute.xlu0 0
        %2270 = vperm.xlu0 %2269, %v2216
        %v2271 = vpop.permute.xlu0 %2270
        %2272 = vset.pattern.permute.xlu0 0
        %2273 = vperm.xlu0 %2272, %v2218
        %v2274 = vpop.permute.xlu0 %2273
        %2275 = vset.pattern.permute.xlu0 0
        %2276 = vperm.xlu0 %2275, %v2220
        %v2277 = vpop.permute.xlu0 %2276
        %2278 = vset.pattern.permute.xlu0 0
        %2279 = vperm.xlu0 %2278, %v2222
        %v2280 = vpop.permute.xlu0 %2279
        %2281 = vset.pattern.permute.xlu0 0
        %2282 = vperm.xlu0 %2281, %v2224
        %v2283 = vpop.permute.xlu0 %2282
        %2284 = vset.pattern.permute.xlu0 0
        %2285 = vperm.xlu0 %2284, %v2226
        %v2286 = vpop.permute.xlu0 %2285
        %2287 = vset.pattern.permute.xlu0 0
        %2288 = vperm.xlu0 %2287, %v2228
        %v2289 = vpop.permute.xlu0 %2288
        %2290 = vset.pattern.permute.xlu0 0
        %2291 = vperm.xlu0 %2290, %v2230
        %v2292 = vpop.permute.xlu0 %2291
        %2293 = vset.pattern.permute.xlu0 0
        %2294 = vperm.xlu0 %2293, %v2232
        %v2295 = vpop.permute.xlu0 %2294
        %2296 = vset.pattern.permute.xlu0 0
        %2297 = vperm.xlu0 %2296, %v2234
        %v2298 = vpop.permute.xlu0 %2297
        %v2299 = vlaneseq
        %v2300 = vshrl.u32 %v2299, 7
        %v2301 = vsub.s32 %v358, %v2300
        %v2302 = vrot.slane %v2253, %v2301
        %v2303 = vlaneseq
        %v2304 = vshrl.u32 %v2303, 7
        %v2305 = vsub.s32 %v363, %v2304
        %v2306 = vrot.slane %v2256, %v2305
        %v2307 = vsel %vm368, %v2306, %v2302
        %v2308 = vlaneseq
        %v2309 = vshrl.u32 %v2308, 7
        %v2310 = vsub.s32 %v358, %v2309
        %v2311 = vrot.slane %v2259, %v2310
        %v2312 = vlaneseq
        %v2313 = vshrl.u32 %v2312, 7
        %v2314 = vsub.s32 %v363, %v2313
        %v2315 = vrot.slane %v2262, %v2314
        %v2316 = vsel %vm368, %v2315, %v2311
        %v2317 = vlaneseq
        %v2318 = vshrl.u32 %v2317, 7
        %v2319 = vsub.s32 %v358, %v2318
        %v2320 = vrot.slane %v2265, %v2319
        %v2321 = vlaneseq
        %v2322 = vshrl.u32 %v2321, 7
        %v2323 = vsub.s32 %v363, %v2322
        %v2324 = vrot.slane %v2268, %v2323
        %v2325 = vsel %vm368, %v2324, %v2320
        %v2326 = vlaneseq
        %v2327 = vshrl.u32 %v2326, 7
        %v2328 = vsub.s32 %v358, %v2327
        %v2329 = vrot.slane %v2271, %v2328
        %v2330 = vlaneseq
        %v2331 = vshrl.u32 %v2330, 7
        %v2332 = vsub.s32 %v363, %v2331
        %v2333 = vrot.slane %v2274, %v2332
        %v2334 = vsel %vm368, %v2333, %v2329
        %v2335 = vlaneseq
        %v2336 = vshrl.u32 %v2335, 7
        %v2337 = vsub.s32 %v358, %v2336
        %v2338 = vrot.slane %v2277, %v2337
        %v2339 = vlaneseq
        %v2340 = vshrl.u32 %v2339, 7
        %v2341 = vsub.s32 %v363, %v2340
        %v2342 = vrot.slane %v2280, %v2341
        %v2343 = vsel %vm368, %v2342, %v2338
        %v2344 = vlaneseq
        %v2345 = vshrl.u32 %v2344, 7
        %v2346 = vsub.s32 %v358, %v2345
        %v2347 = vrot.slane %v2283, %v2346
        %v2348 = vlaneseq
        %v2349 = vshrl.u32 %v2348, 7
        %v2350 = vsub.s32 %v363, %v2349
        %v2351 = vrot.slane %v2286, %v2350
        %v2352 = vsel %vm368, %v2351, %v2347
        %v2353 = vlaneseq
        %v2354 = vshrl.u32 %v2353, 7
        %v2355 = vsub.s32 %v358, %v2354
        %v2356 = vrot.slane %v2289, %v2355
        %v2357 = vlaneseq
        %v2358 = vshrl.u32 %v2357, 7
        %v2359 = vsub.s32 %v363, %v2358
        %v2360 = vrot.slane %v2292, %v2359
        %v2361 = vsel %vm368, %v2360, %v2356
        %v2362 = vlaneseq
        %v2363 = vshrl.u32 %v2362, 7
        %v2364 = vsub.s32 %v358, %v2363
        %v2365 = vrot.slane %v2295, %v2364
        %v2366 = vlaneseq
        %v2367 = vshrl.u32 %v2366, 7
        %v2368 = vsub.s32 %v363, %v2367
        %v2369 = vrot.slane %v2298, %v2368
        %v2370 = vsel %vm368, %v2369, %v2365
        %v2371 = vsel %vm433, %v2316, %v2307
        %v2372 = vsel %vm435, %v2325, %v2371
        %v2373 = vsel %vm437, %v2334, %v2372
        %v2374 = vsel %vm439, %v2343, %v2373
        %v2375 = vsel %vm441, %v2352, %v2374
        %v2376 = vsel %vm443, %v2361, %v2375
        %v2377 = vsel %vm445, %v2370, %v2376
        %v2379 = vsel %vm448, %v2377, 0.0
        %2380 = vadd.xlane.f32.xlu0 %v2379
        %v2381 = vpop.xlane.xlu0 %2380
        %v2382 = vrcp.pop %v2381
        %v2384 = vlaneseq
        %v2385 = vshrl.u32 %v2384, 7
        %v2386 = vsub.s32 0, %v2385
        %v2387 = vrot.slane %v2382, %v2386
        %v2388 = vlaneseq
        %v2389 = vshrl.u32 %v2388, 7
        %v2390 = vsub.s32 1, %v2389
        %v2391 = vrot.slane %v2382, %v2390
        %v2392 = vlaneseq
        %v2393 = vshrl.u32 %v2392, 7
        %v2394 = vsub.s32 2, %v2393
        %v2395 = vrot.slane %v2382, %v2394
        %v2396 = vlaneseq
        %v2397 = vshrl.u32 %v2396, 7
        %v2398 = vsub.s32 3, %v2397
        %v2399 = vrot.slane %v2382, %v2398
        %v2400 = vlaneseq
        %v2401 = vshrl.u32 %v2400, 7
        %v2402 = vsub.s32 4, %v2401
        %v2403 = vrot.slane %v2382, %v2402
        %v2404 = vlaneseq
        %v2405 = vshrl.u32 %v2404, 7
        %v2406 = vsub.s32 5, %v2405
        %v2407 = vrot.slane %v2382, %v2406
        %v2408 = vlaneseq
        %v2409 = vshrl.u32 %v2408, 7
        %v2410 = vsub.s32 6, %v2409
        %v2411 = vrot.slane %v2382, %v2410
        %v2412 = vlaneseq
        %v2413 = vshrl.u32 %v2412, 7
        %v2414 = vsub.s32 7, %v2413
        %v2415 = vrot.slane %v2382, %v2414
        %v2424 = vmul.f32 %v2204, %v2387
        %v2425 = vmul.f32 %v2206, %v2387
        %v2426 = vmul.f32 %v2208, %v2391
        %v2427 = vmul.f32 %v2210, %v2391
        %v2428 = vmul.f32 %v2212, %v2395
        %v2429 = vmul.f32 %v2214, %v2395
        %v2430 = vmul.f32 %v2216, %v2399
        %v2431 = vmul.f32 %v2218, %v2399
        %v2432 = vmul.f32 %v2220, %v2403
        %v2433 = vmul.f32 %v2222, %v2403
        %v2434 = vmul.f32 %v2224, %v2407
        %v2435 = vmul.f32 %v2226, %v2407
        %v2436 = vmul.f32 %v2228, %v2411
        %v2437 = vmul.f32 %v2230, %v2411
        %v2438 = vmul.f32 %v2232, %v2415
        %v2439 = vmul.f32 %v2234, %v2415
        %2441 = vset.pattern.permute.xlu0 0
        %2442 = vperm.xlu0 %2441, %v2424
        %v2443 = vpop.permute.xlu0 %2442
        %2446 = vset.pattern.permute.xlu0 0
        %2447 = vperm.xlu0 %2446, %v2425
        %v2448 = vpop.permute.xlu0 %2447
        %2451 = vset.pattern.permute.xlu0 0
        %2452 = vperm.xlu0 %2451, %v2426
        %v2453 = vpop.permute.xlu0 %2452
        %2456 = vset.pattern.permute.xlu0 0
        %2457 = vperm.xlu0 %2456, %v2427
        %v2458 = vpop.permute.xlu0 %2457
        %2461 = vset.pattern.permute.xlu0 0
        %2462 = vperm.xlu0 %2461, %v2428
        %v2463 = vpop.permute.xlu0 %2462
        %2466 = vset.pattern.permute.xlu0 0
        %2467 = vperm.xlu0 %2466, %v2429
        %v2468 = vpop.permute.xlu0 %2467
        %2471 = vset.pattern.permute.xlu0 0
        %2472 = vperm.xlu0 %2471, %v2430
        %v2473 = vpop.permute.xlu0 %2472
        %2476 = vset.pattern.permute.xlu0 0
        %2477 = vperm.xlu0 %2476, %v2431
        %v2478 = vpop.permute.xlu0 %2477
        %2481 = vset.pattern.permute.xlu0 0
        %2482 = vperm.xlu0 %2481, %v2432
        %v2483 = vpop.permute.xlu0 %2482
        %2486 = vset.pattern.permute.xlu0 0
        %2487 = vperm.xlu0 %2486, %v2433
        %v2488 = vpop.permute.xlu0 %2487
        %2491 = vset.pattern.permute.xlu0 0
        %2492 = vperm.xlu0 %2491, %v2434
        %v2493 = vpop.permute.xlu0 %2492
        %2496 = vset.pattern.permute.xlu0 0
        %2497 = vperm.xlu0 %2496, %v2435
        %v2498 = vpop.permute.xlu0 %2497
        %2501 = vset.pattern.permute.xlu0 0
        %2502 = vperm.xlu0 %2501, %v2436
        %v2503 = vpop.permute.xlu0 %2502
        %2506 = vset.pattern.permute.xlu0 0
        %2507 = vperm.xlu0 %2506, %v2437
        %v2508 = vpop.permute.xlu0 %2507
        %2511 = vset.pattern.permute.xlu0 0
        %2512 = vperm.xlu0 %2511, %v2438
        %v2513 = vpop.permute.xlu0 %2512
        %2516 = vset.pattern.permute.xlu0 0
        %2517 = vperm.xlu0 %2516, %v2439
        %v2518 = vpop.permute.xlu0 %2517
        %v2520 = vmul.f32 %v2443, %v245
        %v2521 = vmul.f32 %v2448, %v246
        %v2522 = vmul.f32 %v2453, %v247
        %v2523 = vmul.f32 %v2458, %v248
        %v2524 = vmul.f32 %v2463, %v249
        %v2525 = vmul.f32 %v2468, %v250
        %v2526 = vmul.f32 %v2473, %v251
        %v2527 = vmul.f32 %v2478, %v252
        %v2528 = vmul.f32 %v2483, %v253
        %v2529 = vmul.f32 %v2488, %v254
        %v2530 = vmul.f32 %v2493, %v255
        %v2531 = vmul.f32 %v2498, %v256
        %v2532 = vmul.f32 %v2503, %v257
        %v2533 = vmul.f32 %v2508, %v258
        %v2534 = vmul.f32 %v2513, %v259
        %v2535 = vmul.f32 %v2518, %v260
        %v2536 = vsel %vm292, %v2520, 0.0
        %v2537 = vsel %vm292, %v2521, 0.0
        %v2538 = vadd.f32 %v2536, %v2537
        %v2539 = vrot.slane %v2538, 4
        %v2540 = vadd.f32 %v2538, %v2539
        %v2541 = vrot.slane %v2540, 2
        %v2542 = vadd.f32 %v2540, %v2541
        %v2543 = vrot.slane %v2542, 1
        %v2544 = vadd.f32 %v2542, %v2543
        %v2545 = vsel %vm292, %v2522, 0.0
        %v2546 = vsel %vm292, %v2523, 0.0
        %v2547 = vadd.f32 %v2545, %v2546
        %v2548 = vrot.slane %v2547, 4
        %v2549 = vadd.f32 %v2547, %v2548
        %v2550 = vrot.slane %v2549, 2
        %v2551 = vadd.f32 %v2549, %v2550
        %v2552 = vrot.slane %v2551, 1
        %v2553 = vadd.f32 %v2551, %v2552
        %v2554 = vsel %vm292, %v2524, 0.0
        %v2555 = vsel %vm292, %v2525, 0.0
        %v2556 = vadd.f32 %v2554, %v2555
        %v2557 = vrot.slane %v2556, 4
        %v2558 = vadd.f32 %v2556, %v2557
        %v2559 = vrot.slane %v2558, 2
        %v2560 = vadd.f32 %v2558, %v2559
        %v2561 = vrot.slane %v2560, 1
        %v2562 = vadd.f32 %v2560, %v2561
        %v2563 = vsel %vm292, %v2526, 0.0
        %v2564 = vsel %vm292, %v2527, 0.0
        %v2565 = vadd.f32 %v2563, %v2564
        %v2566 = vrot.slane %v2565, 4
        %v2567 = vadd.f32 %v2565, %v2566
        %v2568 = vrot.slane %v2567, 2
        %v2569 = vadd.f32 %v2567, %v2568
        %v2570 = vrot.slane %v2569, 1
        %v2571 = vadd.f32 %v2569, %v2570
        %v2572 = vsel %vm292, %v2528, 0.0
        %v2573 = vsel %vm292, %v2529, 0.0
        %v2574 = vadd.f32 %v2572, %v2573
        %v2575 = vrot.slane %v2574, 4
        %v2576 = vadd.f32 %v2574, %v2575
        %v2577 = vrot.slane %v2576, 2
        %v2578 = vadd.f32 %v2576, %v2577
        %v2579 = vrot.slane %v2578, 1
        %v2580 = vadd.f32 %v2578, %v2579
        %v2581 = vsel %vm292, %v2530, 0.0
        %v2582 = vsel %vm292, %v2531, 0.0
        %v2583 = vadd.f32 %v2581, %v2582
        %v2584 = vrot.slane %v2583, 4
        %v2585 = vadd.f32 %v2583, %v2584
        %v2586 = vrot.slane %v2585, 2
        %v2587 = vadd.f32 %v2585, %v2586
        %v2588 = vrot.slane %v2587, 1
        %v2589 = vadd.f32 %v2587, %v2588
        %v2590 = vsel %vm292, %v2532, 0.0
        %v2591 = vsel %vm292, %v2533, 0.0
        %v2592 = vadd.f32 %v2590, %v2591
        %v2593 = vrot.slane %v2592, 4
        %v2594 = vadd.f32 %v2592, %v2593
        %v2595 = vrot.slane %v2594, 2
        %v2596 = vadd.f32 %v2594, %v2595
        %v2597 = vrot.slane %v2596, 1
        %v2598 = vadd.f32 %v2596, %v2597
        %v2599 = vsel %vm292, %v2534, 0.0
        %v2600 = vsel %vm292, %v2535, 0.0
        %v2601 = vadd.f32 %v2599, %v2600
        %v2602 = vrot.slane %v2601, 4
        %v2603 = vadd.f32 %v2601, %v2602
        %v2604 = vrot.slane %v2603, 2
        %v2605 = vadd.f32 %v2603, %v2604
        %v2606 = vrot.slane %v2605, 1
        %v2607 = vadd.f32 %v2605, %v2606
        %v2616 = vsel %vm433, %v2553, %v2544
        %v2617 = vsel %vm435, %v2562, %v2616
        %v2618 = vsel %vm437, %v2571, %v2617
        %v2619 = vsel %vm439, %v2580, %v2618
        %v2620 = vsel %vm441, %v2589, %v2619
        %v2621 = vsel %vm443, %v2598, %v2620
        %v2622 = vsel %vm445, %v2607, %v2621
        %2624 = vrot.lane.b32.xlu0 %v1876, 64
        %v2625 = vpop.permute.xlu0 %2624
        %v2627 = vsel %vm292, %v2622, %v2625
        %v2629 = vsel %vm931, %v2627, 0
        %2631 = vmatprep.subr.mxu0 0.0
        %2632 = vmatpush1.msra.mxu0 %v261
        %2633 = vmatprep.subr.mxu0 0.0
        %2634 = vmatpush1.msra.mxu0 %v262
        %2635 = vmatprep.subr.mxu0 0.0
        %2636 = vmatpush1.msra.mxu0 %v263
        %2637 = vmatprep.subr.mxu0 0.0
        %2638 = vmatpush1.msra.mxu0 %v264
        %2639 = vmatprep.subr.mxu0 0.0
        %2640 = vmatpush1.msra.mxu0 %v265
        %2641 = vmatprep.subr.mxu0 0.0
        %2642 = vmatpush1.msra.mxu0 %v266
        %2643 = vmatprep.subr.mxu0 0.0
        %2644 = vmatpush1.msra.mxu0 %v267
        %2645 = vmatprep.subr.mxu0 0.0
        %2646 = vmatpush1.msra.mxu0 %v268
        %2647 = vmatprep.subr.mxu0 0.0
        %2648 = vmatpush1.msra.mxu0 0.0
        %2649 = vmatprep.subr.mxu0 0.0
        %2650 = vmatpush1.msra.mxu0 0.0
        %2651 = vmatprep.subr.mxu0 0.0
        %2652 = vmatpush1.msra.mxu0 0.0
        %2653 = vmatprep.subr.mxu0 0.0
        %2654 = vmatpush1.msra.mxu0 0.0
        %2655 = vmatprep.subr.mxu0 0.0
        %2656 = vmatpush1.msra.mxu0 0.0
        %2657 = vmatprep.subr.mxu0 0.0
        %2658 = vmatpush1.msra.mxu0 0.0
        %2659 = vmatprep.subr.mxu0 0.0
        %2660 = vmatpush1.msra.mxu0 0.0
        %2661 = vmatprep.subr.mxu0 0.0
        %2662 = vmatpush1.msra.mxu0 0.0
        %2663 = vmatprep.subr.mxu0 0.0
        %2664 = vmatpush1.msra.mxu0 0.0
        %2665 = vmatprep.subr.mxu0 0.0
        %2666 = vmatpush1.msra.mxu0 0.0
        %2667 = vmatprep.subr.mxu0 0.0
        %2668 = vmatpush1.msra.mxu0 0.0
        %2669 = vmatprep.subr.mxu0 0.0
        %2670 = vmatpush1.msra.mxu0 0.0
        %2671 = vmatprep.subr.mxu0 0.0
        %2672 = vmatpush1.msra.mxu0 0.0
        %2673 = vmatprep.subr.mxu0 0.0
        %2674 = vmatpush1.msra.mxu0 0.0
        %2675 = vmatprep.subr.mxu0 0.0
        %2676 = vmatpush1.msra.mxu0 0.0
        %2677 = vmatprep.subr.mxu0 0.0
        %2678 = vmatpush1.msra.mxu0 0.0
        %2679 = vmatprep.subr.mxu0 0.0
        %2680 = vmatpush1.msra.mxu0 0.0
        %2681 = vmatprep.subr.mxu0 0.0
        %2682 = vmatpush1.msra.mxu0 0.0
        %2683 = vmatprep.subr.mxu0 0.0
        %2684 = vmatpush1.msra.mxu0 0.0
        %2685 = vmatprep.subr.mxu0 0.0
        %2686 = vmatpush1.msra.mxu0 0.0
        %2687 = vmatprep.subr.mxu0 0.0
        %2688 = vmatpush1.msra.mxu0 0.0
        %2689 = vmatprep.subr.mxu0 0.0
        %2690 = vmatpush1.msra.mxu0 0.0
        %2691 = vmatprep.subr.mxu0 0.0
        %2692 = vmatpush1.msra.mxu0 0.0
        %2693 = vmatprep.subr.mxu0 0.0
        %2694 = vmatpush1.msra.mxu0 0.0
        %2695 = vmatprep.mubr.f32.mxu0 0.0
        %2696 = vmatmul.mubr.f32.gmra.mrb[0].mxu0 %v2629
        %v2697 = vpop.f32.mrb[0].mxu0
        %v2698 = vadd.f32 %v274, %v2697
        %v2699 = vpop.f32.mrb[0].mxu0
        %2700 = vdwg.mxu0
        %v2701 = vxor.u32 %v2698, 2147483648
        %v2702 = vmul.f32 %v2701, 1.442695
        %v2703 = vpow.pop %v2702
        %v2704 = vadd.f32 %v2703, 1.0
        %v2705 = vrcp.pop %v2704
        %v2706 = vmul.f32 1.0, %v2705
        %v2707 = vtanh.pop %v2698
        %v2708 = vmul.f32 %v2706, %v1870
        %2710 = vrot.lane.b32.xlu0 %v2707, 64
        %v2711 = vpop.permute.xlu0 %2710
        %v2713 = vmul.f32 %v2706, %v2711
        %2715 = vrot.lane.b32.xlu0 %v2713, 32
        %v2716 = vpop.permute.xlu0 %2715
        %v2718 = vadd.f32 %v2708, %v2716
        %v2719 = vtanh.pop %v2718
        %2721 = vrot.lane.b32.xlu0 %v2719, 64
        %v2722 = vpop.permute.xlu0 %2721
        %v2724 = vmul.f32 %v2706, %v2722
        %v2726 = vcombine.high %v2724, %v2724
        %v2728 = vunpack.c.l.s4 1966171168
        %v2729 = vunpack.c.0.s8 %v2728
        %v2730 = vlaneseq
        %v2731 = vshrl.u32 %v2730, 7
        %v2732 = vsub.s32 %v2729, %v2731
        %v2733 = vrot.slane %v2724, %v2732
        %v2735 = vunpack.c.l.s4 1966171168
        %v2736 = vunpack.c.0.s8 %v2735
        %v2737 = vlaneseq
        %v2738 = vshrl.u32 %v2737, 7
        %v2739 = vsub.s32 %v2736, %v2738
        %v2740 = vrot.slane %v2726, %v2739
        %v2741 = vcombine.high %v2733, %v2733
        %v2742 = vcombine.high %v2740, %v2740
        %v2744 = vunpack.c.l.s4 1966171168
        %v2745 = vunpack.c.0.s8 %v2744
        %v2746 = vlaneseq
        %v2747 = vshrl.u32 %v2746, 7
        %v2748 = vsub.s32 %v2745, %v2747
        %v2749 = vrot.slane %v2733, %v2748
        %v2751 = vunpack.c.l.s4 1966171168
        %v2752 = vunpack.c.0.s8 %v2751
        %v2753 = vlaneseq
        %v2754 = vshrl.u32 %v2753, 7
        %v2755 = vsub.s32 %v2752, %v2754
        %v2756 = vrot.slane %v2740, %v2755
        %v2758 = vunpack.c.l.s4 1966171168
        %v2759 = vunpack.c.0.s8 %v2758
        %v2760 = vlaneseq
        %v2761 = vshrl.u32 %v2760, 7
        %v2762 = vsub.s32 %v2759, %v2761
        %v2763 = vrot.slane %v2741, %v2762
        %v2765 = vunpack.c.l.s4 1966171168
        %v2766 = vunpack.c.0.s8 %v2765
        %v2767 = vlaneseq
        %v2768 = vshrl.u32 %v2767, 7
        %v2769 = vsub.s32 %v2766, %v2768
        %v2770 = vrot.slane %v2742, %v2769
        %v2771 = vcombine.high %v2749, %v2749
        %v2772 = vcombine.high %v2756, %v2756
        %v2773 = vcombine.high %v2763, %v2763
        %v2774 = vcombine.high %v2770, %v2770
        %v2775 = vlaneseq
        %v2776 = vshrl.u32 %v2775, 7
        %v2777 = vsub.s32 0, %v2776
        %v2778 = vrot.slane %v2749, %v2777
        %v2779 = vlaneseq
        %v2780 = vshrl.u32 %v2779, 7
        %v2781 = vsub.s32 0, %v2780
        %v2782 = vrot.slane %v2763, %v2781
        %v2783 = vlaneseq
        %v2784 = vshrl.u32 %v2783, 7
        %v2785 = vsub.s32 0, %v2784
        %v2786 = vrot.slane %v2771, %v2785
        %v2787 = vlaneseq
        %v2788 = vshrl.u32 %v2787, 7
        %v2789 = vsub.s32 0, %v2788
        %v2790 = vrot.slane %v2773, %v2789
        %v2791 = vlaneseq
        %v2792 = vshrl.u32 %v2791, 7
        %v2793 = vsub.s32 0, %v2792
        %v2794 = vrot.slane %v2756, %v2793
        %v2795 = vlaneseq
        %v2796 = vshrl.u32 %v2795, 7
        %v2797 = vsub.s32 0, %v2796
        %v2798 = vrot.slane %v2770, %v2797
        %v2799 = vlaneseq
        %v2800 = vshrl.u32 %v2799, 7
        %v2801 = vsub.s32 0, %v2800
        %v2802 = vrot.slane %v2772, %v2801
        %v2803 = vlaneseq
        %v2804 = vshrl.u32 %v2803, 7
        %v2805 = vsub.s32 0, %v2804
        %v2806 = vrot.slane %v2774, %v2805
        %2807 = vrot.lane.b32.xlu0 %v2778, 32
        %v2808 = vpop.permute.xlu0 %2807
        %2809 = vrot.lane.b32.xlu0 %v2782, 32
        %v2810 = vpop.permute.xlu0 %2809
        %2811 = vrot.lane.b32.xlu0 %v2786, 32
        %v2812 = vpop.permute.xlu0 %2811
        %2813 = vrot.lane.b32.xlu0 %v2790, 32
        %v2814 = vpop.permute.xlu0 %2813
        %2815 = vrot.lane.b32.xlu0 %v2794, 32
        %v2816 = vpop.permute.xlu0 %2815
        %2817 = vrot.lane.b32.xlu0 %v2798, 32
        %v2818 = vpop.permute.xlu0 %2817
        %2819 = vrot.lane.b32.xlu0 %v2802, 32
        %v2820 = vpop.permute.xlu0 %2819
        %2821 = vrot.lane.b32.xlu0 %v2806, 32
        %v2822 = vpop.permute.xlu0 %2821
        %v2831 = vmul.f32 %v245, %v2808
        %v2832 = vmul.f32 %v246, %v2808
        %v2833 = vmul.f32 %v247, %v2810
        %v2834 = vmul.f32 %v248, %v2810
        %v2835 = vmul.f32 %v249, %v2812
        %v2836 = vmul.f32 %v250, %v2812
        %v2837 = vmul.f32 %v251, %v2814
        %v2838 = vmul.f32 %v252, %v2814
        %v2839 = vmul.f32 %v253, %v2816
        %v2840 = vmul.f32 %v254, %v2816
        %v2841 = vmul.f32 %v255, %v2818
        %v2842 = vmul.f32 %v256, %v2818
        %v2843 = vmul.f32 %v257, %v2820
        %v2844 = vmul.f32 %v258, %v2820
        %v2845 = vmul.f32 %v259, %v2822
        %v2846 = vmul.f32 %v260, %v2822
        %v2847 = vsel %vm292, %v2831, 0.0
        %2848 = vadd.xlane.f32.xlu0 %v2847
        %v2849 = vpop.xlane.xlu0 %2848
        %v2850 = vsel %vm292, %v2832, 0.0
        %2851 = vadd.xlane.f32.xlu0 %v2850
        %v2852 = vpop.xlane.xlu0 %2851
        %v2853 = vsel %vm292, %v2833, 0.0
        %2854 = vadd.xlane.f32.xlu0 %v2853
        %v2855 = vpop.xlane.xlu0 %2854
        %v2856 = vsel %vm292, %v2834, 0.0
        %2857 = vadd.xlane.f32.xlu0 %v2856
        %v2858 = vpop.xlane.xlu0 %2857
        %v2859 = vsel %vm292, %v2835, 0.0
        %2860 = vadd.xlane.f32.xlu0 %v2859
        %v2861 = vpop.xlane.xlu0 %2860
        %v2862 = vsel %vm292, %v2836, 0.0
        %2863 = vadd.xlane.f32.xlu0 %v2862
        %v2864 = vpop.xlane.xlu0 %2863
        %v2865 = vsel %vm292, %v2837, 0.0
        %2866 = vadd.xlane.f32.xlu0 %v2865
        %v2867 = vpop.xlane.xlu0 %2866
        %v2868 = vsel %vm292, %v2838, 0.0
        %2869 = vadd.xlane.f32.xlu0 %v2868
        %v2870 = vpop.xlane.xlu0 %2869
        %v2871 = vsel %vm292, %v2839, 0.0
        %2872 = vadd.xlane.f32.xlu0 %v2871
        %v2873 = vpop.xlane.xlu0 %2872
        %v2874 = vsel %vm292, %v2840, 0.0
        %2875 = vadd.xlane.f32.xlu0 %v2874
        %v2876 = vpop.xlane.xlu0 %2875
        %v2877 = vsel %vm292, %v2841, 0.0
        %2878 = vadd.xlane.f32.xlu0 %v2877
        %v2879 = vpop.xlane.xlu0 %2878
        %v2880 = vsel %vm292, %v2842, 0.0
        %2881 = vadd.xlane.f32.xlu0 %v2880
        %v2882 = vpop.xlane.xlu0 %2881
        %v2883 = vsel %vm292, %v2843, 0.0
        %2884 = vadd.xlane.f32.xlu0 %v2883
        %v2885 = vpop.xlane.xlu0 %2884
        %v2886 = vsel %vm292, %v2844, 0.0
        %2887 = vadd.xlane.f32.xlu0 %v2886
        %v2888 = vpop.xlane.xlu0 %2887
        %v2889 = vsel %vm292, %v2845, 0.0
        %2890 = vadd.xlane.f32.xlu0 %v2889
        %v2891 = vpop.xlane.xlu0 %2890
        %v2892 = vsel %vm292, %v2846, 0.0
        %2893 = vadd.xlane.f32.xlu0 %v2892
        %v2894 = vpop.xlane.xlu0 %2893
        %v2911 = vlaneseq
        %v2912 = vshrl.u32 %v2911, 7
        %v2913 = vsub.s32 %v358, %v2912
        %v2914 = vrot.slane %v2849, %v2913
        %v2915 = vlaneseq
        %v2916 = vshrl.u32 %v2915, 7
        %v2917 = vsub.s32 %v363, %v2916
        %v2918 = vrot.slane %v2852, %v2917
        %v2919 = vsel %vm368, %v2918, %v2914
        %v2920 = vlaneseq
        %v2921 = vshrl.u32 %v2920, 7
        %v2922 = vsub.s32 %v358, %v2921
        %v2923 = vrot.slane %v2855, %v2922
        %v2924 = vlaneseq
        %v2925 = vshrl.u32 %v2924, 7
        %v2926 = vsub.s32 %v363, %v2925
        %v2927 = vrot.slane %v2858, %v2926
        %v2928 = vsel %vm368, %v2927, %v2923
        %v2929 = vlaneseq
        %v2930 = vshrl.u32 %v2929, 7
        %v2931 = vsub.s32 %v358, %v2930
        %v2932 = vrot.slane %v2861, %v2931
        %v2933 = vlaneseq
        %v2934 = vshrl.u32 %v2933, 7
        %v2935 = vsub.s32 %v363, %v2934
        %v2936 = vrot.slane %v2864, %v2935
        %v2937 = vsel %vm368, %v2936, %v2932
        %v2938 = vlaneseq
        %v2939 = vshrl.u32 %v2938, 7
        %v2940 = vsub.s32 %v358, %v2939
        %v2941 = vrot.slane %v2867, %v2940
        %v2942 = vlaneseq
        %v2943 = vshrl.u32 %v2942, 7
        %v2944 = vsub.s32 %v363, %v2943
        %v2945 = vrot.slane %v2870, %v2944
        %v2946 = vsel %vm368, %v2945, %v2941
        %v2947 = vlaneseq
        %v2948 = vshrl.u32 %v2947, 7
        %v2949 = vsub.s32 %v358, %v2948
        %v2950 = vrot.slane %v2873, %v2949
        %v2951 = vlaneseq
        %v2952 = vshrl.u32 %v2951, 7
        %v2953 = vsub.s32 %v363, %v2952
        %v2954 = vrot.slane %v2876, %v2953
        %v2955 = vsel %vm368, %v2954, %v2950
        %v2956 = vlaneseq
        %v2957 = vshrl.u32 %v2956, 7
        %v2958 = vsub.s32 %v358, %v2957
        %v2959 = vrot.slane %v2879, %v2958
        %v2960 = vlaneseq
        %v2961 = vshrl.u32 %v2960, 7
        %v2962 = vsub.s32 %v363, %v2961
        %v2963 = vrot.slane %v2882, %v2962
        %v2964 = vsel %vm368, %v2963, %v2959
        %v2965 = vlaneseq
        %v2966 = vshrl.u32 %v2965, 7
        %v2967 = vsub.s32 %v358, %v2966
        %v2968 = vrot.slane %v2885, %v2967
        %v2969 = vlaneseq
        %v2970 = vshrl.u32 %v2969, 7
        %v2971 = vsub.s32 %v363, %v2970
        %v2972 = vrot.slane %v2888, %v2971
        %v2973 = vsel %vm368, %v2972, %v2968
        %v2974 = vlaneseq
        %v2975 = vshrl.u32 %v2974, 7
        %v2976 = vsub.s32 %v358, %v2975
        %v2977 = vrot.slane %v2891, %v2976
        %v2978 = vlaneseq
        %v2979 = vshrl.u32 %v2978, 7
        %v2980 = vsub.s32 %v363, %v2979
        %v2981 = vrot.slane %v2894, %v2980
        %v2982 = vsel %vm368, %v2981, %v2977
        %v2983 = vsel %vm433, %v2928, %v2919
        %v2984 = vsel %vm435, %v2937, %v2983
        %v2985 = vsel %vm437, %v2946, %v2984
        %v2986 = vsel %vm439, %v2955, %v2985
        %v2987 = vsel %vm441, %v2964, %v2986
        %v2988 = vsel %vm443, %v2973, %v2987
        %v2989 = vsel %vm445, %v2982, %v2988
        %v2991 = vsel %vm448, %v2989, -inf
        %2992 = vmax.xlane.f32.xlu0 %v2991
        %v2993 = vpop.xlane.xlu0 %2992
        %v2995 = vlaneseq
        %v2996 = vshrl.u32 %v2995, 7
        %v2997 = vsub.s32 0, %v2996
        %v2998 = vrot.slane %v2993, %v2997
        %v2999 = vlaneseq
        %v3000 = vshrl.u32 %v2999, 7
        %v3001 = vsub.s32 1, %v3000
        %v3002 = vrot.slane %v2993, %v3001
        %v3003 = vlaneseq
        %v3004 = vshrl.u32 %v3003, 7
        %v3005 = vsub.s32 2, %v3004
        %v3006 = vrot.slane %v2993, %v3005
        %v3007 = vlaneseq
        %v3008 = vshrl.u32 %v3007, 7
        %v3009 = vsub.s32 3, %v3008
        %v3010 = vrot.slane %v2993, %v3009
        %v3011 = vlaneseq
        %v3012 = vshrl.u32 %v3011, 7
        %v3013 = vsub.s32 4, %v3012
        %v3014 = vrot.slane %v2993, %v3013
        %v3015 = vlaneseq
        %v3016 = vshrl.u32 %v3015, 7
        %v3017 = vsub.s32 5, %v3016
        %v3018 = vrot.slane %v2993, %v3017
        %v3019 = vlaneseq
        %v3020 = vshrl.u32 %v3019, 7
        %v3021 = vsub.s32 6, %v3020
        %v3022 = vrot.slane %v2993, %v3021
        %v3023 = vlaneseq
        %v3024 = vshrl.u32 %v3023, 7
        %v3025 = vsub.s32 7, %v3024
        %v3026 = vrot.slane %v2993, %v3025
        %v3035 = vsub.f32 %v2849, %v2998
        %v3036 = vsub.f32 %v2852, %v2998
        %v3037 = vsub.f32 %v2855, %v3002
        %v3038 = vsub.f32 %v2858, %v3002
        %v3039 = vsub.f32 %v2861, %v3006
        %v3040 = vsub.f32 %v2864, %v3006
        %v3041 = vsub.f32 %v2867, %v3010
        %v3042 = vsub.f32 %v2870, %v3010
        %v3043 = vsub.f32 %v2873, %v3014
        %v3044 = vsub.f32 %v2876, %v3014
        %v3045 = vsub.f32 %v2879, %v3018
        %v3046 = vsub.f32 %v2882, %v3018
        %v3047 = vsub.f32 %v2885, %v3022
        %v3048 = vsub.f32 %v2888, %v3022
        %v3049 = vsub.f32 %v2891, %v3026
        %v3050 = vsub.f32 %v2894, %v3026
        %v3051 = vmul.f32 %v3035, 1.442695
        %v3052 = vpow.pop %v3051
        %v3053 = vmul.f32 %v3036, 1.442695
        %v3054 = vpow.pop %v3053
        %v3055 = vmul.f32 %v3037, 1.442695
        %v3056 = vpow.pop %v3055
        %v3057 = vmul.f32 %v3038, 1.442695
        %v3058 = vpow.pop %v3057
        %v3059 = vmul.f32 %v3039, 1.442695
        %v3060 = vpow.pop %v3059
        %v3061 = vmul.f32 %v3040, 1.442695
        %v3062 = vpow.pop %v3061
        %v3063 = vmul.f32 %v3041, 1.442695
        %v3064 = vpow.pop %v3063
        %v3065 = vmul.f32 %v3042, 1.442695
        %v3066 = vpow.pop %v3065
        %v3067 = vmul.f32 %v3043, 1.442695
        %v3068 = vpow.pop %v3067
        %v3069 = vmul.f32 %v3044, 1.442695
        %v3070 = vpow.pop %v3069
        %v3071 = vmul.f32 %v3045, 1.442695
        %v3072 = vpow.pop %v3071
        %v3073 = vmul.f32 %v3046, 1.442695
        %v3074 = vpow.pop %v3073
        %v3075 = vmul.f32 %v3047, 1.442695
        %v3076 = vpow.pop %v3075
        %v3077 = vmul.f32 %v3048, 1.442695
        %v3078 = vpow.pop %v3077
        %v3079 = vmul.f32 %v3049, 1.442695
        %v3080 = vpow.pop %v3079
        %v3081 = vmul.f32 %v3050, 1.442695
        %v3082 = vpow.pop %v3081
        %3099 = vset.pattern.permute.xlu0 0
        %3100 = vperm.xlu0 %3099, %v3052
        %v3101 = vpop.permute.xlu0 %3100
        %3102 = vset.pattern.permute.xlu0 0
        %3103 = vperm.xlu0 %3102, %v3054
        %v3104 = vpop.permute.xlu0 %3103
        %3105 = vset.pattern.permute.xlu0 0
        %3106 = vperm.xlu0 %3105, %v3056
        %v3107 = vpop.permute.xlu0 %3106
        %3108 = vset.pattern.permute.xlu0 0
        %3109 = vperm.xlu0 %3108, %v3058
        %v3110 = vpop.permute.xlu0 %3109
        %3111 = vset.pattern.permute.xlu0 0
        %3112 = vperm.xlu0 %3111, %v3060
        %v3113 = vpop.permute.xlu0 %3112
        %3114 = vset.pattern.permute.xlu0 0
        %3115 = vperm.xlu0 %3114, %v3062
        %v3116 = vpop.permute.xlu0 %3115
        %3117 = vset.pattern.permute.xlu0 0
        %3118 = vperm.xlu0 %3117, %v3064
        %v3119 = vpop.permute.xlu0 %3118
        %3120 = vset.pattern.permute.xlu0 0
        %3121 = vperm.xlu0 %3120, %v3066
        %v3122 = vpop.permute.xlu0 %3121
        %3123 = vset.pattern.permute.xlu0 0
        %3124 = vperm.xlu0 %3123, %v3068
        %v3125 = vpop.permute.xlu0 %3124
        %3126 = vset.pattern.permute.xlu0 0
        %3127 = vperm.xlu0 %3126, %v3070
        %v3128 = vpop.permute.xlu0 %3127
        %3129 = vset.pattern.permute.xlu0 0
        %3130 = vperm.xlu0 %3129, %v3072
        %v3131 = vpop.permute.xlu0 %3130
        %3132 = vset.pattern.permute.xlu0 0
        %3133 = vperm.xlu0 %3132, %v3074
        %v3134 = vpop.permute.xlu0 %3133
        %3135 = vset.pattern.permute.xlu0 0
        %3136 = vperm.xlu0 %3135, %v3076
        %v3137 = vpop.permute.xlu0 %3136
        %3138 = vset.pattern.permute.xlu0 0
        %3139 = vperm.xlu0 %3138, %v3078
        %v3140 = vpop.permute.xlu0 %3139
        %3141 = vset.pattern.permute.xlu0 0
        %3142 = vperm.xlu0 %3141, %v3080
        %v3143 = vpop.permute.xlu0 %3142
        %3144 = vset.pattern.permute.xlu0 0
        %3145 = vperm.xlu0 %3144, %v3082
        %v3146 = vpop.permute.xlu0 %3145
        %v3147 = vlaneseq
        %v3148 = vshrl.u32 %v3147, 7
        %v3149 = vsub.s32 %v358, %v3148
        %v3150 = vrot.slane %v3101, %v3149
        %v3151 = vlaneseq
        %v3152 = vshrl.u32 %v3151, 7
        %v3153 = vsub.s32 %v363, %v3152
        %v3154 = vrot.slane %v3104, %v3153
        %v3155 = vsel %vm368, %v3154, %v3150
        %v3156 = vlaneseq
        %v3157 = vshrl.u32 %v3156, 7
        %v3158 = vsub.s32 %v358, %v3157
        %v3159 = vrot.slane %v3107, %v3158
        %v3160 = vlaneseq
        %v3161 = vshrl.u32 %v3160, 7
        %v3162 = vsub.s32 %v363, %v3161
        %v3163 = vrot.slane %v3110, %v3162
        %v3164 = vsel %vm368, %v3163, %v3159
        %v3165 = vlaneseq
        %v3166 = vshrl.u32 %v3165, 7
        %v3167 = vsub.s32 %v358, %v3166
        %v3168 = vrot.slane %v3113, %v3167
        %v3169 = vlaneseq
        %v3170 = vshrl.u32 %v3169, 7
        %v3171 = vsub.s32 %v363, %v3170
        %v3172 = vrot.slane %v3116, %v3171
        %v3173 = vsel %vm368, %v3172, %v3168
        %v3174 = vlaneseq
        %v3175 = vshrl.u32 %v3174, 7
        %v3176 = vsub.s32 %v358, %v3175
        %v3177 = vrot.slane %v3119, %v3176
        %v3178 = vlaneseq
        %v3179 = vshrl.u32 %v3178, 7
        %v3180 = vsub.s32 %v363, %v3179
        %v3181 = vrot.slane %v3122, %v3180
        %v3182 = vsel %vm368, %v3181, %v3177
        %v3183 = vlaneseq
        %v3184 = vshrl.u32 %v3183, 7
        %v3185 = vsub.s32 %v358, %v3184
        %v3186 = vrot.slane %v3125, %v3185
        %v3187 = vlaneseq
        %v3188 = vshrl.u32 %v3187, 7
        %v3189 = vsub.s32 %v363, %v3188
        %v3190 = vrot.slane %v3128, %v3189
        %v3191 = vsel %vm368, %v3190, %v3186
        %v3192 = vlaneseq
        %v3193 = vshrl.u32 %v3192, 7
        %v3194 = vsub.s32 %v358, %v3193
        %v3195 = vrot.slane %v3131, %v3194
        %v3196 = vlaneseq
        %v3197 = vshrl.u32 %v3196, 7
        %v3198 = vsub.s32 %v363, %v3197
        %v3199 = vrot.slane %v3134, %v3198
        %v3200 = vsel %vm368, %v3199, %v3195
        %v3201 = vlaneseq
        %v3202 = vshrl.u32 %v3201, 7
        %v3203 = vsub.s32 %v358, %v3202
        %v3204 = vrot.slane %v3137, %v3203
        %v3205 = vlaneseq
        %v3206 = vshrl.u32 %v3205, 7
        %v3207 = vsub.s32 %v363, %v3206
        %v3208 = vrot.slane %v3140, %v3207
        %v3209 = vsel %vm368, %v3208, %v3204
        %v3210 = vlaneseq
        %v3211 = vshrl.u32 %v3210, 7
        %v3212 = vsub.s32 %v358, %v3211
        %v3213 = vrot.slane %v3143, %v3212
        %v3214 = vlaneseq
        %v3215 = vshrl.u32 %v3214, 7
        %v3216 = vsub.s32 %v363, %v3215
        %v3217 = vrot.slane %v3146, %v3216
        %v3218 = vsel %vm368, %v3217, %v3213
        %v3219 = vsel %vm433, %v3164, %v3155
        %v3220 = vsel %vm435, %v3173, %v3219
        %v3221 = vsel %vm437, %v3182, %v3220
        %v3222 = vsel %vm439, %v3191, %v3221
        %v3223 = vsel %vm441, %v3200, %v3222
        %v3224 = vsel %vm443, %v3209, %v3223
        %v3225 = vsel %vm445, %v3218, %v3224
        %v3227 = vsel %vm448, %v3225, 0.0
        %3228 = vadd.xlane.f32.xlu0 %v3227
        %v3229 = vpop.xlane.xlu0 %3228
        %v3230 = vrcp.pop %v3229
        %v3232 = vlaneseq
        %v3233 = vshrl.u32 %v3232, 7
        %v3234 = vsub.s32 0, %v3233
        %v3235 = vrot.slane %v3230, %v3234
        %v3236 = vlaneseq
        %v3237 = vshrl.u32 %v3236, 7
        %v3238 = vsub.s32 1, %v3237
        %v3239 = vrot.slane %v3230, %v3238
        %v3240 = vlaneseq
        %v3241 = vshrl.u32 %v3240, 7
        %v3242 = vsub.s32 2, %v3241
        %v3243 = vrot.slane %v3230, %v3242
        %v3244 = vlaneseq
        %v3245 = vshrl.u32 %v3244, 7
        %v3246 = vsub.s32 3, %v3245
        %v3247 = vrot.slane %v3230, %v3246
        %v3248 = vlaneseq
        %v3249 = vshrl.u32 %v3248, 7
        %v3250 = vsub.s32 4, %v3249
        %v3251 = vrot.slane %v3230, %v3250
        %v3252 = vlaneseq
        %v3253 = vshrl.u32 %v3252, 7
        %v3254 = vsub.s32 5, %v3253
        %v3255 = vrot.slane %v3230, %v3254
        %v3256 = vlaneseq
        %v3257 = vshrl.u32 %v3256, 7
        %v3258 = vsub.s32 6, %v3257
        %v3259 = vrot.slane %v3230, %v3258
        %v3260 = vlaneseq
        %v3261 = vshrl.u32 %v3260, 7
        %v3262 = vsub.s32 7, %v3261
        %v3263 = vrot.slane %v3230, %v3262
        %v3272 = vmul.f32 %v3052, %v3235
        %v3273 = vmul.f32 %v3054, %v3235
        %v3274 = vmul.f32 %v3056, %v3239
        %v3275 = vmul.f32 %v3058, %v3239
        %v3276 = vmul.f32 %v3060, %v3243
        %v3277 = vmul.f32 %v3062, %v3243
        %v3278 = vmul.f32 %v3064, %v3247
        %v3279 = vmul.f32 %v3066, %v3247
        %v3280 = vmul.f32 %v3068, %v3251
        %v3281 = vmul.f32 %v3070, %v3251
        %v3282 = vmul.f32 %v3072, %v3255
        %v3283 = vmul.f32 %v3074, %v3255
        %v3284 = vmul.f32 %v3076, %v3259
        %v3285 = vmul.f32 %v3078, %v3259
        %v3286 = vmul.f32 %v3080, %v3263
        %v3287 = vmul.f32 %v3082, %v3263
        %3289 = vset.pattern.permute.xlu0 0
        %3290 = vperm.xlu0 %3289, %v3272
        %v3291 = vpop.permute.xlu0 %3290
        %3294 = vset.pattern.permute.xlu0 0
        %3295 = vperm.xlu0 %3294, %v3273
        %v3296 = vpop.permute.xlu0 %3295
        %3299 = vset.pattern.permute.xlu0 0
        %3300 = vperm.xlu0 %3299, %v3274
        %v3301 = vpop.permute.xlu0 %3300
        %3304 = vset.pattern.permute.xlu0 0
        %3305 = vperm.xlu0 %3304, %v3275
        %v3306 = vpop.permute.xlu0 %3305
        %3309 = vset.pattern.permute.xlu0 0
        %3310 = vperm.xlu0 %3309, %v3276
        %v3311 = vpop.permute.xlu0 %3310
        %3314 = vset.pattern.permute.xlu0 0
        %3315 = vperm.xlu0 %3314, %v3277
        %v3316 = vpop.permute.xlu0 %3315
        %3319 = vset.pattern.permute.xlu0 0
        %3320 = vperm.xlu0 %3319, %v3278
        %v3321 = vpop.permute.xlu0 %3320
        %3324 = vset.pattern.permute.xlu0 0
        %3325 = vperm.xlu0 %3324, %v3279
        %v3326 = vpop.permute.xlu0 %3325
        %3329 = vset.pattern.permute.xlu0 0
        %3330 = vperm.xlu0 %3329, %v3280
        %v3331 = vpop.permute.xlu0 %3330
        %3334 = vset.pattern.permute.xlu0 0
        %3335 = vperm.xlu0 %3334, %v3281
        %v3336 = vpop.permute.xlu0 %3335
        %3339 = vset.pattern.permute.xlu0 0
        %3340 = vperm.xlu0 %3339, %v3282
        %v3341 = vpop.permute.xlu0 %3340
        %3344 = vset.pattern.permute.xlu0 0
        %3345 = vperm.xlu0 %3344, %v3283
        %v3346 = vpop.permute.xlu0 %3345
        %3349 = vset.pattern.permute.xlu0 0
        %3350 = vperm.xlu0 %3349, %v3284
        %v3351 = vpop.permute.xlu0 %3350
        %3354 = vset.pattern.permute.xlu0 0
        %3355 = vperm.xlu0 %3354, %v3285
        %v3356 = vpop.permute.xlu0 %3355
        %3359 = vset.pattern.permute.xlu0 0
        %3360 = vperm.xlu0 %3359, %v3286
        %v3361 = vpop.permute.xlu0 %3360
        %3364 = vset.pattern.permute.xlu0 0
        %3365 = vperm.xlu0 %3364, %v3287
        %v3366 = vpop.permute.xlu0 %3365
        %v3368 = vmul.f32 %v3291, %v245
        %v3369 = vmul.f32 %v3296, %v246
        %v3370 = vmul.f32 %v3301, %v247
        %v3371 = vmul.f32 %v3306, %v248
        %v3372 = vmul.f32 %v3311, %v249
        %v3373 = vmul.f32 %v3316, %v250
        %v3374 = vmul.f32 %v3321, %v251
        %v3375 = vmul.f32 %v3326, %v252
        %v3376 = vmul.f32 %v3331, %v253
        %v3377 = vmul.f32 %v3336, %v254
        %v3378 = vmul.f32 %v3341, %v255
        %v3379 = vmul.f32 %v3346, %v256
        %v3380 = vmul.f32 %v3351, %v257
        %v3381 = vmul.f32 %v3356, %v258
        %v3382 = vmul.f32 %v3361, %v259
        %v3383 = vmul.f32 %v3366, %v260
        %v3384 = vsel %vm292, %v3368, 0.0
        %v3385 = vsel %vm292, %v3369, 0.0
        %v3386 = vadd.f32 %v3384, %v3385
        %v3387 = vrot.slane %v3386, 4
        %v3388 = vadd.f32 %v3386, %v3387
        %v3389 = vrot.slane %v3388, 2
        %v3390 = vadd.f32 %v3388, %v3389
        %v3391 = vrot.slane %v3390, 1
        %v3392 = vadd.f32 %v3390, %v3391
        %v3393 = vsel %vm292, %v3370, 0.0
        %v3394 = vsel %vm292, %v3371, 0.0
        %v3395 = vadd.f32 %v3393, %v3394
        %v3396 = vrot.slane %v3395, 4
        %v3397 = vadd.f32 %v3395, %v3396
        %v3398 = vrot.slane %v3397, 2
        %v3399 = vadd.f32 %v3397, %v3398
        %v3400 = vrot.slane %v3399, 1
        %v3401 = vadd.f32 %v3399, %v3400
        %v3402 = vsel %vm292, %v3372, 0.0
        %v3403 = vsel %vm292, %v3373, 0.0
        %v3404 = vadd.f32 %v3402, %v3403
        %v3405 = vrot.slane %v3404, 4
        %v3406 = vadd.f32 %v3404, %v3405
        %v3407 = vrot.slane %v3406, 2
        %v3408 = vadd.f32 %v3406, %v3407
        %v3409 = vrot.slane %v3408, 1
        %v3410 = vadd.f32 %v3408, %v3409
        %v3411 = vsel %vm292, %v3374, 0.0
        %v3412 = vsel %vm292, %v3375, 0.0
        %v3413 = vadd.f32 %v3411, %v3412
        %v3414 = vrot.slane %v3413, 4
        %v3415 = vadd.f32 %v3413, %v3414
        %v3416 = vrot.slane %v3415, 2
        %v3417 = vadd.f32 %v3415, %v3416
        %v3418 = vrot.slane %v3417, 1
        %v3419 = vadd.f32 %v3417, %v3418
        %v3420 = vsel %vm292, %v3376, 0.0
        %v3421 = vsel %vm292, %v3377, 0.0
        %v3422 = vadd.f32 %v3420, %v3421
        %v3423 = vrot.slane %v3422, 4
        %v3424 = vadd.f32 %v3422, %v3423
        %v3425 = vrot.slane %v3424, 2
        %v3426 = vadd.f32 %v3424, %v3425
        %v3427 = vrot.slane %v3426, 1
        %v3428 = vadd.f32 %v3426, %v3427
        %v3429 = vsel %vm292, %v3378, 0.0
        %v3430 = vsel %vm292, %v3379, 0.0
        %v3431 = vadd.f32 %v3429, %v3430
        %v3432 = vrot.slane %v3431, 4
        %v3433 = vadd.f32 %v3431, %v3432
        %v3434 = vrot.slane %v3433, 2
        %v3435 = vadd.f32 %v3433, %v3434
        %v3436 = vrot.slane %v3435, 1
        %v3437 = vadd.f32 %v3435, %v3436
        %v3438 = vsel %vm292, %v3380, 0.0
        %v3439 = vsel %vm292, %v3381, 0.0
        %v3440 = vadd.f32 %v3438, %v3439
        %v3441 = vrot.slane %v3440, 4
        %v3442 = vadd.f32 %v3440, %v3441
        %v3443 = vrot.slane %v3442, 2
        %v3444 = vadd.f32 %v3442, %v3443
        %v3445 = vrot.slane %v3444, 1
        %v3446 = vadd.f32 %v3444, %v3445
        %v3447 = vsel %vm292, %v3382, 0.0
        %v3448 = vsel %vm292, %v3383, 0.0
        %v3449 = vadd.f32 %v3447, %v3448
        %v3450 = vrot.slane %v3449, 4
        %v3451 = vadd.f32 %v3449, %v3450
        %v3452 = vrot.slane %v3451, 2
        %v3453 = vadd.f32 %v3451, %v3452
        %v3454 = vrot.slane %v3453, 1
        %v3455 = vadd.f32 %v3453, %v3454
        %3456 = vrot.lane.b32.xlu0 %v1774, 32
        %v3457 = vpop.permute.xlu0 %3456
        %3459 = vrot.lane.b32.xlu0 %v2622, 64
        %v3460 = vpop.permute.xlu0 %3459
        %v3470 = vsel %vm433, %v3401, %v3392
        %v3471 = vsel %vm435, %v3410, %v3470
        %v3472 = vsel %vm437, %v3419, %v3471
        %v3473 = vsel %vm439, %v3428, %v3472
        %v3474 = vsel %vm441, %v3437, %v3473
        %v3475 = vsel %vm443, %v3446, %v3474
        %v3476 = vsel %vm445, %v3455, %v3475
        %3477 = vrot.lane.b32.xlu0 %v3476, 96
        %v3478 = vpop.permute.xlu0 %3477
        %v3480 = vsel %vm292, %v928, %v3457
        %v3481 = vsel %vm931, %v3480, %v3460
        %vm3482 = vcmask 785408
        %v3483 = vsel %vm3482, %v3481, %v3478
        %v3484 = vld [vmem:[%s3] sm:$0xff]
        %v3485 = vld [vmem:[%s3 + $0x8] sm:$0xff]
        %v3486 = vld [vmem:[%s3 + $0x10] sm:$0xff]
        %v3487 = vld [vmem:[%s3 + $0x18] sm:$0xff]
        %v3488 = vld [vmem:[%s3 + $0x20] sm:$0xff]
        %v3489 = vld [vmem:[%s3 + $0x28] sm:$0xff]
        %v3490 = vld [vmem:[%s3 + $0x30] sm:$0xff]
        %v3491 = vld [vmem:[%s3 + $0x38] sm:$0xff]
        %v3492 = vld [vmem:[%s3 + $0x40] sm:$0xff]
        %v3493 = vld [vmem:[%s3 + $0x48] sm:$0xff]
        %v3494 = vld [vmem:[%s3 + $0x50] sm:$0xff]
        %v3495 = vld [vmem:[%s3 + $0x58] sm:$0xff]
        %v3496 = vld [vmem:[%s3 + $0x60] sm:$0xff]
        %v3497 = vld [vmem:[%s3 + $0x68] sm:$0xff]
        %v3498 = vld [vmem:[%s3 + $0x70] sm:$0xff]
        %v3499 = vld [vmem:[%s3 + $0x78] sm:$0xff]
        %v3500 = vld [vmem:[%s4] sm:$0x1]
        %v3502 = vlaneseq
        %v3503 = vshrl.u32 %v3502, 7
        %v3504 = vsub.s32 0, %v3503
        %v3505 = vrot.slane %v3500, %v3504
        %3507 = vmatprep.subr.mxu0 0.0
        %3508 = vmatpush1.msra.mxu0 %v3484
        %3509 = vmatprep.subr.mxu0 0.0
        %3510 = vmatpush1.msra.mxu0 %v3485
        %3511 = vmatprep.subr.mxu0 0.0
        %3512 = vmatpush1.msra.mxu0 %v3486
        %3513 = vmatprep.subr.mxu0 0.0
        %3514 = vmatpush1.msra.mxu0 %v3487
        %3515 = vmatprep.subr.mxu0 0.0
        %3516 = vmatpush1.msra.mxu0 %v3488
        %3517 = vmatprep.subr.mxu0 0.0
        %3518 = vmatpush1.msra.mxu0 %v3489
        %3519 = vmatprep.subr.mxu0 0.0
        %3520 = vmatpush1.msra.mxu0 %v3490
        %3521 = vmatprep.subr.mxu0 0.0
        %3522 = vmatpush1.msra.mxu0 %v3491
        %3523 = vmatprep.subr.mxu0 0.0
        %3524 = vmatpush1.msra.mxu0 %v3492
        %3525 = vmatprep.subr.mxu0 0.0
        %3526 = vmatpush1.msra.mxu0 %v3493
        %3527 = vmatprep.subr.mxu0 0.0
        %3528 = vmatpush1.msra.mxu0 %v3494
        %3529 = vmatprep.subr.mxu0 0.0
        %3530 = vmatpush1.msra.mxu0 %v3495
        %3531 = vmatprep.subr.mxu0 0.0
        %3532 = vmatpush1.msra.mxu0 %v3496
        %3533 = vmatprep.subr.mxu0 0.0
        %3534 = vmatpush1.msra.mxu0 %v3497
        %3535 = vmatprep.subr.mxu0 0.0
        %3536 = vmatpush1.msra.mxu0 %v3498
        %3537 = vmatprep.subr.mxu0 0.0
        %3538 = vmatpush1.msra.mxu0 %v3499
        %3539 = vmatprep.subr.mxu0 0.0
        %3540 = vmatpush1.msra.mxu0 0.0
        %3541 = vmatprep.subr.mxu0 0.0
        %3542 = vmatpush1.msra.mxu0 0.0
        %3543 = vmatprep.subr.mxu0 0.0
        %3544 = vmatpush1.msra.mxu0 0.0
        %3545 = vmatprep.subr.mxu0 0.0
        %3546 = vmatpush1.msra.mxu0 0.0
        %3547 = vmatprep.subr.mxu0 0.0
        %3548 = vmatpush1.msra.mxu0 0.0
        %3549 = vmatprep.subr.mxu0 0.0
        %3550 = vmatpush1.msra.mxu0 0.0
        %3551 = vmatprep.subr.mxu0 0.0
        %3552 = vmatpush1.msra.mxu0 0.0
        %3553 = vmatprep.subr.mxu0 0.0
        %3554 = vmatpush1.msra.mxu0 0.0
        %3555 = vmatprep.subr.mxu0 0.0
        %3556 = vmatpush1.msra.mxu0 0.0
        %3557 = vmatprep.subr.mxu0 0.0
        %3558 = vmatpush1.msra.mxu0 0.0
        %3559 = vmatprep.subr.mxu0 0.0
        %3560 = vmatpush1.msra.mxu0 0.0
        %3561 = vmatprep.subr.mxu0 0.0
        %3562 = vmatpush1.msra.mxu0 0.0
        %3563 = vmatprep.subr.mxu0 0.0
        %3564 = vmatpush1.msra.mxu0 0.0
        %3565 = vmatprep.subr.mxu0 0.0
        %3566 = vmatpush1.msra.mxu0 0.0
        %3567 = vmatprep.subr.mxu0 0.0
        %3568 = vmatpush1.msra.mxu0 0.0
        %3569 = vmatprep.subr.mxu0 0.0
        %3570 = vmatpush1.msra.mxu0 0.0
        %3571 = vmatprep.mubr.f32.mxu0 0.0
        %3572 = vmatmul.mubr.f32.gmra.mrb[0].mxu0 %v3483
        %v3573 = vpop.f32.mrb[0].mxu0
        %v3574 = vadd.f32 %v3505, %v3573
        %v3575 = vpop.f32.mrb[0].mxu0
        %3576 = vdwg.mxu0
        %v3577 = vsel %vm292, %v3574, -inf
        %3578 = vmax.xlane.f32.xlu0 %v3577
        %v3579 = vpop.xlane.xlu0 %3578
        %v3580 = vsub.f32 %v3574, %v3579
        %v3581 = vmul.f32 %v3580, 1.442695
        %v3582 = vpow.pop %v3581
        %v3583 = vsel %vm292, %v3582, 0.0
        %3584 = vadd.xlane.f32.xlu0 %v3583
        %v3585 = vpop.xlane.xlu0 %3584
        %v3586 = vrcp.pop %v3585
        %v3587 = vmul.f32 %v3582, %v3586
        %3588 = vst.msk [vmem:[%s243] sm:$0xff] %vm292, %v3587
        %s3589 = sand.u32 %s140, 1
        %s3590 = scalar_lea.sflag [#allocation4], %s3589
        %s3591 = sand.u32 %s140, 1
        %s3592 = smul.addr %s3591, 8
        %s3593 = scalar_lea.vmem [#allocation5], %s3592
        // Predicated region
        $region45: #{tpu_custom_call.1} parent=39 // pred_check
          %p3594 = pneg %p150
        $region46: #{tpu_custom_call.1} parent=39 // pred_check_branch
          %3596 = sbr.rel (%p3594) target = $region48
        $region47: #{tpu_custom_call.1} parent=39 // pred_region
          %s3598 = ssub.s32 128, 128
          %3599 = vsyncadd %s3590, %s3598
          %s3600 = smul.addr %s22, 128
          %s3601 = scalar_lea.hbm %s5, %s3600
          %s3603 = sshll.u32 %s3593, 4
          %s3604 = int_to_ptr.vmem [resolvable:$true] %s3603
          %3606 = dma.vmem_to_hbm [thread:$0]  %s3604, 128, %s3601, %s3590
        $region48: #{tpu_custom_call.1} parent=39 // pred_fallthru
          _
      $region40: #{tpu_custom_call.1} parent=5 // pred_fallthru
        _
      %p3607 = scmp.le.s32.totalorder 2, %s17
      // Predicated region
      $region49: #{tpu_custom_call.1} parent=5 // pred_check
        %p3608 = pneg %p3607
      $region50: #{tpu_custom_call.1} parent=5 // pred_check_branch
        %3610 = sbr.rel (%p3608) target = $region52
      $region51: #{tpu_custom_call.1} parent=5 // pred_region
        %s3611 = ssub.s32 %s17, 2
        // Predicated region
        $region53: #{tpu_custom_call.1} parent=51 // pred_check
          %p3612 = pneg %p156
        $region54: #{tpu_custom_call.1} parent=51 // pred_check_branch
          %3614 = sbr.rel (%p3612) target = $region56
        $region55: #{tpu_custom_call.1} parent=51 // pred_region
          %s3615 = sand.u32 %s141, 1
          %s3616 = scalar_lea.sflag [#allocation4], %s3615
          %s3617 = sand.u32 %s141, 1
          %s3618 = smul.addr %s3617, 8
          %s3619 = scalar_lea.vmem [#allocation5], %s3618
          %3620 = dma.done %s3616, 128
        $region56: #{tpu_custom_call.1} parent=51 // pred_fallthru
          _
      $region52: #{tpu_custom_call.1} parent=5 // pred_fallthru
        _
    $region6: #{tpu_custom_call.1} parent=1 // loop_footer
      %s21 = sadd.s32 1, %s17
    $region7: #{tpu_custom_call.1} parent=1 // loop_footer_branch
      %16 = sbr.rel target = $region3
    $region8: #{tpu_custom_call.1} parent=1 // loop_exit
      _
    %3621 = vsyncpa [#allocation3], 1
    %s3622 = scalar_lea.sflag [#allocation3], 1
    %3623 = vsyncpa %s3622, 1
    %3624 = vsyncpa [#allocation4], 1
    %s3625 = scalar_lea.sflag [#allocation4], 1
    %3626 = vsyncpa %s3625, 1

</llo_original>
